<compile_context>
chip_gen: v7x
topology: tpu7x:2x2x1
jax: 0.10.0
libtpu: 0.0.40
codegen_flags: <defaults>
</compile_context>

<pallas_src>
import jax
import jax.numpy as jnp
from jax import lax
from jax.experimental import pallas as pl
from jax.experimental.pallas import tpu as pltpu


def basic_block_kernel(x_ref, w1_ref, s1_ref, b1_ref,
                       w2_ref, s2_ref, b2_ref, out_ref, pad_ref):
    """One batch sample per grid step.

    x_ref   : (1, H, W, Cp)  unpadded input block (NHWC, channels padded to Cp)
    w1_ref  : (9*Cp, Cp)     conv1 weights, bf16, row = (ky*3+kx)*Cp + cin
    s1/b1   : (1, Cp)        folded BN1 scale / bias (f32)
    w2_ref  : (9*Cp, Cp)     conv2 weights, bf16
    s2/b2   : (1, Cp)        folded BN2 scale / bias (f32)
    out_ref : (1, H, W, Cp)
    pad_ref : VMEM (H+2, W+2, Cp) f32 halo scratch (interior fully overwritten
              every step; only the 1-pixel border is zeroed here).
    """
    _, H, W, Cp = x_ref.shape
    Hp, Wp = H + 2, W + 2

    # --- keep the halo border at zero.  Zero only the 2 rows + 2 columns
    #     (cheap), never the full tile.  Done every step (not under
    #     pl.when(program_id==0)) so it stays correct if the "parallel" batch
    #     axis is sharded across TensorCores with per-core scratch.
    zrow = jnp.zeros((1, Wp, Cp), jnp.float32)
    zcol = jnp.zeros((Hp, 1, Cp), jnp.float32)
    pad_ref[0:1, :, :] = zrow
    pad_ref[Hp - 1:Hp, :, :] = zrow
    pad_ref[:, 0:1, :] = zcol
    pad_ref[:, Wp - 1:Wp, :] = zcol

    x = x_ref[0]                                          # (H, W, Cp), f32

    def conv3x3(w_ref):
        # im2col: concatenate the 9 shifted windows -> (H*W, 9*Cp), then a
        # single bf16 MXU matmul with f32 accumulation.
        hp = pad_ref[...]
        cols = [hp[dy:dy + H, dx:dx + W, :].reshape(H * W, Cp)
                for dy in range(3) for dx in range(3)]
        patches = jnp.concatenate(cols, axis=-1).astype(jnp.bfloat16)
        return jnp.dot(patches, w_ref[...],
                       preferred_element_type=jnp.float32)

    # ---- conv1 + bn1 + relu ----
    pad_ref[1:H + 1, 1:W + 1, :] = x
    h = conv3x3(w1_ref) * s1_ref[0] + b1_ref[0]           # (H*W, Cp) f32
    h = jnp.maximum(h, 0.0)

    # ---- conv2 + bn2 + residual + relu ----
    pad_ref[1:H + 1, 1:W + 1, :] = h.reshape(H, W, Cp)
    o = conv3x3(w2_ref) * s2_ref[0] + b2_ref[0]
    o = jnp.maximum(o + x.reshape(H * W, Cp), 0.0)        # aligned residual

    out_ref[0] = o.reshape(H, W, Cp)


def basic_block_pallas(x_nchw, w1_hwio, bn1, w2_hwio, bn2, eps=1e-5):
    """x_nchw: (N, C, H, W)  -> (N, C, H, W)   (stride=1, no downsample)."""
    N, C, H, W = x_nchw.shape
    Cp = ((C + 127) // 128) * 128        # lane-dense channel padding (>= 128)

    # NCHW -> NHWC, pad channels only (no spatial HBM padding).
    x = jnp.transpose(x_nchw, (0, 2, 3, 1)).astype(jnp.float32)
    x = jnp.pad(x, ((0, 0), (0, 0), (0, 0), (0, Cp - C)))

    # Fold BN (eval semantics) into per-channel scale/bias; zero-pad channels.
    def fold(bn):
        gamma, beta, mean, var = (jnp.asarray(t, jnp.float32) for t in bn)
        scale = gamma / jnp.sqrt(var + eps)
        bias = beta - mean * scale
        scale = jnp.pad(scale, (0, Cp - C)).reshape(1, Cp)
        bias = jnp.pad(bias, (0, Cp - C)).reshape(1, Cp)
        return scale, bias

    s1, b1 = fold(bn1)
    s2, b2 = fold(bn2)

    # HWIO (3,3,C,C) -> zero-padded (3,3,Cp,Cp) -> im2col weight (9*Cp, Cp), bf16.
    def pack_w(w):
        w = jnp.asarray(w, jnp.float32)
        w = jnp.pad(w, ((0, 0), (0, 0), (0, Cp - C), (0, Cp - C)))
        return w.reshape(9 * Cp, Cp).astype(jnp.bfloat16)

    w1 = pack_w(w1_hwio)
    w2 = pack_w(w2_hwio)

    # Explicit scoped-VMEM budget: blocks + scratch + weights + temporaries.
    est = (
        4 * H * W * Cp * 4                    # in + out blocks, double-buffered
        + (H + 2) * (W + 2) * Cp * 4          # halo scratch
        + 2 * 2 * 9 * Cp * Cp * 2             # two bf16 weight operands (x2 buf)
        + 4 * H * W * 9 * Cp * 2              # im2col temporaries (bf16)
        + 4 * H * W * Cp * 4                  # misc f32 temporaries
    )
    vmem_limit = max(16 * 1024 * 1024, min(2 * est, 48 * 1024 * 1024))

    out_nhwc = pl.pallas_call(
        basic_block_kernel,
        out_shape=jax.ShapeDtypeStruct((N, H, W, Cp), jnp.float32),
        grid_spec=pltpu.PrefetchScalarGridSpec(
            num_scalar_prefetch=0,
            grid=(N,),
            in_specs=[
                pl.BlockSpec((1, H, W, Cp), lambda n: (n, 0, 0, 0)),
                pl.BlockSpec((9 * Cp, Cp), lambda n: (0, 0)),
                pl.BlockSpec((1, Cp), lambda n: (0, 0)),
                pl.BlockSpec((1, Cp), lambda n: (0, 0)),
                pl.BlockSpec((9 * Cp, Cp), lambda n: (0, 0)),
                pl.BlockSpec((1, Cp), lambda n: (0, 0)),
                pl.BlockSpec((1, Cp), lambda n: (0, 0)),
            ],
            out_specs=pl.BlockSpec((1, H, W, Cp), lambda n: (n, 0, 0, 0)),
            scratch_shapes=[pltpu.VMEM((H + 2, W + 2, Cp), jnp.float32)],
        ),
        compiler_params=pltpu.CompilerParams(
            dimension_semantics=("parallel",),
            vmem_limit_bytes=int(vmem_limit)),
    )(x, w1, s1, b1, w2, s2, b2)

    # Drop channel padding, NHWC -> NCHW.
    return jnp.transpose(out_nhwc[..., :C], (0, 3, 1, 2))


def basic_block_reference(x_nchw, w1_hwio, bn1, w2_hwio, bn2, eps=1e-5):
    """Pure-JAX reference (eval-mode BN), NHWC internally."""
    x = jnp.transpose(x_nchw, (0, 2, 3, 1)).astype(jnp.float32)

    def conv(a, w):
        return lax.conv_general_dilated(
            a, w, window_strides=(1, 1), padding=((1, 1), (1, 1)),
            dimension_numbers=("NHWC", "HWIO", "NHWC"))

    def bn(a, p):
        gamma, beta, mean, var = p
        return (a - mean) / jnp.sqrt(var + eps) * gamma + beta

    h = jax.nn.relu(bn(conv(x, w1_hwio), bn1))
    o = bn(conv(h, w2_hwio), bn2) + x
    o = jax.nn.relu(o)
    return jnp.transpose(o, (0, 3, 1, 2))


if __name__ == "__main__":
    key = jax.random.PRNGKey(0)
    N, C, H, W = 2, 8, 16, 16          # inplanes == planes == 8, stride=1

    k = jax.random.split(key, 8)
    x = jax.random.normal(k[0], (N, C, H, W), jnp.float32)

    # kaiming_normal_(mode='fan_out', nonlinearity='relu'): std = sqrt(2 / fan_out)
    fan_out = C * 3 * 3
    std = (2.0 / fan_out) ** 0.5
    w1 = jax.random.normal(k[1], (3, 3, C, C), jnp.float32) * std   # HWIO
    w2 = jax.random.normal(k[2], (3, 3, C, C), jnp.float32) * std   # HWIO

    # BN params per module init: weight=1, bias=0; running stats deterministic
    # (slightly perturbed so the BN affine transform is non-trivial).
    bn1 = (jnp.ones((C,)), jnp.zeros((C,)),
           0.1 * jax.random.normal(k[3], (C,)),
           1.0 + 0.1 * jax.random.uniform(k[4], (C,)))
    bn2 = (jnp.ones((C,)), jnp.zeros((C,)),
           0.1 * jax.random.normal(k[5], (C,)),
           1.0 + 0.1 * jax.random.uniform(k[6], (C,)))

    out = basic_block_pallas(x, w1, bn1, w2, bn2)
    out = jax.block_until_ready(out)

    ref = basic_block_reference(x, w1, bn1, w2, bn2)
    assert out.shape == (N, C, H, W)
    err = float(jnp.max(jnp.abs(out - ref)))
    # bf16 MXU inputs -> loosened tolerance vs f32 reference.
    assert err < 5e-2, f"mismatch vs JAX reference: max abs err {err}"

    print("KERNEL_OK")
</pallas_src>

<mosaic_0001>
module attributes {stable_mosaic.version = 11 : i64} {
  func.func @basic_block_kernel(%arg0: i32, %arg1: memref<1x16x16x128xf32, #tpu.memory_space<vmem>>, %arg2: memref<1152x128xbf16, #tpu.memory_space<vmem>>, %arg3: memref<1x128xf32, #tpu.memory_space<vmem>>, %arg4: memref<1x128xf32, #tpu.memory_space<vmem>>, %arg5: memref<1152x128xbf16, #tpu.memory_space<vmem>>, %arg6: memref<1x128xf32, #tpu.memory_space<vmem>>, %arg7: memref<1x128xf32, #tpu.memory_space<vmem>>, %arg8: memref<1x16x16x128xf32, #tpu.memory_space<vmem>>, %arg9: memref<18x18x128xf32, #tpu.memory_space<vmem>>) attributes {dimension_semantics = [#tpu.dimension_semantics<parallel>], iteration_bounds = array<i64: 2>, scalar_prefetch = 0 : i64, scratch_operands = 1 : i64, tpu.core_type = #tpu.core_type<tc>, window_params = [{transform_indices = @transform_0, window_bounds = array<i64: 1, 16, 16, 128>}, {pipeline_mode = #tpu.pipeline_mode<synchronous>, transform_indices = @transform_1, window_bounds = array<i64: 1152, 128>}, {pipeline_mode = #tpu.pipeline_mode<synchronous>, transform_indices = @transform_2, window_bounds = array<i64: 1, 128>}, {pipeline_mode = #tpu.pipeline_mode<synchronous>, transform_indices = @transform_3, window_bounds = array<i64: 1, 128>}, {pipeline_mode = #tpu.pipeline_mode<synchronous>, transform_indices = @transform_4, window_bounds = array<i64: 1152, 128>}, {pipeline_mode = #tpu.pipeline_mode<synchronous>, transform_indices = @transform_5, window_bounds = array<i64: 1, 128>}, {pipeline_mode = #tpu.pipeline_mode<synchronous>, transform_indices = @transform_6, window_bounds = array<i64: 1, 128>}, {transform_indices = @transform_7, window_bounds = array<i64: 1, 16, 16, 128>}]} {
    %cst = arith.constant 0.000000e+00 : f32
    %0 = vector.broadcast %cst : f32 to vector<1x18x128xf32>
    %cst_0 = arith.constant 0.000000e+00 : f32
    %1 = vector.broadcast %cst_0 : f32 to vector<18x1x128xf32>
    %c0 = arith.constant 0 : index
    %c0_1 = arith.constant 0 : index
    %c0_2 = arith.constant 0 : index
    %2 = vector.load %arg9[%c0, %c0_1, %c0_2] : memref<18x18x128xf32, #tpu.memory_space<vmem>>, vector<1x18x128xf32>
    tpu.vector_store %arg9[%c0, %c0_1, %c0_2], %0 {strides = array<i32>} : memref<18x18x128xf32, #tpu.memory_space<vmem>>, vector<1x18x128xf32>,
    %c17 = arith.constant 17 : index
    %c0_3 = arith.constant 0 : index
    %c0_4 = arith.constant 0 : index
    %3 = vector.load %arg9[%c17, %c0_3, %c0_4] : memref<18x18x128xf32, #tpu.memory_space<vmem>>, vector<1x18x128xf32>
    tpu.vector_store %arg9[%c17, %c0_3, %c0_4], %0 {strides = array<i32>} : memref<18x18x128xf32, #tpu.memory_space<vmem>>, vector<1x18x128xf32>,
    %c0_5 = arith.constant 0 : index
    %c0_6 = arith.constant 0 : index
    %c0_7 = arith.constant 0 : index
    %4 = vector.load %arg9[%c0_5, %c0_6, %c0_7] : memref<18x18x128xf32, #tpu.memory_space<vmem>>, vector<18x1x128xf32>
    tpu.vector_store %arg9[%c0_5, %c0_6, %c0_7], %1 {strides = array<i32>} : memref<18x18x128xf32, #tpu.memory_space<vmem>>, vector<18x1x128xf32>,
    %c0_8 = arith.constant 0 : index
    %c17_9 = arith.constant 17 : index
    %c0_10 = arith.constant 0 : index
    %5 = vector.load %arg9[%c0_8, %c17_9, %c0_10] : memref<18x18x128xf32, #tpu.memory_space<vmem>>, vector<18x1x128xf32>
    tpu.vector_store %arg9[%c0_8, %c17_9, %c0_10], %1 {strides = array<i32>} : memref<18x18x128xf32, #tpu.memory_space<vmem>>, vector<18x1x128xf32>,
    %c0_11 = arith.constant 0 : index
    %c0_12 = arith.constant 0 : index
    %c0_13 = arith.constant 0 : index
    %c0_14 = arith.constant 0 : index
    %6 = vector.load %arg1[%c0_11, %c0_12, %c0_13, %c0_14] : memref<1x16x16x128xf32, #tpu.memory_space<vmem>>, vector<1x16x16x128xf32>
    %7 = vector.shape_cast %6 : vector<1x16x16x128xf32> to vector<16x16x128xf32>
    %c1 = arith.constant 1 : index
    %c1_15 = arith.constant 1 : index
    %c0_16 = arith.constant 0 : index
    %8 = vector.load %arg9[%c1, %c1_15, %c0_16] : memref<18x18x128xf32, #tpu.memory_space<vmem>>, vector<16x16x128xf32>
    tpu.vector_store %arg9[%c1, %c1_15, %c0_16], %7 {strides = array<i32>} : memref<18x18x128xf32, #tpu.memory_space<vmem>>, vector<16x16x128xf32>,
    %c0_17 = arith.constant 0 : index
    %c0_18 = arith.constant 0 : index
    %c0_19 = arith.constant 0 : index
    %9 = vector.load %arg9[%c0_17, %c0_18, %c0_19] : memref<18x18x128xf32, #tpu.memory_space<vmem>>, vector<18x18x128xf32>
    %10 = vector.extract_strided_slice %9 {offsets = [0, 0, 0], sizes = [16, 16, 128], strides = [1, 1, 1]} : vector<18x18x128xf32> to vector<16x16x128xf32>
    %11 = vector.shape_cast %10 : vector<16x16x128xf32> to vector<256x128xf32>
    %12 = vector.extract_strided_slice %9 {offsets = [0, 1, 0], sizes = [16, 16, 128], strides = [1, 1, 1]} : vector<18x18x128xf32> to vector<16x16x128xf32>
    %13 = vector.shape_cast %12 : vector<16x16x128xf32> to vector<256x128xf32>
    %14 = vector.extract_strided_slice %9 {offsets = [0, 2, 0], sizes = [16, 16, 128], strides = [1, 1, 1]} : vector<18x18x128xf32> to vector<16x16x128xf32>
    %15 = vector.shape_cast %14 : vector<16x16x128xf32> to vector<256x128xf32>
    %16 = vector.extract_strided_slice %9 {offsets = [1, 0, 0], sizes = [16, 16, 128], strides = [1, 1, 1]} : vector<18x18x128xf32> to vector<16x16x128xf32>
    %17 = vector.shape_cast %16 : vector<16x16x128xf32> to vector<256x128xf32>
    %18 = vector.extract_strided_slice %9 {offsets = [1, 1, 0], sizes = [16, 16, 128], strides = [1, 1, 1]} : vector<18x18x128xf32> to vector<16x16x128xf32>
    %19 = vector.shape_cast %18 : vector<16x16x128xf32> to vector<256x128xf32>
    %20 = vector.extract_strided_slice %9 {offsets = [1, 2, 0], sizes = [16, 16, 128], strides = [1, 1, 1]} : vector<18x18x128xf32> to vector<16x16x128xf32>
    %21 = vector.shape_cast %20 : vector<16x16x128xf32> to vector<256x128xf32>
    %22 = vector.extract_strided_slice %9 {offsets = [2, 0, 0], sizes = [16, 16, 128], strides = [1, 1, 1]} : vector<18x18x128xf32> to vector<16x16x128xf32>
    %23 = vector.shape_cast %22 : vector<16x16x128xf32> to vector<256x128xf32>
    %24 = vector.extract_strided_slice %9 {offsets = [2, 1, 0], sizes = [16, 16, 128], strides = [1, 1, 1]} : vector<18x18x128xf32> to vector<16x16x128xf32>
    %25 = vector.shape_cast %24 : vector<16x16x128xf32> to vector<256x128xf32>
    %26 = vector.extract_strided_slice %9 {offsets = [2, 2, 0], sizes = [16, 16, 128], strides = [1, 1, 1]} : vector<18x18x128xf32> to vector<16x16x128xf32>
    %27 = vector.shape_cast %26 : vector<16x16x128xf32> to vector<256x128xf32>
    %28 = tpu.concatenate %11, %13, %15, %17, %19, %21, %23, %25, %27 in 1 : vector<256x128xf32>, vector<256x128xf32>, vector<256x128xf32>, vector<256x128xf32>, vector<256x128xf32>, vector<256x128xf32>, vector<256x128xf32>, vector<256x128xf32>, vector<256x128xf32> -> vector<256x1152xf32>
    %29 = arith.truncf %28 : vector<256x1152xf32> to vector<256x1152xbf16>
    %c0_20 = arith.constant 0 : index
    %c0_21 = arith.constant 0 : index
    %30 = vector.load %arg2[%c0_20, %c0_21] : memref<1152x128xbf16, #tpu.memory_space<vmem>>, vector<1152x128xbf16>
    %cst_22 = arith.constant dense<0.000000e+00> : vector<256x128xf32>
    %31 = tpu.matmul %29, %30, %cst_22 {dimension_numbers = #tpu.dot_dimension_numbers<[1], [0], [0], [1], [0, 0, 1, 1], [], []>} : vector<256x1152xbf16>, vector<1152x128xbf16>, vector<256x128xf32> -> vector<256x128xf32>
    %c0_23 = arith.constant 0 : index
    %c0_24 = arith.constant 0 : index
    %32 = vector.load %arg3[%c0_23, %c0_24] : memref<1x128xf32, #tpu.memory_space<vmem>>, vector<1x128xf32>
    %33 = vector.shape_cast %32 : vector<1x128xf32> to vector<128xf32>
    %34 = vector.shape_cast %33 : vector<128xf32> to vector<1x128xf32>
    %35 = vector.broadcast %34 : vector<1x128xf32> to vector<256x128xf32>
    %36 = arith.mulf %31, %35 : vector<256x128xf32>
    %c0_25 = arith.constant 0 : index
    %c0_26 = arith.constant 0 : index
    %37 = vector.load %arg4[%c0_25, %c0_26] : memref<1x128xf32, #tpu.memory_space<vmem>>, vector<1x128xf32>
    %38 = vector.shape_cast %37 : vector<1x128xf32> to vector<128xf32>
    %39 = vector.shape_cast %38 : vector<128xf32> to vector<1x128xf32>
    %40 = vector.broadcast %39 : vector<1x128xf32> to vector<256x128xf32>
    %41 = arith.addf %36, %40 : vector<256x128xf32>
    %cst_27 = arith.constant 0.000000e+00 : f32
    %42 = vector.broadcast %cst_27 : f32 to vector<256x128xf32>
    %43 = arith.maximumf %41, %42 : vector<256x128xf32>
    %44 = vector.shape_cast %43 : vector<256x128xf32> to vector<16x16x128xf32>
    %c1_28 = arith.constant 1 : index
    %c1_29 = arith.constant 1 : index
    %c0_30 = arith.constant 0 : index
    %45 = vector.load %arg9[%c1_28, %c1_29, %c0_30] : memref<18x18x128xf32, #tpu.memory_space<vmem>>, vector<16x16x128xf32>
    tpu.vector_store %arg9[%c1_28, %c1_29, %c0_30], %44 {strides = array<i32>} : memref<18x18x128xf32, #tpu.memory_space<vmem>>, vector<16x16x128xf32>,
    %c0_31 = arith.constant 0 : index
    %c0_32 = arith.constant 0 : index
    %c0_33 = arith.constant 0 : index
    %46 = vector.load %arg9[%c0_31, %c0_32, %c0_33] : memref<18x18x128xf32, #tpu.memory_space<vmem>>, vector<18x18x128xf32>
    %47 = vector.extract_strided_slice %46 {offsets = [0, 0, 0], sizes = [16, 16, 128], strides = [1, 1, 1]} : vector<18x18x128xf32> to vector<16x16x128xf32>
    %48 = vector.shape_cast %47 : vector<16x16x128xf32> to vector<256x128xf32>
    %49 = vector.extract_strided_slice %46 {offsets = [0, 1, 0], sizes = [16, 16, 128], strides = [1, 1, 1]} : vector<18x18x128xf32> to vector<16x16x128xf32>
    %50 = vector.shape_cast %49 : vector<16x16x128xf32> to vector<256x128xf32>
    %51 = vector.extract_strided_slice %46 {offsets = [0, 2, 0], sizes = [16, 16, 128], strides = [1, 1, 1]} : vector<18x18x128xf32> to vector<16x16x128xf32>
    %52 = vector.shape_cast %51 : vector<16x16x128xf32> to vector<256x128xf32>
    %53 = vector.extract_strided_slice %46 {offsets = [1, 0, 0], sizes = [16, 16, 128], strides = [1, 1, 1]} : vector<18x18x128xf32> to vector<16x16x128xf32>
    %54 = vector.shape_cast %53 : vector<16x16x128xf32> to vector<256x128xf32>
    %55 = vector.extract_strided_slice %46 {offsets = [1, 1, 0], sizes = [16, 16, 128], strides = [1, 1, 1]} : vector<18x18x128xf32> to vector<16x16x128xf32>
    %56 = vector.shape_cast %55 : vector<16x16x128xf32> to vector<256x128xf32>
    %57 = vector.extract_strided_slice %46 {offsets = [1, 2, 0], sizes = [16, 16, 128], strides = [1, 1, 1]} : vector<18x18x128xf32> to vector<16x16x128xf32>
    %58 = vector.shape_cast %57 : vector<16x16x128xf32> to vector<256x128xf32>
    %59 = vector.extract_strided_slice %46 {offsets = [2, 0, 0], sizes = [16, 16, 128], strides = [1, 1, 1]} : vector<18x18x128xf32> to vector<16x16x128xf32>
    %60 = vector.shape_cast %59 : vector<16x16x128xf32> to vector<256x128xf32>
    %61 = vector.extract_strided_slice %46 {offsets = [2, 1, 0], sizes = [16, 16, 128], strides = [1, 1, 1]} : vector<18x18x128xf32> to vector<16x16x128xf32>
    %62 = vector.shape_cast %61 : vector<16x16x128xf32> to vector<256x128xf32>
    %63 = vector.extract_strided_slice %46 {offsets = [2, 2, 0], sizes = [16, 16, 128], strides = [1, 1, 1]} : vector<18x18x128xf32> to vector<16x16x128xf32>
    %64 = vector.shape_cast %63 : vector<16x16x128xf32> to vector<256x128xf32>
    %65 = tpu.concatenate %48, %50, %52, %54, %56, %58, %60, %62, %64 in 1 : vector<256x128xf32>, vector<256x128xf32>, vector<256x128xf32>, vector<256x128xf32>, vector<256x128xf32>, vector<256x128xf32>, vector<256x128xf32>, vector<256x128xf32>, vector<256x128xf32> -> vector<256x1152xf32>
    %66 = arith.truncf %65 : vector<256x1152xf32> to vector<256x1152xbf16>
    %c0_34 = arith.constant 0 : index
    %c0_35 = arith.constant 0 : index
    %67 = vector.load %arg5[%c0_34, %c0_35] : memref<1152x128xbf16, #tpu.memory_space<vmem>>, vector<1152x128xbf16>
    %cst_36 = arith.constant dense<0.000000e+00> : vector<256x128xf32>
    %68 = tpu.matmul %66, %67, %cst_36 {dimension_numbers = #tpu.dot_dimension_numbers<[1], [0], [0], [1], [0, 0, 1, 1], [], []>} : vector<256x1152xbf16>, vector<1152x128xbf16>, vector<256x128xf32> -> vector<256x128xf32>
    %c0_37 = arith.constant 0 : index
    %c0_38 = arith.constant 0 : index
    %69 = vector.load %arg6[%c0_37, %c0_38] : memref<1x128xf32, #tpu.memory_space<vmem>>, vector<1x128xf32>
    %70 = vector.shape_cast %69 : vector<1x128xf32> to vector<128xf32>
    %71 = vector.shape_cast %70 : vector<128xf32> to vector<1x128xf32>
    %72 = vector.broadcast %71 : vector<1x128xf32> to vector<256x128xf32>
    %73 = arith.mulf %68, %72 : vector<256x128xf32>
    %c0_39 = arith.constant 0 : index
    %c0_40 = arith.constant 0 : index
    %74 = vector.load %arg7[%c0_39, %c0_40] : memref<1x128xf32, #tpu.memory_space<vmem>>, vector<1x128xf32>
    %75 = vector.shape_cast %74 : vector<1x128xf32> to vector<128xf32>
    %76 = vector.shape_cast %75 : vector<128xf32> to vector<1x128xf32>
    %77 = vector.broadcast %76 : vector<1x128xf32> to vector<256x128xf32>
    %78 = arith.addf %73, %77 : vector<256x128xf32>
    %79 = vector.shape_cast %7 : vector<16x16x128xf32> to vector<256x128xf32>
    %80 = arith.addf %78, %79 : vector<256x128xf32>
    %cst_41 = arith.constant 0.000000e+00 : f32
    %81 = vector.broadcast %cst_41 : f32 to vector<256x128xf32>
    %82 = arith.maximumf %80, %81 : vector<256x128xf32>
    %83 = vector.shape_cast %82 : vector<256x128xf32> to vector<16x16x128xf32>
    %c0_42 = arith.constant 0 : index
    %c0_43 = arith.constant 0 : index
    %c0_44 = arith.constant 0 : index
    %c0_45 = arith.constant 0 : index
    %84 = vector.load %arg8[%c0_42, %c0_43, %c0_44, %c0_45] : memref<1x16x16x128xf32, #tpu.memory_space<vmem>>, vector<1x16x16x128xf32>
    %85 = vector.shape_cast %84 : vector<1x16x16x128xf32> to vector<16x16x128xf32>
    %86 = vector.shape_cast %83 : vector<16x16x128xf32> to vector<1x16x16x128xf32>
    tpu.vector_store %arg8[%c0_42, %c0_43, %c0_44, %c0_45], %86 {strides = array<i32>} : memref<1x16x16x128xf32, #tpu.memory_space<vmem>>, vector<1x16x16x128xf32>,
    return
  }
  func.func @transform_0(%arg0: i32) -> (i32, i32, i32, i32) {
    %c0_i32 = arith.constant 0 : i32
    %c0_i32_0 = arith.constant 0 : i32
    %c0_i32_1 = arith.constant 0 : i32
    %c0_i32_2 = arith.constant 0 : i32
    return %arg0, %c0_i32, %c0_i32_0, %c0_i32_1 : i32, i32, i32, i32
  }
  func.func @transform_1(%arg0: i32) -> (i32, i32) {
    %c0_i32 = arith.constant 0 : i32
    %c0_i32_0 = arith.constant 0 : i32
    %c0_i32_1 = arith.constant 0 : i32
    return %c0_i32, %c0_i32_0 : i32, i32
  }
  func.func @transform_2(%arg0: i32) -> (i32, i32) {
    %c0_i32 = arith.constant 0 : i32
    %c0_i32_0 = arith.constant 0 : i32
    %c0_i32_1 = arith.constant 0 : i32
    return %c0_i32, %c0_i32_0 : i32, i32
  }
  func.func @transform_3(%arg0: i32) -> (i32, i32) {
    %c0_i32 = arith.constant 0 : i32
    %c0_i32_0 = arith.constant 0 : i32
    %c0_i32_1 = arith.constant 0 : i32
    return %c0_i32, %c0_i32_0 : i32, i32
  }
  func.func @transform_4(%arg0: i32) -> (i32, i32) {
    %c0_i32 = arith.constant 0 : i32
    %c0_i32_0 = arith.constant 0 : i32
    %c0_i32_1 = arith.constant 0 : i32
    return %c0_i32, %c0_i32_0 : i32, i32
  }
  func.func @transform_5(%arg0: i32) -> (i32, i32) {
    %c0_i32 = arith.constant 0 : i32
    %c0_i32_0 = arith.constant 0 : i32
    %c0_i32_1 = arith.constant 0 : i32
    return %c0_i32, %c0_i32_0 : i32, i32
  }
  func.func @transform_6(%arg0: i32) -> (i32, i32) {
    %c0_i32 = arith.constant 0 : i32
    %c0_i32_0 = arith.constant 0 : i32
    %c0_i32_1 = arith.constant 0 : i32
    return %c0_i32, %c0_i32_0 : i32, i32
  }
  func.func @transform_7(%arg0: i32) -> (i32, i32, i32, i32) {
    %c0_i32 = arith.constant 0 : i32
    %c0_i32_0 = arith.constant 0 : i32
    %c0_i32_1 = arith.constant 0 : i32
    %c0_i32_2 = arith.constant 0 : i32
    return %arg0, %c0_i32, %c0_i32_0, %c0_i32_1 : i32, i32, i32, i32
  }
}

</mosaic_0001>

<llo_original>
// kernel: tpu_custom_call.1
$region0: #{tpu_custom_call.1}
  #allocation0 [shape = 'u32[]', space=smem, size = 0x4, offset = 0x4, fixed_abs, tag = 'smem constant byte address 0x4 - core index']
  #allocation1 [shape = 'u32[144,128]{1,0:T(1,128)}', space=vmem, size = 0x12000, scoped, tag = 'internal scratch']
  #allocation2 [shape = 'f32[18,18,128]{2,1,0:T(8,128)}', space=vmem, size = 0x36000, scoped, tag = 'scratch operand']
  %s0 = inlined_call_operand.hbm [shape: f32[2,16,16,128], index: 0, kind: input, shape index: {}]
  %s1 = inlined_call_operand.hbm [shape: bf16[1152,128], index: 1, kind: input, shape index: {}]
  %s2 = inlined_call_operand.vmem [shape: f32[1,128], index: 2, kind: input, shape index: {}]
  %s3 = inlined_call_operand.vmem [shape: f32[1,128], index: 3, kind: input, shape index: {}]
  %s4 = inlined_call_operand.hbm [shape: bf16[1152,128], index: 4, kind: input, shape index: {}]
  %s5 = inlined_call_operand.vmem [shape: f32[1,128], index: 5, kind: input, shape index: {}]
  %s6 = inlined_call_operand.vmem [shape: f32[1,128], index: 6, kind: input, shape index: {}]
  %s7 = inlined_call_operand.hbm [shape: f32[2,16,16,128], index: 7, kind: output, shape index: {}]
  %s8 = sld [smem:[#allocation0]]
  $region73: #{tpu_custom_call.1} parent=0
    _
  %s10 = ssub.s32 1, %s8
  %s11 = scalar_select 0, %s10, %s8
  $region1: #{tpu_custom_call.1} parent=0
    #allocation3 [shape = 'u8[262144]{0}', space=vmem, size = 0x40000, scoped, tag = 'input window, operand 0']
    #allocation4 [shape = 's32[2]{0}', space=sflag, size = 0x8, scoped, tag = 'scoped memory for tpu_custom_call.1']
    #allocation5 [shape = 's32[2]{0}', space=sflag, size = 0x8, scoped, tag = 'scoped memory for tpu_custom_call.1']
    #allocation6 [shape = 'u8[294912]{0}', space=vmem, size = 0x48000, scoped, tag = 'input window, operand 1, single buffered']
    #allocation7 [shape = 's32[1]{0}', space=sflag, size = 0x4, scoped, tag = 'scoped memory for tpu_custom_call.1']
    #allocation8 [shape = 'u8[294912]{0}', space=vmem, size = 0x48000, scoped, tag = 'input window, operand 4, single buffered']
    #allocation9 [shape = 'u8[262144]{0}', space=vmem, size = 0x40000, scoped, tag = 'output window, operand 0']
    %12 = vsyncpa [#allocation4], 0
    %s13 = scalar_lea.sflag [#allocation4], 1
    %14 = vsyncpa %s13, 0
    %15 = vsyncpa [#allocation7], 0
    %16 = vsyncpa [#allocation5], 0
    %s17 = scalar_lea.sflag [#allocation5], 1
    %18 = vsyncpa %s17, 0
    loop: start=0, step=1, limit=4
    $region2: #{tpu_custom_call.1} parent=1 // loop_pre_header
      _
    $region3: #{tpu_custom_call.1} parent=1 // loop_header
      %s20 = sphi 0, %s24
      %p21 = scmp.ge.s32.totalorder %s20, 4
      %s30 = sphi 0, %s32
      %s33 = sphi 0, %s30
      %s34 = sphi 0, %s33
      %s50 = sphi 0, %s34
      %s54 = sphi 0, %s54
      %s56 = sphi 0, %s54
      %s57 = sphi 0, %s56
      %s71 = sphi 0, %s57
      %s75 = sphi 0, %s75
      %s77 = sphi 0, %s75
      %s78 = sphi 0, %s77
      %s92 = sphi 0, %s78
      %s96 = sphi 0, %s96
      %s98 = sphi 0, %s96
      %s99 = sphi 0, %s98
      %s113 = sphi 0, %s99
      %s117 = sphi 0, %s117
      %s119 = sphi 0, %s117
      %s120 = sphi 0, %s119
      %s134 = sphi 0, %s120
      %s138 = sphi 0, %s138
      %s140 = sphi 0, %s138
      %s141 = sphi 0, %s140
      %s155 = sphi 0, %s141
      %s159 = sphi 0, %s159
      %s161 = sphi 0, %s159
      %s162 = sphi 0, %s161
      %s176 = sphi 0, %s162
      %s182 = sphi 0, %s184
      %s185 = sphi 0, %s182
      %s186 = sphi 0, %s185
      %s202 = sphi 0, %s186
    $region4: #{tpu_custom_call.1} parent=1 // loop_header_branch
      %23 = sbr.rel (%p21) target = $region8
    $region5: #{tpu_custom_call.1} parent=1 // loop_body
      %s25 = ssub.s32 %s20, 1
      %s26 = ssub.s32 %s20, 2
      %s27 = sadd.s32 %s20, 1
      %s28 = ssub.s32 %s20, %s27
      %p29 = scmp.eq.s32.totalorder %s28, 0
      %s31 = sadd.s32 %s30, 1
      %s32 = scalar_select %p29, %s30, %s31
      %p35 = pneg %p29
      %p36 = scmp.eq.s32.totalorder %s20, 1
      %p37 = por %p35, %p36
      %p38 = scmp.ne.s32.totalorder %s30, %s33
      %p39 = scmp.eq.s32.totalorder %s20, 0
      %p40 = por %p38, %p39
      %p41 = scmp.ne.s32.totalorder %s30, %s33
      %p42 = scmp.eq.s32.totalorder %s25, 1
      %p43 = por %p41, %p42
      %p44 = scmp.ne.s32.totalorder %s33, %s34
      %p45 = scmp.eq.s32.totalorder %s25, 0
      %p46 = por %p44, %p45
      %p47 = scmp.ne.s32.totalorder %s33, %s34
      %p48 = scmp.eq.s32.totalorder %s26, 1
      %p49 = por %p47, %p48
      %p51 = scmp.ne.s32.totalorder %s34, %s50
      %p52 = scmp.eq.s32.totalorder %s26, 0
      %p53 = por %p51, %p52
      %s55 = sadd.s32 %s54, 1
      %p58 = scmp.eq.s32.totalorder %s20, 1
      %p59 = scmp.ne.s32.totalorder %s54, %s56
      %p60 = scmp.eq.s32.totalorder %s20, 0
      %p61 = por %p59, %p60
      %p62 = scmp.ne.s32.totalorder %s54, %s56
      %p63 = scmp.eq.s32.totalorder %s25, 1
      %p64 = por %p62, %p63
      %p65 = scmp.ne.s32.totalorder %s56, %s57
      %p66 = scmp.eq.s32.totalorder %s25, 0
      %p67 = por %p65, %p66
      %p68 = scmp.ne.s32.totalorder %s56, %s57
      %p69 = scmp.eq.s32.totalorder %s26, 1
      %p70 = por %p68, %p69
      %p72 = scmp.ne.s32.totalorder %s57, %s71
      %p73 = scmp.eq.s32.totalorder %s26, 0
      %p74 = por %p72, %p73
      %s76 = sadd.s32 %s75, 1
      %p79 = scmp.eq.s32.totalorder %s20, 1
      %p80 = scmp.ne.s32.totalorder %s75, %s77
      %p81 = scmp.eq.s32.totalorder %s20, 0
      %p82 = por %p80, %p81
      %p83 = scmp.ne.s32.totalorder %s75, %s77
      %p84 = scmp.eq.s32.totalorder %s25, 1
      %p85 = por %p83, %p84
      %p86 = scmp.ne.s32.totalorder %s77, %s78
      %p87 = scmp.eq.s32.totalorder %s25, 0
      %p88 = por %p86, %p87
      %p89 = scmp.ne.s32.totalorder %s77, %s78
      %p90 = scmp.eq.s32.totalorder %s26, 1
      %p91 = por %p89, %p90
      %p93 = scmp.ne.s32.totalorder %s78, %s92
      %p94 = scmp.eq.s32.totalorder %s26, 0
      %p95 = por %p93, %p94
      %s97 = sadd.s32 %s96, 1
      %p100 = scmp.eq.s32.totalorder %s20, 1
      %p101 = scmp.ne.s32.totalorder %s96, %s98
      %p102 = scmp.eq.s32.totalorder %s20, 0
      %p103 = por %p101, %p102
      %p104 = scmp.ne.s32.totalorder %s96, %s98
      %p105 = scmp.eq.s32.totalorder %s25, 1
      %p106 = por %p104, %p105
      %p107 = scmp.ne.s32.totalorder %s98, %s99
      %p108 = scmp.eq.s32.totalorder %s25, 0
      %p109 = por %p107, %p108
      %p110 = scmp.ne.s32.totalorder %s98, %s99
      %p111 = scmp.eq.s32.totalorder %s26, 1
      %p112 = por %p110, %p111
      %p114 = scmp.ne.s32.totalorder %s99, %s113
      %p115 = scmp.eq.s32.totalorder %s26, 0
      %p116 = por %p114, %p115
      %s118 = sadd.s32 %s117, 1
      %p121 = scmp.eq.s32.totalorder %s20, 1
      %p122 = scmp.ne.s32.totalorder %s117, %s119
      %p123 = scmp.eq.s32.totalorder %s20, 0
      %p124 = por %p122, %p123
      %p125 = scmp.ne.s32.totalorder %s117, %s119
      %p126 = scmp.eq.s32.totalorder %s25, 1
      %p127 = por %p125, %p126
      %p128 = scmp.ne.s32.totalorder %s119, %s120
      %p129 = scmp.eq.s32.totalorder %s25, 0
      %p130 = por %p128, %p129
      %p131 = scmp.ne.s32.totalorder %s119, %s120
      %p132 = scmp.eq.s32.totalorder %s26, 1
      %p133 = por %p131, %p132
      %p135 = scmp.ne.s32.totalorder %s120, %s134
      %p136 = scmp.eq.s32.totalorder %s26, 0
      %p137 = por %p135, %p136
      %s139 = sadd.s32 %s138, 1
      %p142 = scmp.eq.s32.totalorder %s20, 1
      %p143 = scmp.ne.s32.totalorder %s138, %s140
      %p144 = scmp.eq.s32.totalorder %s20, 0
      %p145 = por %p143, %p144
      %p146 = scmp.ne.s32.totalorder %s138, %s140
      %p147 = scmp.eq.s32.totalorder %s25, 1
      %p148 = por %p146, %p147
      %p149 = scmp.ne.s32.totalorder %s140, %s141
      %p150 = scmp.eq.s32.totalorder %s25, 0
      %p151 = por %p149, %p150
      %p152 = scmp.ne.s32.totalorder %s140, %s141
      %p153 = scmp.eq.s32.totalorder %s26, 1
      %p154 = por %p152, %p153
      %p156 = scmp.ne.s32.totalorder %s141, %s155
      %p157 = scmp.eq.s32.totalorder %s26, 0
      %p158 = por %p156, %p157
      %s160 = sadd.s32 %s159, 1
      %p163 = scmp.eq.s32.totalorder %s20, 1
      %p164 = scmp.ne.s32.totalorder %s159, %s161
      %p165 = scmp.eq.s32.totalorder %s20, 0
      %p166 = por %p164, %p165
      %p167 = scmp.ne.s32.totalorder %s159, %s161
      %p168 = scmp.eq.s32.totalorder %s25, 1
      %p169 = por %p167, %p168
      %p170 = scmp.ne.s32.totalorder %s161, %s162
      %p171 = scmp.eq.s32.totalorder %s25, 0
      %p172 = por %p170, %p171
      %p173 = scmp.ne.s32.totalorder %s161, %s162
      %p174 = scmp.eq.s32.totalorder %s26, 1
      %p175 = por %p173, %p174
      %p177 = scmp.ne.s32.totalorder %s162, %s176
      %p178 = scmp.eq.s32.totalorder %s26, 0
      %p179 = por %p177, %p178
      %s180 = ssub.s32 %s20, %s27
      %p181 = scmp.eq.s32.totalorder %s180, 0
      %s183 = sadd.s32 %s182, 1
      %s184 = scalar_select %p181, %s182, %s183
      %p187 = pneg %p181
      %p188 = scmp.eq.s32.totalorder %s20, 1
      %p189 = por %p187, %p188
      %p190 = scmp.ne.s32.totalorder %s182, %s185
      %p191 = scmp.eq.s32.totalorder %s20, 0
      %p192 = por %p190, %p191
      %p193 = scmp.ne.s32.totalorder %s182, %s185
      %p194 = scmp.eq.s32.totalorder %s25, 1
      %p195 = por %p193, %p194
      %p196 = scmp.ne.s32.totalorder %s185, %s186
      %p197 = scmp.eq.s32.totalorder %s25, 0
      %p198 = por %p196, %p197
      %p199 = scmp.ne.s32.totalorder %s185, %s186
      %p200 = scmp.eq.s32.totalorder %s26, 1
      %p201 = por %p199, %p200
      %p203 = scmp.ne.s32.totalorder %s186, %s202
      %p204 = scmp.eq.s32.totalorder %s26, 0
      %p205 = por %p203, %p204
      %p206 = scmp.le.s32.totalorder 1, %s20
      %p207 = scmp.lt.s32.totalorder %s20, 3
      %p208 = pnand %p206, %p207
      %p209 = pneg %p208
      // Predicated region
      $region9: #{tpu_custom_call.1} parent=5 // pred_check
        _
      $region10: #{tpu_custom_call.1} parent=5 // pred_check_branch
        %211 = sbr.rel (%p208) target = $region12
      $region11: #{tpu_custom_call.1} parent=5 // pred_region
        %s212 = ssub.s32 %s20, 1
        // Predicated region
        $region13: #{tpu_custom_call.1} parent=11 // pred_check
          %p213 = pneg %p67
        $region14: #{tpu_custom_call.1} parent=11 // pred_check_branch
          %215 = sbr.rel (%p213) target = $region16
        $region15: #{tpu_custom_call.1} parent=11 // pred_region
          %s217 = ssub.s32 9216, 9216
          %218 = vsyncadd [#allocation7], %s217
          %s219 = sshll.u32 [#allocation6], 4
          %s220 = int_to_ptr.vmem [resolvable:$true] %s219
          %225 = dma.hbm_to_vmem [thread:$0]  %s1, 9216, %s220, [#allocation7], 64, 64, 4
        $region16: #{tpu_custom_call.1} parent=11 // pred_fallthru
          _
        // Predicated region
        $region17: #{tpu_custom_call.1} parent=11 // pred_check
          %p226 = pneg %p88
        $region18: #{tpu_custom_call.1} parent=11 // pred_check_branch
          %228 = sbr.rel (%p226) target = $region20
        $region19: #{tpu_custom_call.1} parent=11 // pred_region
          _
        $region20: #{tpu_custom_call.1} parent=11 // pred_fallthru
          _
        // Predicated region
        $region21: #{tpu_custom_call.1} parent=11 // pred_check
          %p229 = pneg %p109
        $region22: #{tpu_custom_call.1} parent=11 // pred_check_branch
          %231 = sbr.rel (%p229) target = $region24
        $region23: #{tpu_custom_call.1} parent=11 // pred_region
          _
        $region24: #{tpu_custom_call.1} parent=11 // pred_fallthru
          _
        // Predicated region
        $region25: #{tpu_custom_call.1} parent=11 // pred_check
          %p232 = pneg %p130
        $region26: #{tpu_custom_call.1} parent=11 // pred_check_branch
          %234 = sbr.rel (%p232) target = $region28
        $region27: #{tpu_custom_call.1} parent=11 // pred_region
          %s236 = ssub.s32 9216, 9216
          %237 = vsyncadd [#allocation7], %s236
          %s238 = sshll.u32 [#allocation8], 4
          %s239 = int_to_ptr.vmem [resolvable:$true] %s238
          %244 = dma.hbm_to_vmem [thread:$0]  %s4, 9216, %s239, [#allocation7], 64, 64, 4
        $region28: #{tpu_custom_call.1} parent=11 // pred_fallthru
          _
        // Predicated region
        $region29: #{tpu_custom_call.1} parent=11 // pred_check
          %p245 = pneg %p151
        $region30: #{tpu_custom_call.1} parent=11 // pred_check_branch
          %247 = sbr.rel (%p245) target = $region32
        $region31: #{tpu_custom_call.1} parent=11 // pred_region
          _
        $region32: #{tpu_custom_call.1} parent=11 // pred_fallthru
          _
        // Predicated region
        $region33: #{tpu_custom_call.1} parent=11 // pred_check
          %p248 = pneg %p172
        $region34: #{tpu_custom_call.1} parent=11 // pred_check_branch
          %250 = sbr.rel (%p248) target = $region36
        $region35: #{tpu_custom_call.1} parent=11 // pred_region
          _
        $region36: #{tpu_custom_call.1} parent=11 // pred_fallthru
          _
      $region12: #{tpu_custom_call.1} parent=5 // pred_fallthru
        _
      %p251 = scmp.lt.s32.totalorder %s20, 2
      // Predicated region
      $region37: #{tpu_custom_call.1} parent=5 // pred_check
        %p252 = pneg %p251
      $region38: #{tpu_custom_call.1} parent=5 // pred_check_branch
        %254 = sbr.rel (%p252) target = $region40
      $region39: #{tpu_custom_call.1} parent=5 // pred_region
        // Predicated region
        $region41: #{tpu_custom_call.1} parent=39 // pred_check
          %p255 = pneg %p40
        $region42: #{tpu_custom_call.1} parent=39 // pred_check_branch
          %257 = sbr.rel (%p255) target = $region44
        $region43: #{tpu_custom_call.1} parent=39 // pred_region
          %s258 = sand.u32 %s30, 1
          %s259 = scalar_lea.sflag [#allocation4], %s258
          %s260 = sand.u32 %s30, 1
          %s261 = smul.addr %s260, 256
          %s262 = scalar_lea.vmem [#allocation3], %s261
          %s264 = ssub.s32 4096, 4096
          %265 = vsyncadd %s259, %s264
          %s266 = smul.addr %s20, 32
          %s267 = smul.addr %s266, 128
          %s268 = scalar_lea.hbm %s0, %s267
          %s269 = sshll.u32 %s262, 4
          %s270 = int_to_ptr.vmem [resolvable:$true] %s269
          %275 = dma.hbm_to_vmem [thread:$0]  %s268, 4096, %s270, %s259, 128, 128, 8
        $region44: #{tpu_custom_call.1} parent=39 // pred_fallthru
          _
      $region40: #{tpu_custom_call.1} parent=5 // pred_fallthru
        _
      %p276 = scmp.le.s32.totalorder 1, %s20
      %p277 = scmp.lt.s32.totalorder %s20, 3
      %p278 = pnand %p276, %p277
      %p279 = pneg %p278
      // Predicated region
      $region45: #{tpu_custom_call.1} parent=5 // pred_check
        _
      $region46: #{tpu_custom_call.1} parent=5 // pred_check_branch
        %281 = sbr.rel (%p278) target = $region48
      $region47: #{tpu_custom_call.1} parent=5 // pred_region
        %s282 = ssub.s32 %s20, 1
        %s283 = sand.u32 %s33, 1
        %s284 = scalar_lea.sflag [#allocation4], %s283
        %s285 = sand.u32 %s33, 1
        %s286 = smul.addr %s285, 256
        %s287 = scalar_lea.vmem [#allocation3], %s286
        // Predicated region
        $region49: #{tpu_custom_call.1} parent=47 // pred_check
          %p288 = pneg %p46
        $region50: #{tpu_custom_call.1} parent=47 // pred_check_branch
          %290 = sbr.rel (%p288) target = $region52
        $region51: #{tpu_custom_call.1} parent=47 // pred_region
          %291 = dma.done %s284, 4096
        $region52: #{tpu_custom_call.1} parent=47 // pred_fallthru
          _
        // Predicated region
        $region53: #{tpu_custom_call.1} parent=47 // pred_check
          %p292 = pneg %p67
        $region54: #{tpu_custom_call.1} parent=47 // pred_check_branch
          %294 = sbr.rel (%p292) target = $region56
        $region55: #{tpu_custom_call.1} parent=47 // pred_region
          %295 = dma.done [#allocation7], 9216
        $region56: #{tpu_custom_call.1} parent=47 // pred_fallthru
          _
        // Predicated region
        $region57: #{tpu_custom_call.1} parent=47 // pred_check
          %p296 = pneg %p130
        $region58: #{tpu_custom_call.1} parent=47 // pred_check_branch
          %298 = sbr.rel (%p296) target = $region60
        $region59: #{tpu_custom_call.1} parent=47 // pred_region
          %299 = dma.done [#allocation7], 9216
        $region60: #{tpu_custom_call.1} parent=47 // pred_fallthru
          _
        %s300 = sand.u32 %s33, 1
        %s301 = scalar_lea.sflag [#allocation4], %s300
        %s302 = sand.u32 %s33, 1
        %s303 = smul.addr %s302, 256
        %s304 = scalar_lea.vmem [#allocation3], %s303
        %p305 = pneg %p46
        %p306 = pneg %p43
        %p307 = pneg %p67
        %p308 = pneg %p64
        %p309 = pneg %p88
        %p310 = pneg %p85
        %p311 = pneg %p109
        %p312 = pneg %p106
        %p313 = pneg %p130
        %p314 = pneg %p127
        %p315 = pneg %p151
        %p316 = pneg %p148
        %p317 = pneg %p172
        %p318 = pneg %p169
        %p319 = pneg %p198
        %p320 = pneg %p195
        %s321 = sand.u32 %s185, 1
        %s322 = scalar_lea.sflag [#allocation5], %s321
        %s323 = sand.u32 %s185, 1
        %s324 = smul.addr %s323, 256
        %s325 = scalar_lea.vmem [#allocation9], %s324
        %327 = vst [vmem:[#allocation2] sm:$0xff] 0.0
        %328 = vst [vmem:[#allocation2 + $0x8] sm:$0xff] 0.0
        %329 = vst [vmem:[#allocation2 + $0x10] sm:$0x3] 0.0
        %s330 = scalar_lea.vmem [#allocation2], 408
        %331 = vst [vmem:[%s330] sm:$0xff] 0.0
        %332 = vst [vmem:[%s330 + $0x8] sm:$0xff] 0.0
        %333 = vst [vmem:[%s330 + $0x10] sm:$0x3] 0.0
        %334 = vst [vmem:[#allocation2] sm:$0x1] 0.0
        %335 = vst [vmem:[#allocation2 + $0x18] sm:$0x1] 0.0
        %336 = vst [vmem:[#allocation2 + $0x30] sm:$0x1] 0.0
        %337 = vst [vmem:[#allocation2 + $0x48] sm:$0x1] 0.0
        %338 = vst [vmem:[#allocation2 + $0x60] sm:$0x1] 0.0
        %339 = vst [vmem:[#allocation2 + $0x78] sm:$0x1] 0.0
        %340 = vst [vmem:[#allocation2 + $0x90] sm:$0x1] 0.0
        %341 = vst [vmem:[#allocation2 + $0xa8] sm:$0x1] 0.0
        %342 = vst [vmem:[#allocation2 + $0xc0] sm:$0x1] 0.0
        %343 = vst [vmem:[#allocation2 + $0xd8] sm:$0x1] 0.0
        %344 = vst [vmem:[#allocation2 + $0xf0] sm:$0x1] 0.0
        %345 = vst [vmem:[#allocation2 + $0x108] sm:$0x1] 0.0
        %346 = vst [vmem:[#allocation2 + $0x120] sm:$0x1] 0.0
        %347 = vst [vmem:[#allocation2 + $0x138] sm:$0x1] 0.0
        %348 = vst [vmem:[#allocation2 + $0x150] sm:$0x1] 0.0
        %349 = vst [vmem:[#allocation2 + $0x168] sm:$0x1] 0.0
        %350 = vst [vmem:[#allocation2 + $0x180] sm:$0x1] 0.0
        %351 = vst [vmem:[#allocation2 + $0x198] sm:$0x1] 0.0
        %352 = vst [vmem:[#allocation2 + $0x11] sm:$0x1] 0.0
        %353 = vst [vmem:[#allocation2 + $0x29] sm:$0x1] 0.0
        %354 = vst [vmem:[#allocation2 + $0x41] sm:$0x1] 0.0
        %355 = vst [vmem:[#allocation2 + $0x59] sm:$0x1] 0.0
        %356 = vst [vmem:[#allocation2 + $0x71] sm:$0x1] 0.0
        %357 = vst [vmem:[#allocation2 + $0x89] sm:$0x1] 0.0
        %358 = vst [vmem:[#allocation2 + $0xa1] sm:$0x1] 0.0
        %359 = vst [vmem:[#allocation2 + $0xb9] sm:$0x1] 0.0
        %360 = vst [vmem:[#allocation2 + $0xd1] sm:$0x1] 0.0
        %361 = vst [vmem:[#allocation2 + $0xe9] sm:$0x1] 0.0
        %362 = vst [vmem:[#allocation2 + $0x101] sm:$0x1] 0.0
        %363 = vst [vmem:[#allocation2 + $0x119] sm:$0x1] 0.0
        %364 = vst [vmem:[#allocation2 + $0x131] sm:$0x1] 0.0
        %365 = vst [vmem:[#allocation2 + $0x149] sm:$0x1] 0.0
        %366 = vst [vmem:[#allocation2 + $0x161] sm:$0x1] 0.0
        %367 = vst [vmem:[#allocation2 + $0x179] sm:$0x1] 0.0
        %368 = vst [vmem:[#allocation2 + $0x191] sm:$0x1] 0.0
        %369 = vst [vmem:[#allocation2 + $0x1a9] sm:$0x1] 0.0
        %v370 = vld [vmem:[%s287] sm:$0xff]
        %v371 = vld [vmem:[%s287 + $0x8] sm:$0xff]
        %v372 = vld [vmem:[%s287 + $0x10] sm:$0xff]
        %v373 = vld [vmem:[%s287 + $0x18] sm:$0xff]
        %v374 = vld [vmem:[%s287 + $0x20] sm:$0xff]
        %v375 = vld [vmem:[%s287 + $0x28] sm:$0xff]
        %v376 = vld [vmem:[%s287 + $0x30] sm:$0xff]
        %v377 = vld [vmem:[%s287 + $0x38] sm:$0xff]
        %v378 = vld [vmem:[%s287 + $0x40] sm:$0xff]
        %v379 = vld [vmem:[%s287 + $0x48] sm:$0xff]
        %v380 = vld [vmem:[%s287 + $0x50] sm:$0xff]
        %v381 = vld [vmem:[%s287 + $0x58] sm:$0xff]
        %v382 = vld [vmem:[%s287 + $0x60] sm:$0xff]
        %v383 = vld [vmem:[%s287 + $0x68] sm:$0xff]
        %v384 = vld [vmem:[%s287 + $0x70] sm:$0xff]
        %v385 = vld [vmem:[%s287 + $0x78] sm:$0xff]
        %v386 = vld [vmem:[%s287 + $0x80] sm:$0xff]
        %v387 = vld [vmem:[%s287 + $0x88] sm:$0xff]
        %v388 = vld [vmem:[%s287 + $0x90] sm:$0xff]
        %v389 = vld [vmem:[%s287 + $0x98] sm:$0xff]
        %v390 = vld [vmem:[%s287 + $0xa0] sm:$0xff]
        %v391 = vld [vmem:[%s287 + $0xa8] sm:$0xff]
        %v392 = vld [vmem:[%s287 + $0xb0] sm:$0xff]
        %v393 = vld [vmem:[%s287 + $0xb8] sm:$0xff]
        %v394 = vld [vmem:[%s287 + $0xc0] sm:$0xff]
        %v395 = vld [vmem:[%s287 + $0xc8] sm:$0xff]
        %v396 = vld [vmem:[%s287 + $0xd0] sm:$0xff]
        %v397 = vld [vmem:[%s287 + $0xd8] sm:$0xff]
        %v398 = vld [vmem:[%s287 + $0xe0] sm:$0xff]
        %v399 = vld [vmem:[%s287 + $0xe8] sm:$0xff]
        %v400 = vld [vmem:[%s287 + $0xf0] sm:$0xff]
        %v401 = vld [vmem:[%s287 + $0xf8] sm:$0xff]
        %s402 = scalar_lea.vmem [#allocation2], 24
        %403 = vst [vmem:[%s402 + $0x1] sm:$0xff] %v370
        %404 = vst [vmem:[%s402 + $0x9] sm:$0xff] %v371
        %405 = vst [vmem:[%s402 + $0x19] sm:$0xff] %v372
        %406 = vst [vmem:[%s402 + $0x21] sm:$0xff] %v373
        %407 = vst [vmem:[%s402 + $0x31] sm:$0xff] %v374
        %408 = vst [vmem:[%s402 + $0x39] sm:$0xff] %v375
        %409 = vst [vmem:[%s402 + $0x49] sm:$0xff] %v376
        %410 = vst [vmem:[%s402 + $0x51] sm:$0xff] %v377
        %411 = vst [vmem:[%s402 + $0x61] sm:$0xff] %v378
        %412 = vst [vmem:[%s402 + $0x69] sm:$0xff] %v379
        %413 = vst [vmem:[%s402 + $0x79] sm:$0xff] %v380
        %414 = vst [vmem:[%s402 + $0x81] sm:$0xff] %v381
        %415 = vst [vmem:[%s402 + $0x91] sm:$0xff] %v382
        %416 = vst [vmem:[%s402 + $0x99] sm:$0xff] %v383
        %417 = vst [vmem:[%s402 + $0xa9] sm:$0xff] %v384
        %418 = vst [vmem:[%s402 + $0xb1] sm:$0xff] %v385
        %419 = vst [vmem:[%s402 + $0xc1] sm:$0xff] %v386
        %420 = vst [vmem:[%s402 + $0xc9] sm:$0xff] %v387
        %421 = vst [vmem:[%s402 + $0xd9] sm:$0xff] %v388
        %422 = vst [vmem:[%s402 + $0xe1] sm:$0xff] %v389
        %423 = vst [vmem:[%s402 + $0xf1] sm:$0xff] %v390
        %424 = vst [vmem:[%s402 + $0xf9] sm:$0xff] %v391
        %425 = vst [vmem:[%s402 + $0x109] sm:$0xff] %v392
        %426 = vst [vmem:[%s402 + $0x111] sm:$0xff] %v393
        %427 = vst [vmem:[%s402 + $0x121] sm:$0xff] %v394
        %428 = vst [vmem:[%s402 + $0x129] sm:$0xff] %v395
        %429 = vst [vmem:[%s402 + $0x139] sm:$0xff] %v396
        %430 = vst [vmem:[%s402 + $0x141] sm:$0xff] %v397
        %431 = vst [vmem:[%s402 + $0x151] sm:$0xff] %v398
        %432 = vst [vmem:[%s402 + $0x159] sm:$0xff] %v399
        %433 = vst [vmem:[%s402 + $0x169] sm:$0xff] %v400
        %434 = vst [vmem:[%s402 + $0x171] sm:$0xff] %v401
        %v435 = vld [vmem:[#allocation2] sm:$0xff]
        %v436 = vld [vmem:[#allocation2 + $0x8] sm:$0xff]
        %v437 = vld [vmem:[#allocation2 + $0x10] sm:$0x3]
        %v438 = vld [vmem:[#allocation2 + $0x18] sm:$0xff]
        %v439 = vld [vmem:[#allocation2 + $0x20] sm:$0xff]
        %v440 = vld [vmem:[#allocation2 + $0x28] sm:$0x3]
        %v441 = vld [vmem:[#allocation2 + $0x30] sm:$0xff]
        %v442 = vld [vmem:[#allocation2 + $0x38] sm:$0xff]
        %v443 = vld [vmem:[#allocation2 + $0x40] sm:$0x3]
        %v444 = vld [vmem:[#allocation2 + $0x48] sm:$0xff]
        %v445 = vld [vmem:[#allocation2 + $0x50] sm:$0xff]
        %v446 = vld [vmem:[#allocation2 + $0x58] sm:$0x3]
        %v447 = vld [vmem:[#allocation2 + $0x60] sm:$0xff]
        %v448 = vld [vmem:[#allocation2 + $0x68] sm:$0xff]
        %v449 = vld [vmem:[#allocation2 + $0x70] sm:$0x3]
        %v450 = vld [vmem:[#allocation2 + $0x78] sm:$0xff]
        %v451 = vld [vmem:[#allocation2 + $0x80] sm:$0xff]
        %v452 = vld [vmem:[#allocation2 + $0x88] sm:$0x3]
        %v453 = vld [vmem:[#allocation2 + $0x90] sm:$0xff]
        %v454 = vld [vmem:[#allocation2 + $0x98] sm:$0xff]
        %v455 = vld [vmem:[#allocation2 + $0xa0] sm:$0x3]
        %v456 = vld [vmem:[#allocation2 + $0xa8] sm:$0xff]
        %v457 = vld [vmem:[#allocation2 + $0xb0] sm:$0xff]
        %v458 = vld [vmem:[#allocation2 + $0xb8] sm:$0x3]
        %v459 = vld [vmem:[#allocation2 + $0xc0] sm:$0xff]
        %v460 = vld [vmem:[#allocation2 + $0xc8] sm:$0xff]
        %v461 = vld [vmem:[#allocation2 + $0xd0] sm:$0x3]
        %v462 = vld [vmem:[#allocation2 + $0xd8] sm:$0xff]
        %v463 = vld [vmem:[#allocation2 + $0xe0] sm:$0xff]
        %v464 = vld [vmem:[#allocation2 + $0xe8] sm:$0x3]
        %v465 = vld [vmem:[#allocation2 + $0xf0] sm:$0xff]
        %v466 = vld [vmem:[#allocation2 + $0xf8] sm:$0xff]
        %v467 = vld [vmem:[#allocation2 + $0x100] sm:$0x3]
        %v468 = vld [vmem:[#allocation2 + $0x108] sm:$0xff]
        %v469 = vld [vmem:[#allocation2 + $0x110] sm:$0xff]
        %v470 = vld [vmem:[#allocation2 + $0x118] sm:$0x3]
        %v471 = vld [vmem:[#allocation2 + $0x120] sm:$0xff]
        %v472 = vld [vmem:[#allocation2 + $0x128] sm:$0xff]
        %v473 = vld [vmem:[#allocation2 + $0x130] sm:$0x3]
        %v474 = vld [vmem:[#allocation2 + $0x138] sm:$0xff]
        %v475 = vld [vmem:[#allocation2 + $0x140] sm:$0xff]
        %v476 = vld [vmem:[#allocation2 + $0x148] sm:$0x3]
        %v477 = vld [vmem:[#allocation2 + $0x150] sm:$0xff]
        %v478 = vld [vmem:[#allocation2 + $0x158] sm:$0xff]
        %v479 = vld [vmem:[#allocation2 + $0x160] sm:$0x3]
        %v480 = vld [vmem:[#allocation2 + $0x168] sm:$0xff]
        %v481 = vld [vmem:[#allocation2 + $0x170] sm:$0xff]
        %v482 = vld [vmem:[#allocation2 + $0x178] sm:$0x3]
        %v483 = vld [vmem:[#allocation2 + $0x180] sm:$0xff]
        %v484 = vld [vmem:[#allocation2 + $0x188] sm:$0xff]
        %v485 = vld [vmem:[#allocation2 + $0x190] sm:$0x3]
        %v486 = vld [vmem:[#allocation2 + $0x198] sm:$0xff]
        %v487 = vld [vmem:[#allocation2 + $0x1a0] sm:$0xff]
        %v488 = vld [vmem:[#allocation2 + $0x1a8] sm:$0x3]
        %vm537 = vcmask 1046528
        %v538 = vrot.slane %v435, 1
        %v539 = vrot.slane %v436, 1
        %v540 = vsel %vm537, %v538, %v539
        %v541 = vrot.slane %v437, 1
        %v542 = vsel %vm537, %v539, %v541
        %v543 = vrot.slane %v438, 1
        %v544 = vrot.slane %v439, 1
        %v545 = vsel %vm537, %v543, %v544
        %v546 = vrot.slane %v440, 1
        %v547 = vsel %vm537, %v544, %v546
        %v548 = vrot.slane %v441, 1
        %v549 = vrot.slane %v442, 1
        %v550 = vsel %vm537, %v548, %v549
        %v551 = vrot.slane %v443, 1
        %v552 = vsel %vm537, %v549, %v551
        %v553 = vrot.slane %v444, 1
        %v554 = vrot.slane %v445, 1
        %v555 = vsel %vm537, %v553, %v554
        %v556 = vrot.slane %v446, 1
        %v557 = vsel %vm537, %v554, %v556
        %v558 = vrot.slane %v447, 1
        %v559 = vrot.slane %v448, 1
        %v560 = vsel %vm537, %v558, %v559
        %v561 = vrot.slane %v449, 1
        %v562 = vsel %vm537, %v559, %v561
        %v563 = vrot.slane %v450, 1
        %v564 = vrot.slane %v451, 1
        %v565 = vsel %vm537, %v563, %v564
        %v566 = vrot.slane %v452, 1
        %v567 = vsel %vm537, %v564, %v566
        %v568 = vrot.slane %v453, 1
        %v569 = vrot.slane %v454, 1
        %v570 = vsel %vm537, %v568, %v569
        %v571 = vrot.slane %v455, 1
        %v572 = vsel %vm537, %v569, %v571
        %v573 = vrot.slane %v456, 1
        %v574 = vrot.slane %v457, 1
        %v575 = vsel %vm537, %v573, %v574
        %v576 = vrot.slane %v458, 1
        %v577 = vsel %vm537, %v574, %v576
        %v578 = vrot.slane %v459, 1
        %v579 = vrot.slane %v460, 1
        %v580 = vsel %vm537, %v578, %v579
        %v581 = vrot.slane %v461, 1
        %v582 = vsel %vm537, %v579, %v581
        %v583 = vrot.slane %v462, 1
        %v584 = vrot.slane %v463, 1
        %v585 = vsel %vm537, %v583, %v584
        %v586 = vrot.slane %v464, 1
        %v587 = vsel %vm537, %v584, %v586
        %v588 = vrot.slane %v465, 1
        %v589 = vrot.slane %v466, 1
        %v590 = vsel %vm537, %v588, %v589
        %v591 = vrot.slane %v467, 1
        %v592 = vsel %vm537, %v589, %v591
        %v593 = vrot.slane %v468, 1
        %v594 = vrot.slane %v469, 1
        %v595 = vsel %vm537, %v593, %v594
        %v596 = vrot.slane %v470, 1
        %v597 = vsel %vm537, %v594, %v596
        %v598 = vrot.slane %v471, 1
        %v599 = vrot.slane %v472, 1
        %v600 = vsel %vm537, %v598, %v599
        %v601 = vrot.slane %v473, 1
        %v602 = vsel %vm537, %v599, %v601
        %v603 = vrot.slane %v474, 1
        %v604 = vrot.slane %v475, 1
        %v605 = vsel %vm537, %v603, %v604
        %v606 = vrot.slane %v476, 1
        %v607 = vsel %vm537, %v604, %v606
        %v608 = vrot.slane %v477, 1
        %v609 = vrot.slane %v478, 1
        %v610 = vsel %vm537, %v608, %v609
        %v611 = vrot.slane %v479, 1
        %v612 = vsel %vm537, %v609, %v611
        %v613 = vrot.slane %v480, 1
        %v614 = vrot.slane %v481, 1
        %v615 = vsel %vm537, %v613, %v614
        %v616 = vrot.slane %v482, 1
        %v617 = vsel %vm537, %v614, %v616
        %vm650 = vcmask 1045504
        %v651 = vrot.slane %v435, 2
        %v652 = vrot.slane %v436, 2
        %v653 = vsel %vm650, %v651, %v652
        %v654 = vrot.slane %v437, 2
        %v655 = vsel %vm650, %v652, %v654
        %v656 = vrot.slane %v438, 2
        %v657 = vrot.slane %v439, 2
        %v658 = vsel %vm650, %v656, %v657
        %v659 = vrot.slane %v440, 2
        %v660 = vsel %vm650, %v657, %v659
        %v661 = vrot.slane %v441, 2
        %v662 = vrot.slane %v442, 2
        %v663 = vsel %vm650, %v661, %v662
        %v664 = vrot.slane %v443, 2
        %v665 = vsel %vm650, %v662, %v664
        %v666 = vrot.slane %v444, 2
        %v667 = vrot.slane %v445, 2
        %v668 = vsel %vm650, %v666, %v667
        %v669 = vrot.slane %v446, 2
        %v670 = vsel %vm650, %v667, %v669
        %v671 = vrot.slane %v447, 2
        %v672 = vrot.slane %v448, 2
        %v673 = vsel %vm650, %v671, %v672
        %v674 = vrot.slane %v449, 2
        %v675 = vsel %vm650, %v672, %v674
        %v676 = vrot.slane %v450, 2
        %v677 = vrot.slane %v451, 2
        %v678 = vsel %vm650, %v676, %v677
        %v679 = vrot.slane %v452, 2
        %v680 = vsel %vm650, %v677, %v679
        %v681 = vrot.slane %v453, 2
        %v682 = vrot.slane %v454, 2
        %v683 = vsel %vm650, %v681, %v682
        %v684 = vrot.slane %v455, 2
        %v685 = vsel %vm650, %v682, %v684
        %v686 = vrot.slane %v456, 2
        %v687 = vrot.slane %v457, 2
        %v688 = vsel %vm650, %v686, %v687
        %v689 = vrot.slane %v458, 2
        %v690 = vsel %vm650, %v687, %v689
        %v691 = vrot.slane %v459, 2
        %v692 = vrot.slane %v460, 2
        %v693 = vsel %vm650, %v691, %v692
        %v694 = vrot.slane %v461, 2
        %v695 = vsel %vm650, %v692, %v694
        %v696 = vrot.slane %v462, 2
        %v697 = vrot.slane %v463, 2
        %v698 = vsel %vm650, %v696, %v697
        %v699 = vrot.slane %v464, 2
        %v700 = vsel %vm650, %v697, %v699
        %v701 = vrot.slane %v465, 2
        %v702 = vrot.slane %v466, 2
        %v703 = vsel %vm650, %v701, %v702
        %v704 = vrot.slane %v467, 2
        %v705 = vsel %vm650, %v702, %v704
        %v706 = vrot.slane %v468, 2
        %v707 = vrot.slane %v469, 2
        %v708 = vsel %vm650, %v706, %v707
        %v709 = vrot.slane %v470, 2
        %v710 = vsel %vm650, %v707, %v709
        %v711 = vrot.slane %v471, 2
        %v712 = vrot.slane %v472, 2
        %v713 = vsel %vm650, %v711, %v712
        %v714 = vrot.slane %v473, 2
        %v715 = vsel %vm650, %v712, %v714
        %v716 = vrot.slane %v474, 2
        %v717 = vrot.slane %v475, 2
        %v718 = vsel %vm650, %v716, %v717
        %v719 = vrot.slane %v476, 2
        %v720 = vsel %vm650, %v717, %v719
        %v721 = vrot.slane %v477, 2
        %v722 = vrot.slane %v478, 2
        %v723 = vsel %vm650, %v721, %v722
        %v724 = vrot.slane %v479, 2
        %v725 = vsel %vm650, %v722, %v724
        %v726 = vrot.slane %v480, 2
        %v727 = vrot.slane %v481, 2
        %v728 = vsel %vm650, %v726, %v727
        %v729 = vrot.slane %v482, 2
        %v730 = vsel %vm650, %v727, %v729
        %v766 = vrot.slane %v483, 1
        %v767 = vrot.slane %v484, 1
        %v768 = vsel %vm537, %v766, %v767
        %v769 = vrot.slane %v485, 1
        %v770 = vsel %vm537, %v767, %v769
        %v773 = vrot.slane %v483, 2
        %v774 = vrot.slane %v484, 2
        %v775 = vsel %vm650, %v773, %v774
        %v776 = vrot.slane %v485, 2
        %v777 = vsel %vm650, %v774, %v776
        %v783 = vrot.slane %v486, 1
        %v784 = vrot.slane %v487, 1
        %v785 = vsel %vm537, %v783, %v784
        %v786 = vrot.slane %v488, 1
        %v787 = vsel %vm537, %v784, %v786
        %v790 = vrot.slane %v486, 2
        %v791 = vrot.slane %v487, 2
        %v792 = vsel %vm650, %v790, %v791
        %v793 = vrot.slane %v488, 2
        %v794 = vsel %vm650, %v791, %v793
        %v797 = vpack.c.bf16 %v436, %v435
        %v798 = vpack.c.bf16 %v542, %v540
        %v799 = vpack.c.bf16 %v655, %v653
        %v800 = vpack.c.bf16 %v439, %v438
        %v801 = vpack.c.bf16 %v547, %v545
        %v802 = vpack.c.bf16 %v660, %v658
        %v803 = vpack.c.bf16 %v442, %v441
        %v804 = vpack.c.bf16 %v552, %v550
        %v805 = vpack.c.bf16 %v665, %v663
        %v806 = vpack.c.bf16 %v445, %v444
        %v807 = vpack.c.bf16 %v557, %v555
        %v808 = vpack.c.bf16 %v670, %v668
        %v809 = vpack.c.bf16 %v448, %v447
        %v810 = vpack.c.bf16 %v562, %v560
        %v811 = vpack.c.bf16 %v675, %v673
        %v812 = vpack.c.bf16 %v451, %v450
        %v813 = vpack.c.bf16 %v567, %v565
        %v814 = vpack.c.bf16 %v680, %v678
        %v815 = vpack.c.bf16 %v454, %v453
        %v816 = vpack.c.bf16 %v572, %v570
        %v817 = vpack.c.bf16 %v685, %v683
        %v818 = vpack.c.bf16 %v457, %v456
        %v819 = vpack.c.bf16 %v577, %v575
        %v820 = vpack.c.bf16 %v690, %v688
        %v821 = vpack.c.bf16 %v460, %v459
        %v822 = vpack.c.bf16 %v582, %v580
        %v823 = vpack.c.bf16 %v695, %v693
        %v824 = vpack.c.bf16 %v463, %v462
        %v825 = vpack.c.bf16 %v587, %v585
        %v826 = vpack.c.bf16 %v700, %v698
        %v827 = vpack.c.bf16 %v466, %v465
        %v828 = vpack.c.bf16 %v592, %v590
        %v829 = vpack.c.bf16 %v705, %v703
        %v830 = vpack.c.bf16 %v469, %v468
        %v831 = vpack.c.bf16 %v597, %v595
        %v832 = vpack.c.bf16 %v710, %v708
        %v833 = vpack.c.bf16 %v472, %v471
        %v834 = vpack.c.bf16 %v602, %v600
        %v835 = vpack.c.bf16 %v715, %v713
        %v836 = vpack.c.bf16 %v475, %v474
        %v837 = vpack.c.bf16 %v607, %v605
        %v838 = vpack.c.bf16 %v720, %v718
        %v839 = vpack.c.bf16 %v478, %v477
        %v840 = vpack.c.bf16 %v612, %v610
        %v841 = vpack.c.bf16 %v725, %v723
        %v842 = vpack.c.bf16 %v481, %v480
        %v843 = vpack.c.bf16 %v617, %v615
        %v844 = vpack.c.bf16 %v730, %v728
        %v845 = vpack.c.bf16 %v484, %v483
        %v846 = vpack.c.bf16 %v770, %v768
        %v847 = vpack.c.bf16 %v777, %v775
        %v848 = vpack.c.bf16 %v487, %v486
        %v849 = vpack.c.bf16 %v787, %v785
        %v850 = vpack.c.bf16 %v794, %v792
        %v851 = vld [vmem:[#allocation6] sm:$0xf]
        %v852 = vld [vmem:[#allocation6 + $0x4] sm:$0xf]
        %v853 = vld [vmem:[#allocation6 + $0x8] sm:$0xf]
        %v854 = vld [vmem:[#allocation6 + $0xc] sm:$0xf]
        %v855 = vld [vmem:[#allocation6 + $0x10] sm:$0xf]
        %v856 = vld [vmem:[#allocation6 + $0x14] sm:$0xf]
        %v857 = vld [vmem:[#allocation6 + $0x18] sm:$0xf]
        %v858 = vld [vmem:[#allocation6 + $0x1c] sm:$0xf]
        %v859 = vld [vmem:[#allocation6 + $0x20] sm:$0xf]
        %v860 = vld [vmem:[#allocation6 + $0x24] sm:$0xf]
        %v861 = vld [vmem:[#allocation6 + $0x28] sm:$0xf]
        %v862 = vld [vmem:[#allocation6 + $0x2c] sm:$0xf]
        %v863 = vld [vmem:[#allocation6 + $0x30] sm:$0xf]
        %v864 = vld [vmem:[#allocation6 + $0x34] sm:$0xf]
        %v865 = vld [vmem:[#allocation6 + $0x38] sm:$0xf]
        %v866 = vld [vmem:[#allocation6 + $0x3c] sm:$0xf]
        %v867 = vld [vmem:[#allocation6 + $0x40] sm:$0xf]
        %v868 = vld [vmem:[#allocation6 + $0x44] sm:$0xf]
        %v869 = vld [vmem:[#allocation6 + $0x48] sm:$0xf]
        %v870 = vld [vmem:[#allocation6 + $0x4c] sm:$0xf]
        %v871 = vld [vmem:[#allocation6 + $0x50] sm:$0xf]
        %v872 = vld [vmem:[#allocation6 + $0x54] sm:$0xf]
        %v873 = vld [vmem:[#allocation6 + $0x58] sm:$0xf]
        %v874 = vld [vmem:[#allocation6 + $0x5c] sm:$0xf]
        %v875 = vld [vmem:[#allocation6 + $0x60] sm:$0xf]
        %v876 = vld [vmem:[#allocation6 + $0x64] sm:$0xf]
        %v877 = vld [vmem:[#allocation6 + $0x68] sm:$0xf]
        %v878 = vld [vmem:[#allocation6 + $0x6c] sm:$0xf]
        %v879 = vld [vmem:[#allocation6 + $0x70] sm:$0xf]
        %v880 = vld [vmem:[#allocation6 + $0x74] sm:$0xf]
        %v881 = vld [vmem:[#allocation6 + $0x78] sm:$0xf]
        %v882 = vld [vmem:[#allocation6 + $0x7c] sm:$0xf]
        %v883 = vld [vmem:[#allocation6 + $0x80] sm:$0xf]
        %v884 = vld [vmem:[#allocation6 + $0x84] sm:$0xf]
        %v885 = vld [vmem:[#allocation6 + $0x88] sm:$0xf]
        %v886 = vld [vmem:[#allocation6 + $0x8c] sm:$0xf]
        %v887 = vld [vmem:[#allocation6 + $0x90] sm:$0xf]
        %v888 = vld [vmem:[#allocation6 + $0x94] sm:$0xf]
        %v889 = vld [vmem:[#allocation6 + $0x98] sm:$0xf]
        %v890 = vld [vmem:[#allocation6 + $0x9c] sm:$0xf]
        %v891 = vld [vmem:[#allocation6 + $0xa0] sm:$0xf]
        %v892 = vld [vmem:[#allocation6 + $0xa4] sm:$0xf]
        %v893 = vld [vmem:[#allocation6 + $0xa8] sm:$0xf]
        %v894 = vld [vmem:[#allocation6 + $0xac] sm:$0xf]
        %v895 = vld [vmem:[#allocation6 + $0xb0] sm:$0xf]
        %v896 = vld [vmem:[#allocation6 + $0xb4] sm:$0xf]
        %v897 = vld [vmem:[#allocation6 + $0xb8] sm:$0xf]
        %v898 = vld [vmem:[#allocation6 + $0xbc] sm:$0xf]
        %v899 = vld [vmem:[#allocation6 + $0xc0] sm:$0xf]
        %v900 = vld [vmem:[#allocation6 + $0xc4] sm:$0xf]
        %v901 = vld [vmem:[#allocation6 + $0xc8] sm:$0xf]
        %v902 = vld [vmem:[#allocation6 + $0xcc] sm:$0xf]
        %v903 = vld [vmem:[#allocation6 + $0xd0] sm:$0xf]
        %v904 = vld [vmem:[#allocation6 + $0xd4] sm:$0xf]
        %v905 = vld [vmem:[#allocation6 + $0xd8] sm:$0xf]
        %v906 = vld [vmem:[#allocation6 + $0xdc] sm:$0xf]
        %v907 = vld [vmem:[#allocation6 + $0xe0] sm:$0xf]
        %v908 = vld [vmem:[#allocation6 + $0xe4] sm:$0xf]
        %v909 = vld [vmem:[#allocation6 + $0xe8] sm:$0xf]
        %v910 = vld [vmem:[#allocation6 + $0xec] sm:$0xf]
        %v911 = vld [vmem:[#allocation6 + $0xf0] sm:$0xf]
        %v912 = vld [vmem:[#allocation6 + $0xf4] sm:$0xf]
        %v913 = vld [vmem:[#allocation6 + $0xf8] sm:$0xf]
        %v914 = vld [vmem:[#allocation6 + $0xfc] sm:$0xf]
        %v915 = vld [vmem:[#allocation6 + $0x100] sm:$0xf]
        %v916 = vld [vmem:[#allocation6 + $0x104] sm:$0xf]
        %v917 = vld [vmem:[#allocation6 + $0x108] sm:$0xf]
        %v918 = vld [vmem:[#allocation6 + $0x10c] sm:$0xf]
        %v919 = vld [vmem:[#allocation6 + $0x110] sm:$0xf]
        %v920 = vld [vmem:[#allocation6 + $0x114] sm:$0xf]
        %v921 = vld [vmem:[#allocation6 + $0x118] sm:$0xf]
        %v922 = vld [vmem:[#allocation6 + $0x11c] sm:$0xf]
        %v923 = vld [vmem:[#allocation6 + $0x120] sm:$0xf]
        %v924 = vld [vmem:[#allocation6 + $0x124] sm:$0xf]
        %v925 = vld [vmem:[#allocation6 + $0x128] sm:$0xf]
        %v926 = vld [vmem:[#allocation6 + $0x12c] sm:$0xf]
        %v927 = vld [vmem:[#allocation6 + $0x130] sm:$0xf]
        %v928 = vld [vmem:[#allocation6 + $0x134] sm:$0xf]
        %v929 = vld [vmem:[#allocation6 + $0x138] sm:$0xf]
        %v930 = vld [vmem:[#allocation6 + $0x13c] sm:$0xf]
        %v931 = vld [vmem:[#allocation6 + $0x140] sm:$0xf]
        %v932 = vld [vmem:[#allocation6 + $0x144] sm:$0xf]
        %v933 = vld [vmem:[#allocation6 + $0x148] sm:$0xf]
        %v934 = vld [vmem:[#allocation6 + $0x14c] sm:$0xf]
        %v935 = vld [vmem:[#allocation6 + $0x150] sm:$0xf]
        %v936 = vld [vmem:[#allocation6 + $0x154] sm:$0xf]
        %v937 = vld [vmem:[#allocation6 + $0x158] sm:$0xf]
        %v938 = vld [vmem:[#allocation6 + $0x15c] sm:$0xf]
        %v939 = vld [vmem:[#allocation6 + $0x160] sm:$0xf]
        %v940 = vld [vmem:[#allocation6 + $0x164] sm:$0xf]
        %v941 = vld [vmem:[#allocation6 + $0x168] sm:$0xf]
        %v942 = vld [vmem:[#allocation6 + $0x16c] sm:$0xf]
        %v943 = vld [vmem:[#allocation6 + $0x170] sm:$0xf]
        %v944 = vld [vmem:[#allocation6 + $0x174] sm:$0xf]
        %v945 = vld [vmem:[#allocation6 + $0x178] sm:$0xf]
        %v946 = vld [vmem:[#allocation6 + $0x17c] sm:$0xf]
        %v947 = vld [vmem:[#allocation6 + $0x180] sm:$0xf]
        %v948 = vld [vmem:[#allocation6 + $0x184] sm:$0xf]
        %v949 = vld [vmem:[#allocation6 + $0x188] sm:$0xf]
        %v950 = vld [vmem:[#allocation6 + $0x18c] sm:$0xf]
        %v951 = vld [vmem:[#allocation6 + $0x190] sm:$0xf]
        %v952 = vld [vmem:[#allocation6 + $0x194] sm:$0xf]
        %v953 = vld [vmem:[#allocation6 + $0x198] sm:$0xf]
        %v954 = vld [vmem:[#allocation6 + $0x19c] sm:$0xf]
        %v955 = vld [vmem:[#allocation6 + $0x1a0] sm:$0xf]
        %v956 = vld [vmem:[#allocation6 + $0x1a4] sm:$0xf]
        %v957 = vld [vmem:[#allocation6 + $0x1a8] sm:$0xf]
        %v958 = vld [vmem:[#allocation6 + $0x1ac] sm:$0xf]
        %v959 = vld [vmem:[#allocation6 + $0x1b0] sm:$0xf]
        %v960 = vld [vmem:[#allocation6 + $0x1b4] sm:$0xf]
        %v961 = vld [vmem:[#allocation6 + $0x1b8] sm:$0xf]
        %v962 = vld [vmem:[#allocation6 + $0x1bc] sm:$0xf]
        %v963 = vld [vmem:[#allocation6 + $0x1c0] sm:$0xf]
        %v964 = vld [vmem:[#allocation6 + $0x1c4] sm:$0xf]
        %v965 = vld [vmem:[#allocation6 + $0x1c8] sm:$0xf]
        %v966 = vld [vmem:[#allocation6 + $0x1cc] sm:$0xf]
        %v967 = vld [vmem:[#allocation6 + $0x1d0] sm:$0xf]
        %v968 = vld [vmem:[#allocation6 + $0x1d4] sm:$0xf]
        %v969 = vld [vmem:[#allocation6 + $0x1d8] sm:$0xf]
        %v970 = vld [vmem:[#allocation6 + $0x1dc] sm:$0xf]
        %v971 = vld [vmem:[#allocation6 + $0x1e0] sm:$0xf]
        %v972 = vld [vmem:[#allocation6 + $0x1e4] sm:$0xf]
        %v973 = vld [vmem:[#allocation6 + $0x1e8] sm:$0xf]
        %v974 = vld [vmem:[#allocation6 + $0x1ec] sm:$0xf]
        %v975 = vld [vmem:[#allocation6 + $0x1f0] sm:$0xf]
        %v976 = vld [vmem:[#allocation6 + $0x1f4] sm:$0xf]
        %v977 = vld [vmem:[#allocation6 + $0x1f8] sm:$0xf]
        %v978 = vld [vmem:[#allocation6 + $0x1fc] sm:$0xf]
        %v979 = vld [vmem:[#allocation6 + $0x200] sm:$0xf]
        %v980 = vld [vmem:[#allocation6 + $0x204] sm:$0xf]
        %v981 = vld [vmem:[#allocation6 + $0x208] sm:$0xf]
        %v982 = vld [vmem:[#allocation6 + $0x20c] sm:$0xf]
        %v983 = vld [vmem:[#allocation6 + $0x210] sm:$0xf]
        %v984 = vld [vmem:[#allocation6 + $0x214] sm:$0xf]
        %v985 = vld [vmem:[#allocation6 + $0x218] sm:$0xf]
        %v986 = vld [vmem:[#allocation6 + $0x21c] sm:$0xf]
        %v987 = vld [vmem:[#allocation6 + $0x220] sm:$0xf]
        %v988 = vld [vmem:[#allocation6 + $0x224] sm:$0xf]
        %v989 = vld [vmem:[#allocation6 + $0x228] sm:$0xf]
        %v990 = vld [vmem:[#allocation6 + $0x22c] sm:$0xf]
        %v991 = vld [vmem:[#allocation6 + $0x230] sm:$0xf]
        %v992 = vld [vmem:[#allocation6 + $0x234] sm:$0xf]
        %v993 = vld [vmem:[#allocation6 + $0x238] sm:$0xf]
        %v994 = vld [vmem:[#allocation6 + $0x23c] sm:$0xf]
        %v1139 = vunpack.c.l.b16 %v851
        %v1140 = vunpack.c.l.b16 %v852
        %v1141 = vunpack.c.l.b16 %v853
        %v1142 = vunpack.c.l.b16 %v854
        %v1143 = vunpack.c.l.b16 %v855
        %v1144 = vunpack.c.l.b16 %v856
        %v1145 = vunpack.c.l.b16 %v857
        %v1146 = vunpack.c.l.b16 %v858
        %v1147 = vunpack.c.l.b16 %v859
        %v1148 = vunpack.c.l.b16 %v860
        %v1149 = vunpack.c.l.b16 %v861
        %v1150 = vunpack.c.l.b16 %v862
        %v1151 = vunpack.c.l.b16 %v863
        %v1152 = vunpack.c.l.b16 %v864
        %v1153 = vunpack.c.l.b16 %v865
        %v1154 = vunpack.c.l.b16 %v866
        %v1155 = vunpack.c.l.b16 %v867
        %v1156 = vunpack.c.l.b16 %v868
        %v1157 = vunpack.c.l.b16 %v869
        %v1158 = vunpack.c.l.b16 %v870
        %v1159 = vunpack.c.l.b16 %v871
        %v1160 = vunpack.c.l.b16 %v872
        %v1161 = vunpack.c.l.b16 %v873
        %v1162 = vunpack.c.l.b16 %v874
        %v1163 = vunpack.c.l.b16 %v875
        %v1164 = vunpack.c.l.b16 %v876
        %v1165 = vunpack.c.l.b16 %v877
        %v1166 = vunpack.c.l.b16 %v878
        %v1167 = vunpack.c.l.b16 %v879
        %v1168 = vunpack.c.l.b16 %v880
        %v1169 = vunpack.c.l.b16 %v881
        %v1170 = vunpack.c.l.b16 %v882
        %v1171 = vunpack.c.l.b16 %v883
        %v1172 = vunpack.c.l.b16 %v884
        %v1173 = vunpack.c.l.b16 %v885
        %v1174 = vunpack.c.l.b16 %v886
        %v1175 = vunpack.c.l.b16 %v887
        %v1176 = vunpack.c.l.b16 %v888
        %v1177 = vunpack.c.l.b16 %v889
        %v1178 = vunpack.c.l.b16 %v890
        %v1179 = vunpack.c.l.b16 %v891
        %v1180 = vunpack.c.l.b16 %v892
        %v1181 = vunpack.c.l.b16 %v893
        %v1182 = vunpack.c.l.b16 %v894
        %v1183 = vunpack.c.l.b16 %v895
        %v1184 = vunpack.c.l.b16 %v896
        %v1185 = vunpack.c.l.b16 %v897
        %v1186 = vunpack.c.l.b16 %v898
        %v1187 = vunpack.c.l.b16 %v899
        %v1188 = vunpack.c.l.b16 %v900
        %v1189 = vunpack.c.l.b16 %v901
        %v1190 = vunpack.c.l.b16 %v902
        %v1191 = vunpack.c.l.b16 %v903
        %v1192 = vunpack.c.l.b16 %v904
        %v1193 = vunpack.c.l.b16 %v905
        %v1194 = vunpack.c.l.b16 %v906
        %v1195 = vunpack.c.l.b16 %v907
        %v1196 = vunpack.c.l.b16 %v908
        %v1197 = vunpack.c.l.b16 %v909
        %v1198 = vunpack.c.l.b16 %v910
        %v1199 = vunpack.c.l.b16 %v911
        %v1200 = vunpack.c.l.b16 %v912
        %v1201 = vunpack.c.l.b16 %v913
        %v1202 = vunpack.c.l.b16 %v914
        %v1203 = vunpack.c.l.b16 %v915
        %v1204 = vunpack.c.l.b16 %v916
        %v1205 = vunpack.c.l.b16 %v917
        %v1206 = vunpack.c.l.b16 %v918
        %v1207 = vunpack.c.l.b16 %v919
        %v1208 = vunpack.c.l.b16 %v920
        %v1209 = vunpack.c.l.b16 %v921
        %v1210 = vunpack.c.l.b16 %v922
        %v1211 = vunpack.c.l.b16 %v923
        %v1212 = vunpack.c.l.b16 %v924
        %v1213 = vunpack.c.l.b16 %v925
        %v1214 = vunpack.c.l.b16 %v926
        %v1215 = vunpack.c.l.b16 %v927
        %v1216 = vunpack.c.l.b16 %v928
        %v1217 = vunpack.c.l.b16 %v929
        %v1218 = vunpack.c.l.b16 %v930
        %v1219 = vunpack.c.l.b16 %v931
        %v1220 = vunpack.c.l.b16 %v932
        %v1221 = vunpack.c.l.b16 %v933
        %v1222 = vunpack.c.l.b16 %v934
        %v1223 = vunpack.c.l.b16 %v935
        %v1224 = vunpack.c.l.b16 %v936
        %v1225 = vunpack.c.l.b16 %v937
        %v1226 = vunpack.c.l.b16 %v938
        %v1227 = vunpack.c.l.b16 %v939
        %v1228 = vunpack.c.l.b16 %v940
        %v1229 = vunpack.c.l.b16 %v941
        %v1230 = vunpack.c.l.b16 %v942
        %v1231 = vunpack.c.l.b16 %v943
        %v1232 = vunpack.c.l.b16 %v944
        %v1233 = vunpack.c.l.b16 %v945
        %v1234 = vunpack.c.l.b16 %v946
        %v1235 = vunpack.c.l.b16 %v947
        %v1236 = vunpack.c.l.b16 %v948
        %v1237 = vunpack.c.l.b16 %v949
        %v1238 = vunpack.c.l.b16 %v950
        %v1239 = vunpack.c.l.b16 %v951
        %v1240 = vunpack.c.l.b16 %v952
        %v1241 = vunpack.c.l.b16 %v953
        %v1242 = vunpack.c.l.b16 %v954
        %v1243 = vunpack.c.l.b16 %v955
        %v1244 = vunpack.c.l.b16 %v956
        %v1245 = vunpack.c.l.b16 %v957
        %v1246 = vunpack.c.l.b16 %v958
        %v1247 = vunpack.c.l.b16 %v959
        %v1248 = vunpack.c.l.b16 %v960
        %v1249 = vunpack.c.l.b16 %v961
        %v1250 = vunpack.c.l.b16 %v962
        %v1251 = vunpack.c.l.b16 %v963
        %v1252 = vunpack.c.l.b16 %v964
        %v1253 = vunpack.c.l.b16 %v965
        %v1254 = vunpack.c.l.b16 %v966
        %v1255 = vunpack.c.l.b16 %v967
        %v1256 = vunpack.c.l.b16 %v968
        %v1257 = vunpack.c.l.b16 %v969
        %v1258 = vunpack.c.l.b16 %v970
        %v1259 = vunpack.c.l.b16 %v971
        %v1260 = vunpack.c.l.b16 %v972
        %v1261 = vunpack.c.l.b16 %v973
        %v1262 = vunpack.c.l.b16 %v974
        %v1263 = vunpack.c.l.b16 %v975
        %v1264 = vunpack.c.l.b16 %v976
        %v1265 = vunpack.c.l.b16 %v977
        %v1266 = vunpack.c.l.b16 %v978
        %v1267 = vunpack.c.l.b16 %v979
        %v1268 = vunpack.c.l.b16 %v980
        %v1269 = vunpack.c.l.b16 %v981
        %v1270 = vunpack.c.l.b16 %v982
        %v1271 = vunpack.c.l.b16 %v983
        %v1272 = vunpack.c.l.b16 %v984
        %v1273 = vunpack.c.l.b16 %v985
        %v1274 = vunpack.c.l.b16 %v986
        %v1275 = vunpack.c.l.b16 %v987
        %v1276 = vunpack.c.l.b16 %v988
        %v1277 = vunpack.c.l.b16 %v989
        %v1278 = vunpack.c.l.b16 %v990
        %v1279 = vunpack.c.l.b16 %v991
        %v1280 = vunpack.c.l.b16 %v992
        %v1281 = vunpack.c.l.b16 %v993
        %v1282 = vunpack.c.l.b16 %v994
        %v1283 = vpack.c.b16 %v1140, %v1139
        %v1284 = vpack.c.b16 %v1142, %v1141
        %v1285 = vpack.c.b16 %v1144, %v1143
        %v1286 = vpack.c.b16 %v1146, %v1145
        %v1287 = vpack.c.b16 %v1148, %v1147
        %v1288 = vpack.c.b16 %v1150, %v1149
        %v1289 = vpack.c.b16 %v1152, %v1151
        %v1290 = vpack.c.b16 %v1154, %v1153
        %v1291 = vpack.c.b16 %v1156, %v1155
        %v1292 = vpack.c.b16 %v1158, %v1157
        %v1293 = vpack.c.b16 %v1160, %v1159
        %v1294 = vpack.c.b16 %v1162, %v1161
        %v1295 = vpack.c.b16 %v1164, %v1163
        %v1296 = vpack.c.b16 %v1166, %v1165
        %v1297 = vpack.c.b16 %v1168, %v1167
        %v1298 = vpack.c.b16 %v1170, %v1169
        %v1299 = vpack.c.b16 %v1172, %v1171
        %v1300 = vpack.c.b16 %v1174, %v1173
        %v1301 = vpack.c.b16 %v1176, %v1175
        %v1302 = vpack.c.b16 %v1178, %v1177
        %v1303 = vpack.c.b16 %v1180, %v1179
        %v1304 = vpack.c.b16 %v1182, %v1181
        %v1305 = vpack.c.b16 %v1184, %v1183
        %v1306 = vpack.c.b16 %v1186, %v1185
        %v1307 = vpack.c.b16 %v1188, %v1187
        %v1308 = vpack.c.b16 %v1190, %v1189
        %v1309 = vpack.c.b16 %v1192, %v1191
        %v1310 = vpack.c.b16 %v1194, %v1193
        %v1311 = vpack.c.b16 %v1196, %v1195
        %v1312 = vpack.c.b16 %v1198, %v1197
        %v1313 = vpack.c.b16 %v1200, %v1199
        %v1314 = vpack.c.b16 %v1202, %v1201
        %v1315 = vpack.c.b16 %v1204, %v1203
        %v1316 = vpack.c.b16 %v1206, %v1205
        %v1317 = vpack.c.b16 %v1208, %v1207
        %v1318 = vpack.c.b16 %v1210, %v1209
        %v1319 = vpack.c.b16 %v1212, %v1211
        %v1320 = vpack.c.b16 %v1214, %v1213
        %v1321 = vpack.c.b16 %v1216, %v1215
        %v1322 = vpack.c.b16 %v1218, %v1217
        %v1323 = vpack.c.b16 %v1220, %v1219
        %v1324 = vpack.c.b16 %v1222, %v1221
        %v1325 = vpack.c.b16 %v1224, %v1223
        %v1326 = vpack.c.b16 %v1226, %v1225
        %v1327 = vpack.c.b16 %v1228, %v1227
        %v1328 = vpack.c.b16 %v1230, %v1229
        %v1329 = vpack.c.b16 %v1232, %v1231
        %v1330 = vpack.c.b16 %v1234, %v1233
        %v1331 = vpack.c.b16 %v1236, %v1235
        %v1332 = vpack.c.b16 %v1238, %v1237
        %v1333 = vpack.c.b16 %v1240, %v1239
        %v1334 = vpack.c.b16 %v1242, %v1241
        %v1335 = vpack.c.b16 %v1244, %v1243
        %v1336 = vpack.c.b16 %v1246, %v1245
        %v1337 = vpack.c.b16 %v1248, %v1247
        %v1338 = vpack.c.b16 %v1250, %v1249
        %v1339 = vpack.c.b16 %v1252, %v1251
        %v1340 = vpack.c.b16 %v1254, %v1253
        %v1341 = vpack.c.b16 %v1256, %v1255
        %v1342 = vpack.c.b16 %v1258, %v1257
        %v1343 = vpack.c.b16 %v1260, %v1259
        %v1344 = vpack.c.b16 %v1262, %v1261
        %v1345 = vpack.c.b16 %v1264, %v1263
        %v1346 = vpack.c.b16 %v1266, %v1265
        %v1347 = vpack.c.b16 %v1268, %v1267
        %v1348 = vpack.c.b16 %v1270, %v1269
        %v1349 = vpack.c.b16 %v1272, %v1271
        %v1350 = vpack.c.b16 %v1274, %v1273
        %v1351 = vpack.c.b16 %v1276, %v1275
        %v1352 = vpack.c.b16 %v1278, %v1277
        %v1353 = vpack.c.b16 %v1280, %v1279
        %v1354 = vpack.c.b16 %v1282, %v1281
        %1427 = vmatprep.subr.bf16.mxu0 0
        %1428 = vmatpush1.bf16.msra.mxu0 %v1283
        %1429 = vmatprep.subr.bf16.mxu0 0
        %1430 = vmatpush1.bf16.msra.mxu0 %v1284
        %1431 = vmatprep.subr.bf16.mxu0 0
        %1432 = vmatpush1.bf16.msra.mxu0 %v1285
        %1433 = vmatprep.subr.bf16.mxu0 0
        %1434 = vmatpush1.bf16.msra.mxu0 %v1286
        %1435 = vmatprep.subr.bf16.mxu0 0
        %1436 = vmatpush1.bf16.msra.mxu0 %v1287
        %1437 = vmatprep.subr.bf16.mxu0 0
        %1438 = vmatpush1.bf16.msra.mxu0 %v1288
        %1439 = vmatprep.subr.bf16.mxu0 0
        %1440 = vmatpush1.bf16.msra.mxu0 %v1289
        %1441 = vmatprep.subr.bf16.mxu0 0
        %1442 = vmatpush1.bf16.msra.mxu0 %v1290
        %1443 = vmatprep.subr.bf16.mxu0 0
        %1444 = vmatpush1.bf16.msra.mxu0 %v1291
        %1445 = vmatprep.subr.bf16.mxu0 0
        %1446 = vmatpush1.bf16.msra.mxu0 %v1292
        %1447 = vmatprep.subr.bf16.mxu0 0
        %1448 = vmatpush1.bf16.msra.mxu0 %v1293
        %1449 = vmatprep.subr.bf16.mxu0 0
        %1450 = vmatpush1.bf16.msra.mxu0 %v1294
        %1451 = vmatprep.subr.bf16.mxu0 0
        %1452 = vmatpush1.bf16.msra.mxu0 %v1295
        %1453 = vmatprep.subr.bf16.mxu0 0
        %1454 = vmatpush1.bf16.msra.mxu0 %v1296
        %1455 = vmatprep.subr.bf16.mxu0 0
        %1456 = vmatpush1.bf16.msra.mxu0 %v1297
        %1457 = vmatprep.subr.bf16.mxu0 0
        %1458 = vmatpush1.bf16.msra.mxu0 %v1298
        %1459 = vmatprep.mubr.bf16.mxu0 %v798
        %1460 = vmatmul.mubr.bf16.gmra.mrb[0].mxu0 %v797
        %v1461 = vpop.f32.mrb[0].mxu0
        %v1462 = vadd.f32 0.0, %v1461
        %v1463 = vpop.f32.mrb[0].mxu0
        %v1464 = vpop.f32.mrb[0].mxu0
        %v1465 = vadd.f32 0.0, %v1464
        %v1466 = vpop.f32.mrb[0].mxu0
        %1467 = vmatprep.mubr.bf16.mxu0 %v801
        %1468 = vmatmul.mubr.bf16.gmra.mrb[0].mxu0 %v800
        %v1469 = vpop.f32.mrb[0].mxu0
        %v1470 = vadd.f32 0.0, %v1469
        %v1471 = vpop.f32.mrb[0].mxu0
        %v1472 = vpop.f32.mrb[0].mxu0
        %v1473 = vadd.f32 0.0, %v1472
        %v1474 = vpop.f32.mrb[0].mxu0
        %1475 = vmatprep.mubr.bf16.mxu0 %v804
        %1476 = vmatmul.mubr.bf16.gmra.mrb[0].mxu0 %v803
        %v1477 = vpop.f32.mrb[0].mxu0
        %v1478 = vadd.f32 0.0, %v1477
        %v1479 = vpop.f32.mrb[0].mxu0
        %v1480 = vpop.f32.mrb[0].mxu0
        %v1481 = vadd.f32 0.0, %v1480
        %v1482 = vpop.f32.mrb[0].mxu0
        %1483 = vmatprep.mubr.bf16.mxu0 %v807
        %1484 = vmatmul.mubr.bf16.gmra.mrb[0].mxu0 %v806
        %v1485 = vpop.f32.mrb[0].mxu0
        %v1486 = vadd.f32 0.0, %v1485
        %v1487 = vpop.f32.mrb[0].mxu0
        %v1488 = vpop.f32.mrb[0].mxu0
        %v1489 = vadd.f32 0.0, %v1488
        %v1490 = vpop.f32.mrb[0].mxu0
        %1491 = vmatprep.mubr.bf16.mxu0 %v810
        %1492 = vmatmul.mubr.bf16.gmra.mrb[0].mxu0 %v809
        %v1493 = vpop.f32.mrb[0].mxu0
        %v1494 = vadd.f32 0.0, %v1493
        %v1495 = vpop.f32.mrb[0].mxu0
        %v1496 = vpop.f32.mrb[0].mxu0
        %v1497 = vadd.f32 0.0, %v1496
        %v1498 = vpop.f32.mrb[0].mxu0
        %1499 = vmatprep.mubr.bf16.mxu0 %v813
        %1500 = vmatmul.mubr.bf16.gmra.mrb[0].mxu0 %v812
        %v1501 = vpop.f32.mrb[0].mxu0
        %v1502 = vadd.f32 0.0, %v1501
        %v1503 = vpop.f32.mrb[0].mxu0
        %v1504 = vpop.f32.mrb[0].mxu0
        %v1505 = vadd.f32 0.0, %v1504
        %v1506 = vpop.f32.mrb[0].mxu0
        %1507 = vmatprep.mubr.bf16.mxu0 %v816
        %1508 = vmatmul.mubr.bf16.gmra.mrb[0].mxu0 %v815
        %v1509 = vpop.f32.mrb[0].mxu0
        %v1510 = vadd.f32 0.0, %v1509
        %v1511 = vpop.f32.mrb[0].mxu0
        %v1512 = vpop.f32.mrb[0].mxu0
        %v1513 = vadd.f32 0.0, %v1512
        %v1514 = vpop.f32.mrb[0].mxu0
        %1515 = vmatprep.mubr.bf16.mxu0 %v819
        %1516 = vmatmul.mubr.bf16.gmra.mrb[0].mxu0 %v818
        %v1517 = vpop.f32.mrb[0].mxu0
        %v1518 = vadd.f32 0.0, %v1517
        %v1519 = vpop.f32.mrb[0].mxu0
        %v1520 = vpop.f32.mrb[0].mxu0
        %v1521 = vadd.f32 0.0, %v1520
        %v1522 = vpop.f32.mrb[0].mxu0
        %1523 = vmatprep.mubr.bf16.mxu0 %v822
        %1524 = vmatmul.mubr.bf16.gmra.mrb[0].mxu0 %v821
        %v1525 = vpop.f32.mrb[0].mxu0
        %v1526 = vadd.f32 0.0, %v1525
        %v1527 = vpop.f32.mrb[0].mxu0
        %v1528 = vpop.f32.mrb[0].mxu0
        %v1529 = vadd.f32 0.0, %v1528
        %v1530 = vpop.f32.mrb[0].mxu0
        %1531 = vmatprep.mubr.bf16.mxu0 %v825
        %1532 = vmatmul.mubr.bf16.gmra.mrb[0].mxu0 %v824
        %v1533 = vpop.f32.mrb[0].mxu0
        %v1534 = vadd.f32 0.0, %v1533
        %v1535 = vpop.f32.mrb[0].mxu0
        %v1536 = vpop.f32.mrb[0].mxu0
        %v1537 = vadd.f32 0.0, %v1536
        %v1538 = vpop.f32.mrb[0].mxu0
        %1539 = vmatprep.mubr.bf16.mxu0 %v828
        %1540 = vmatmul.mubr.bf16.gmra.mrb[0].mxu0 %v827
        %v1541 = vpop.f32.mrb[0].mxu0
        %v1542 = vadd.f32 0.0, %v1541
        %v1543 = vpop.f32.mrb[0].mxu0
        %v1544 = vpop.f32.mrb[0].mxu0
        %v1545 = vadd.f32 0.0, %v1544
        %v1546 = vpop.f32.mrb[0].mxu0
        %1547 = vmatprep.mubr.bf16.mxu0 %v831
        %1548 = vmatmul.mubr.bf16.gmra.mrb[0].mxu0 %v830
        %v1549 = vpop.f32.mrb[0].mxu0
        %v1550 = vadd.f32 0.0, %v1549
        %v1551 = vpop.f32.mrb[0].mxu0
        %v1552 = vpop.f32.mrb[0].mxu0
        %v1553 = vadd.f32 0.0, %v1552
        %v1554 = vpop.f32.mrb[0].mxu0
        %1555 = vmatprep.mubr.bf16.mxu0 %v834
        %1556 = vmatmul.mubr.bf16.gmra.mrb[0].mxu0 %v833
        %v1557 = vpop.f32.mrb[0].mxu0
        %v1558 = vadd.f32 0.0, %v1557
        %v1559 = vpop.f32.mrb[0].mxu0
        %v1560 = vpop.f32.mrb[0].mxu0
        %v1561 = vadd.f32 0.0, %v1560
        %v1562 = vpop.f32.mrb[0].mxu0
        %1563 = vmatprep.mubr.bf16.mxu0 %v837
        %1564 = vmatmul.mubr.bf16.gmra.mrb[0].mxu0 %v836
        %v1565 = vpop.f32.mrb[0].mxu0
        %v1566 = vadd.f32 0.0, %v1565
        %v1567 = vpop.f32.mrb[0].mxu0
        %v1568 = vpop.f32.mrb[0].mxu0
        %v1569 = vadd.f32 0.0, %v1568
        %v1570 = vpop.f32.mrb[0].mxu0
        %1571 = vmatprep.mubr.bf16.mxu0 %v840
        %1572 = vmatmul.mubr.bf16.gmra.mrb[0].mxu0 %v839
        %v1573 = vpop.f32.mrb[0].mxu0
        %v1574 = vadd.f32 0.0, %v1573
        %v1575 = vpop.f32.mrb[0].mxu0
        %v1576 = vpop.f32.mrb[0].mxu0
        %v1577 = vadd.f32 0.0, %v1576
        %v1578 = vpop.f32.mrb[0].mxu0
        %1579 = vmatprep.mubr.bf16.mxu0 %v843
        %1580 = vmatmul.mubr.bf16.gmra.mrb[0].mxu0 %v842
        %v1581 = vpop.f32.mrb[0].mxu0
        %v1582 = vadd.f32 0.0, %v1581
        %v1583 = vpop.f32.mrb[0].mxu0
        %v1584 = vpop.f32.mrb[0].mxu0
        %v1585 = vadd.f32 0.0, %v1584
        %v1586 = vpop.f32.mrb[0].mxu0
        %1587 = vdwg.mxu0
        %1588 = vmatprep.subr.bf16.mxu0 0
        %1589 = vmatpush1.bf16.msra.mxu0 %v1299
        %1590 = vmatprep.subr.bf16.mxu0 0
        %1591 = vmatpush1.bf16.msra.mxu0 %v1300
        %1592 = vmatprep.subr.bf16.mxu0 0
        %1593 = vmatpush1.bf16.msra.mxu0 %v1301
        %1594 = vmatprep.subr.bf16.mxu0 0
        %1595 = vmatpush1.bf16.msra.mxu0 %v1302
        %1596 = vmatprep.subr.bf16.mxu0 0
        %1597 = vmatpush1.bf16.msra.mxu0 %v1303
        %1598 = vmatprep.subr.bf16.mxu0 0
        %1599 = vmatpush1.bf16.msra.mxu0 %v1304
        %1600 = vmatprep.subr.bf16.mxu0 0
        %1601 = vmatpush1.bf16.msra.mxu0 %v1305
        %1602 = vmatprep.subr.bf16.mxu0 0
        %1603 = vmatpush1.bf16.msra.mxu0 %v1306
        %1604 = vmatprep.subr.bf16.mxu0 0
        %1605 = vmatpush1.bf16.msra.mxu0 %v1307
        %1606 = vmatprep.subr.bf16.mxu0 0
        %1607 = vmatpush1.bf16.msra.mxu0 %v1308
        %1608 = vmatprep.subr.bf16.mxu0 0
        %1609 = vmatpush1.bf16.msra.mxu0 %v1309
        %1610 = vmatprep.subr.bf16.mxu0 0
        %1611 = vmatpush1.bf16.msra.mxu0 %v1310
        %1612 = vmatprep.subr.bf16.mxu0 0
        %1613 = vmatpush1.bf16.msra.mxu0 %v1311
        %1614 = vmatprep.subr.bf16.mxu0 0
        %1615 = vmatpush1.bf16.msra.mxu0 %v1312
        %1616 = vmatprep.subr.bf16.mxu0 0
        %1617 = vmatpush1.bf16.msra.mxu0 %v1313
        %1618 = vmatprep.subr.bf16.mxu0 0
        %1619 = vmatpush1.bf16.msra.mxu0 %v1314
        %1620 = vmatprep.mubr.bf16.mxu0 %v800
        %1621 = vmatmul.mubr.bf16.gmra.mrb[0].mxu0 %v799
        %v1622 = vpop.f32.mrb[0].mxu0
        %v1623 = vadd.f32 %v1462, %v1622
        %v1624 = vpop.f32.mrb[0].mxu0
        %v1625 = vpop.f32.mrb[0].mxu0
        %v1626 = vadd.f32 %v1465, %v1625
        %v1627 = vpop.f32.mrb[0].mxu0
        %1628 = vmatprep.mubr.bf16.mxu0 %v803
        %1629 = vmatmul.mubr.bf16.gmra.mrb[0].mxu0 %v802
        %v1630 = vpop.f32.mrb[0].mxu0
        %v1631 = vadd.f32 %v1470, %v1630
        %v1632 = vpop.f32.mrb[0].mxu0
        %v1633 = vpop.f32.mrb[0].mxu0
        %v1634 = vadd.f32 %v1473, %v1633
        %v1635 = vpop.f32.mrb[0].mxu0
        %1636 = vmatprep.mubr.bf16.mxu0 %v806
        %1637 = vmatmul.mubr.bf16.gmra.mrb[0].mxu0 %v805
        %v1638 = vpop.f32.mrb[0].mxu0
        %v1639 = vadd.f32 %v1478, %v1638
        %v1640 = vpop.f32.mrb[0].mxu0
        %v1641 = vpop.f32.mrb[0].mxu0
        %v1642 = vadd.f32 %v1481, %v1641
        %v1643 = vpop.f32.mrb[0].mxu0
        %1644 = vmatprep.mubr.bf16.mxu0 %v809
        %1645 = vmatmul.mubr.bf16.gmra.mrb[0].mxu0 %v808
        %v1646 = vpop.f32.mrb[0].mxu0
        %v1647 = vadd.f32 %v1486, %v1646
        %v1648 = vpop.f32.mrb[0].mxu0
        %v1649 = vpop.f32.mrb[0].mxu0
        %v1650 = vadd.f32 %v1489, %v1649
        %v1651 = vpop.f32.mrb[0].mxu0
        %1652 = vmatprep.mubr.bf16.mxu0 %v812
        %1653 = vmatmul.mubr.bf16.gmra.mrb[0].mxu0 %v811
        %v1654 = vpop.f32.mrb[0].mxu0
        %v1655 = vadd.f32 %v1494, %v1654
        %v1656 = vpop.f32.mrb[0].mxu0
        %v1657 = vpop.f32.mrb[0].mxu0
        %v1658 = vadd.f32 %v1497, %v1657
        %v1659 = vpop.f32.mrb[0].mxu0
        %1660 = vmatprep.mubr.bf16.mxu0 %v815
        %1661 = vmatmul.mubr.bf16.gmra.mrb[0].mxu0 %v814
        %v1662 = vpop.f32.mrb[0].mxu0
        %v1663 = vadd.f32 %v1502, %v1662
        %v1664 = vpop.f32.mrb[0].mxu0
        %v1665 = vpop.f32.mrb[0].mxu0
        %v1666 = vadd.f32 %v1505, %v1665
        %v1667 = vpop.f32.mrb[0].mxu0
        %1668 = vmatprep.mubr.bf16.mxu0 %v818
        %1669 = vmatmul.mubr.bf16.gmra.mrb[0].mxu0 %v817
        %v1670 = vpop.f32.mrb[0].mxu0
        %v1671 = vadd.f32 %v1510, %v1670
        %v1672 = vpop.f32.mrb[0].mxu0
        %v1673 = vpop.f32.mrb[0].mxu0
        %v1674 = vadd.f32 %v1513, %v1673
        %v1675 = vpop.f32.mrb[0].mxu0
        %1676 = vmatprep.mubr.bf16.mxu0 %v821
        %1677 = vmatmul.mubr.bf16.gmra.mrb[0].mxu0 %v820
        %v1678 = vpop.f32.mrb[0].mxu0
        %v1679 = vadd.f32 %v1518, %v1678
        %v1680 = vpop.f32.mrb[0].mxu0
        %v1681 = vpop.f32.mrb[0].mxu0
        %v1682 = vadd.f32 %v1521, %v1681
        %v1683 = vpop.f32.mrb[0].mxu0
        %1684 = vmatprep.mubr.bf16.mxu0 %v824
        %1685 = vmatmul.mubr.bf16.gmra.mrb[0].mxu0 %v823
        %v1686 = vpop.f32.mrb[0].mxu0
        %v1687 = vadd.f32 %v1526, %v1686
        %v1688 = vpop.f32.mrb[0].mxu0
        %v1689 = vpop.f32.mrb[0].mxu0
        %v1690 = vadd.f32 %v1529, %v1689
        %v1691 = vpop.f32.mrb[0].mxu0
        %1692 = vmatprep.mubr.bf16.mxu0 %v827
        %1693 = vmatmul.mubr.bf16.gmra.mrb[0].mxu0 %v826
        %v1694 = vpop.f32.mrb[0].mxu0
        %v1695 = vadd.f32 %v1534, %v1694
        %v1696 = vpop.f32.mrb[0].mxu0
        %v1697 = vpop.f32.mrb[0].mxu0
        %v1698 = vadd.f32 %v1537, %v1697
        %v1699 = vpop.f32.mrb[0].mxu0
        %1700 = vmatprep.mubr.bf16.mxu0 %v830
        %1701 = vmatmul.mubr.bf16.gmra.mrb[0].mxu0 %v829
        %v1702 = vpop.f32.mrb[0].mxu0
        %v1703 = vadd.f32 %v1542, %v1702
        %v1704 = vpop.f32.mrb[0].mxu0
        %v1705 = vpop.f32.mrb[0].mxu0
        %v1706 = vadd.f32 %v1545, %v1705
        %v1707 = vpop.f32.mrb[0].mxu0
        %1708 = vmatprep.mubr.bf16.mxu0 %v833
        %1709 = vmatmul.mubr.bf16.gmra.mrb[0].mxu0 %v832
        %v1710 = vpop.f32.mrb[0].mxu0
        %v1711 = vadd.f32 %v1550, %v1710
        %v1712 = vpop.f32.mrb[0].mxu0
        %v1713 = vpop.f32.mrb[0].mxu0
        %v1714 = vadd.f32 %v1553, %v1713
        %v1715 = vpop.f32.mrb[0].mxu0
        %1716 = vmatprep.mubr.bf16.mxu0 %v836
        %1717 = vmatmul.mubr.bf16.gmra.mrb[0].mxu0 %v835
        %v1718 = vpop.f32.mrb[0].mxu0
        %v1719 = vadd.f32 %v1558, %v1718
        %v1720 = vpop.f32.mrb[0].mxu0
        %v1721 = vpop.f32.mrb[0].mxu0
        %v1722 = vadd.f32 %v1561, %v1721
        %v1723 = vpop.f32.mrb[0].mxu0
        %1724 = vmatprep.mubr.bf16.mxu0 %v839
        %1725 = vmatmul.mubr.bf16.gmra.mrb[0].mxu0 %v838
        %v1726 = vpop.f32.mrb[0].mxu0
        %v1727 = vadd.f32 %v1566, %v1726
        %v1728 = vpop.f32.mrb[0].mxu0
        %v1729 = vpop.f32.mrb[0].mxu0
        %v1730 = vadd.f32 %v1569, %v1729
        %v1731 = vpop.f32.mrb[0].mxu0
        %1732 = vmatprep.mubr.bf16.mxu0 %v842
        %1733 = vmatmul.mubr.bf16.gmra.mrb[0].mxu0 %v841
        %v1734 = vpop.f32.mrb[0].mxu0
        %v1735 = vadd.f32 %v1574, %v1734
        %v1736 = vpop.f32.mrb[0].mxu0
        %v1737 = vpop.f32.mrb[0].mxu0
        %v1738 = vadd.f32 %v1577, %v1737
        %v1739 = vpop.f32.mrb[0].mxu0
        %1740 = vmatprep.mubr.bf16.mxu0 %v845
        %1741 = vmatmul.mubr.bf16.gmra.mrb[0].mxu0 %v844
        %v1742 = vpop.f32.mrb[0].mxu0
        %v1743 = vadd.f32 %v1582, %v1742
        %v1744 = vpop.f32.mrb[0].mxu0
        %v1745 = vpop.f32.mrb[0].mxu0
        %v1746 = vadd.f32 %v1585, %v1745
        %v1747 = vpop.f32.mrb[0].mxu0
        %1748 = vdwg.mxu0
        %1749 = vmatprep.subr.bf16.mxu0 0
        %1750 = vmatpush1.bf16.msra.mxu0 %v1315
        %1751 = vmatprep.subr.bf16.mxu0 0
        %1752 = vmatpush1.bf16.msra.mxu0 %v1316
        %1753 = vmatprep.subr.bf16.mxu0 0
        %1754 = vmatpush1.bf16.msra.mxu0 %v1317
        %1755 = vmatprep.subr.bf16.mxu0 0
        %1756 = vmatpush1.bf16.msra.mxu0 %v1318
        %1757 = vmatprep.subr.bf16.mxu0 0
        %1758 = vmatpush1.bf16.msra.mxu0 %v1319
        %1759 = vmatprep.subr.bf16.mxu0 0
        %1760 = vmatpush1.bf16.msra.mxu0 %v1320
        %1761 = vmatprep.subr.bf16.mxu0 0
        %1762 = vmatpush1.bf16.msra.mxu0 %v1321
        %1763 = vmatprep.subr.bf16.mxu0 0
        %1764 = vmatpush1.bf16.msra.mxu0 %v1322
        %1765 = vmatprep.subr.bf16.mxu0 0
        %1766 = vmatpush1.bf16.msra.mxu0 %v1323
        %1767 = vmatprep.subr.bf16.mxu0 0
        %1768 = vmatpush1.bf16.msra.mxu0 %v1324
        %1769 = vmatprep.subr.bf16.mxu0 0
        %1770 = vmatpush1.bf16.msra.mxu0 %v1325
        %1771 = vmatprep.subr.bf16.mxu0 0
        %1772 = vmatpush1.bf16.msra.mxu0 %v1326
        %1773 = vmatprep.subr.bf16.mxu0 0
        %1774 = vmatpush1.bf16.msra.mxu0 %v1327
        %1775 = vmatprep.subr.bf16.mxu0 0
        %1776 = vmatpush1.bf16.msra.mxu0 %v1328
        %1777 = vmatprep.subr.bf16.mxu0 0
        %1778 = vmatpush1.bf16.msra.mxu0 %v1329
        %1779 = vmatprep.subr.bf16.mxu0 0
        %1780 = vmatpush1.bf16.msra.mxu0 %v1330
        %1781 = vmatprep.mubr.bf16.mxu0 %v802
        %1782 = vmatmul.mubr.bf16.gmra.mrb[0].mxu0 %v801
        %v1783 = vpop.f32.mrb[0].mxu0
        %v1784 = vadd.f32 %v1623, %v1783
        %v1785 = vpop.f32.mrb[0].mxu0
        %v1786 = vpop.f32.mrb[0].mxu0
        %v1787 = vadd.f32 %v1626, %v1786
        %v1788 = vpop.f32.mrb[0].mxu0
        %1789 = vmatprep.mubr.bf16.mxu0 %v805
        %1790 = vmatmul.mubr.bf16.gmra.mrb[0].mxu0 %v804
        %v1791 = vpop.f32.mrb[0].mxu0
        %v1792 = vadd.f32 %v1631, %v1791
        %v1793 = vpop.f32.mrb[0].mxu0
        %v1794 = vpop.f32.mrb[0].mxu0
        %v1795 = vadd.f32 %v1634, %v1794
        %v1796 = vpop.f32.mrb[0].mxu0
        %1797 = vmatprep.mubr.bf16.mxu0 %v808
        %1798 = vmatmul.mubr.bf16.gmra.mrb[0].mxu0 %v807
        %v1799 = vpop.f32.mrb[0].mxu0
        %v1800 = vadd.f32 %v1639, %v1799
        %v1801 = vpop.f32.mrb[0].mxu0
        %v1802 = vpop.f32.mrb[0].mxu0
        %v1803 = vadd.f32 %v1642, %v1802
        %v1804 = vpop.f32.mrb[0].mxu0
        %1805 = vmatprep.mubr.bf16.mxu0 %v811
        %1806 = vmatmul.mubr.bf16.gmra.mrb[0].mxu0 %v810
        %v1807 = vpop.f32.mrb[0].mxu0
        %v1808 = vadd.f32 %v1647, %v1807
        %v1809 = vpop.f32.mrb[0].mxu0
        %v1810 = vpop.f32.mrb[0].mxu0
        %v1811 = vadd.f32 %v1650, %v1810
        %v1812 = vpop.f32.mrb[0].mxu0
        %1813 = vmatprep.mubr.bf16.mxu0 %v814
        %1814 = vmatmul.mubr.bf16.gmra.mrb[0].mxu0 %v813
        %v1815 = vpop.f32.mrb[0].mxu0
        %v1816 = vadd.f32 %v1655, %v1815
        %v1817 = vpop.f32.mrb[0].mxu0
        %v1818 = vpop.f32.mrb[0].mxu0
        %v1819 = vadd.f32 %v1658, %v1818
        %v1820 = vpop.f32.mrb[0].mxu0
        %1821 = vmatprep.mubr.bf16.mxu0 %v817
        %1822 = vmatmul.mubr.bf16.gmra.mrb[0].mxu0 %v816
        %v1823 = vpop.f32.mrb[0].mxu0
        %v1824 = vadd.f32 %v1663, %v1823
        %v1825 = vpop.f32.mrb[0].mxu0
        %v1826 = vpop.f32.mrb[0].mxu0
        %v1827 = vadd.f32 %v1666, %v1826
        %v1828 = vpop.f32.mrb[0].mxu0
        %1829 = vmatprep.mubr.bf16.mxu0 %v820
        %1830 = vmatmul.mubr.bf16.gmra.mrb[0].mxu0 %v819
        %v1831 = vpop.f32.mrb[0].mxu0
        %v1832 = vadd.f32 %v1671, %v1831
        %v1833 = vpop.f32.mrb[0].mxu0
        %v1834 = vpop.f32.mrb[0].mxu0
        %v1835 = vadd.f32 %v1674, %v1834
        %v1836 = vpop.f32.mrb[0].mxu0
        %1837 = vmatprep.mubr.bf16.mxu0 %v823
        %1838 = vmatmul.mubr.bf16.gmra.mrb[0].mxu0 %v822
        %v1839 = vpop.f32.mrb[0].mxu0
        %v1840 = vadd.f32 %v1679, %v1839
        %v1841 = vpop.f32.mrb[0].mxu0
        %v1842 = vpop.f32.mrb[0].mxu0
        %v1843 = vadd.f32 %v1682, %v1842
        %v1844 = vpop.f32.mrb[0].mxu0
        %1845 = vmatprep.mubr.bf16.mxu0 %v826
        %1846 = vmatmul.mubr.bf16.gmra.mrb[0].mxu0 %v825
        %v1847 = vpop.f32.mrb[0].mxu0
        %v1848 = vadd.f32 %v1687, %v1847
        %v1849 = vpop.f32.mrb[0].mxu0
        %v1850 = vpop.f32.mrb[0].mxu0
        %v1851 = vadd.f32 %v1690, %v1850
        %v1852 = vpop.f32.mrb[0].mxu0
        %1853 = vmatprep.mubr.bf16.mxu0 %v829
        %1854 = vmatmul.mubr.bf16.gmra.mrb[0].mxu0 %v828
        %v1855 = vpop.f32.mrb[0].mxu0
        %v1856 = vadd.f32 %v1695, %v1855
        %v1857 = vpop.f32.mrb[0].mxu0
        %v1858 = vpop.f32.mrb[0].mxu0
        %v1859 = vadd.f32 %v1698, %v1858
        %v1860 = vpop.f32.mrb[0].mxu0
        %1861 = vmatprep.mubr.bf16.mxu0 %v832
        %1862 = vmatmul.mubr.bf16.gmra.mrb[0].mxu0 %v831
        %v1863 = vpop.f32.mrb[0].mxu0
        %v1864 = vadd.f32 %v1703, %v1863
        %v1865 = vpop.f32.mrb[0].mxu0
        %v1866 = vpop.f32.mrb[0].mxu0
        %v1867 = vadd.f32 %v1706, %v1866
        %v1868 = vpop.f32.mrb[0].mxu0
        %1869 = vmatprep.mubr.bf16.mxu0 %v835
        %1870 = vmatmul.mubr.bf16.gmra.mrb[0].mxu0 %v834
        %v1871 = vpop.f32.mrb[0].mxu0
        %v1872 = vadd.f32 %v1711, %v1871
        %v1873 = vpop.f32.mrb[0].mxu0
        %v1874 = vpop.f32.mrb[0].mxu0
        %v1875 = vadd.f32 %v1714, %v1874
        %v1876 = vpop.f32.mrb[0].mxu0
        %1877 = vmatprep.mubr.bf16.mxu0 %v838
        %1878 = vmatmul.mubr.bf16.gmra.mrb[0].mxu0 %v837
        %v1879 = vpop.f32.mrb[0].mxu0
        %v1880 = vadd.f32 %v1719, %v1879
        %v1881 = vpop.f32.mrb[0].mxu0
        %v1882 = vpop.f32.mrb[0].mxu0
        %v1883 = vadd.f32 %v1722, %v1882
        %v1884 = vpop.f32.mrb[0].mxu0
        %1885 = vmatprep.mubr.bf16.mxu0 %v841
        %1886 = vmatmul.mubr.bf16.gmra.mrb[0].mxu0 %v840
        %v1887 = vpop.f32.mrb[0].mxu0
        %v1888 = vadd.f32 %v1727, %v1887
        %v1889 = vpop.f32.mrb[0].mxu0
        %v1890 = vpop.f32.mrb[0].mxu0
        %v1891 = vadd.f32 %v1730, %v1890
        %v1892 = vpop.f32.mrb[0].mxu0
        %1893 = vmatprep.mubr.bf16.mxu0 %v844
        %1894 = vmatmul.mubr.bf16.gmra.mrb[0].mxu0 %v843
        %v1895 = vpop.f32.mrb[0].mxu0
        %v1896 = vadd.f32 %v1735, %v1895
        %v1897 = vpop.f32.mrb[0].mxu0
        %v1898 = vpop.f32.mrb[0].mxu0
        %v1899 = vadd.f32 %v1738, %v1898
        %v1900 = vpop.f32.mrb[0].mxu0
        %1901 = vmatprep.mubr.bf16.mxu0 %v847
        %1902 = vmatmul.mubr.bf16.gmra.mrb[0].mxu0 %v846
        %v1903 = vpop.f32.mrb[0].mxu0
        %v1904 = vadd.f32 %v1743, %v1903
        %v1905 = vpop.f32.mrb[0].mxu0
        %v1906 = vpop.f32.mrb[0].mxu0
        %v1907 = vadd.f32 %v1746, %v1906
        %v1908 = vpop.f32.mrb[0].mxu0
        %1909 = vdwg.mxu0
        %1910 = vmatprep.subr.bf16.mxu0 0
        %1911 = vmatpush1.bf16.msra.mxu0 %v1331
        %1912 = vmatprep.subr.bf16.mxu0 0
        %1913 = vmatpush1.bf16.msra.mxu0 %v1332
        %1914 = vmatprep.subr.bf16.mxu0 0
        %1915 = vmatpush1.bf16.msra.mxu0 %v1333
        %1916 = vmatprep.subr.bf16.mxu0 0
        %1917 = vmatpush1.bf16.msra.mxu0 %v1334
        %1918 = vmatprep.subr.bf16.mxu0 0
        %1919 = vmatpush1.bf16.msra.mxu0 %v1335
        %1920 = vmatprep.subr.bf16.mxu0 0
        %1921 = vmatpush1.bf16.msra.mxu0 %v1336
        %1922 = vmatprep.subr.bf16.mxu0 0
        %1923 = vmatpush1.bf16.msra.mxu0 %v1337
        %1924 = vmatprep.subr.bf16.mxu0 0
        %1925 = vmatpush1.bf16.msra.mxu0 %v1338
        %1926 = vmatprep.subr.bf16.mxu0 0
        %1927 = vmatpush1.bf16.msra.mxu0 %v1339
        %1928 = vmatprep.subr.bf16.mxu0 0
        %1929 = vmatpush1.bf16.msra.mxu0 %v1340
        %1930 = vmatprep.subr.bf16.mxu0 0
        %1931 = vmatpush1.bf16.msra.mxu0 %v1341
        %1932 = vmatprep.subr.bf16.mxu0 0
        %1933 = vmatpush1.bf16.msra.mxu0 %v1342
        %1934 = vmatprep.subr.bf16.mxu0 0
        %1935 = vmatpush1.bf16.msra.mxu0 %v1343
        %1936 = vmatprep.subr.bf16.mxu0 0
        %1937 = vmatpush1.bf16.msra.mxu0 %v1344
        %1938 = vmatprep.subr.bf16.mxu0 0
        %1939 = vmatpush1.bf16.msra.mxu0 %v1345
        %1940 = vmatprep.subr.bf16.mxu0 0
        %1941 = vmatpush1.bf16.msra.mxu0 %v1346
        %1942 = vmatprep.mubr.bf16.mxu0 %v804
        %1943 = vmatmul.mubr.bf16.gmra.mrb[0].mxu0 %v803
        %v1944 = vpop.f32.mrb[0].mxu0
        %v1945 = vadd.f32 %v1784, %v1944
        %v1946 = vpop.f32.mrb[0].mxu0
        %v1947 = vpop.f32.mrb[0].mxu0
        %v1948 = vadd.f32 %v1787, %v1947
        %v1949 = vpop.f32.mrb[0].mxu0
        %1950 = vmatprep.mubr.bf16.mxu0 %v807
        %1951 = vmatmul.mubr.bf16.gmra.mrb[0].mxu0 %v806
        %v1952 = vpop.f32.mrb[0].mxu0
        %v1953 = vadd.f32 %v1792, %v1952
        %v1954 = vpop.f32.mrb[0].mxu0
        %v1955 = vpop.f32.mrb[0].mxu0
        %v1956 = vadd.f32 %v1795, %v1955
        %v1957 = vpop.f32.mrb[0].mxu0
        %1958 = vmatprep.mubr.bf16.mxu0 %v810
        %1959 = vmatmul.mubr.bf16.gmra.mrb[0].mxu0 %v809
        %v1960 = vpop.f32.mrb[0].mxu0
        %v1961 = vadd.f32 %v1800, %v1960
        %v1962 = vpop.f32.mrb[0].mxu0
        %v1963 = vpop.f32.mrb[0].mxu0
        %v1964 = vadd.f32 %v1803, %v1963
        %v1965 = vpop.f32.mrb[0].mxu0
        %1966 = vmatprep.mubr.bf16.mxu0 %v813
        %1967 = vmatmul.mubr.bf16.gmra.mrb[0].mxu0 %v812
        %v1968 = vpop.f32.mrb[0].mxu0
        %v1969 = vadd.f32 %v1808, %v1968
        %v1970 = vpop.f32.mrb[0].mxu0
        %v1971 = vpop.f32.mrb[0].mxu0
        %v1972 = vadd.f32 %v1811, %v1971
        %v1973 = vpop.f32.mrb[0].mxu0
        %1974 = vmatprep.mubr.bf16.mxu0 %v816
        %1975 = vmatmul.mubr.bf16.gmra.mrb[0].mxu0 %v815
        %v1976 = vpop.f32.mrb[0].mxu0
        %v1977 = vadd.f32 %v1816, %v1976
        %v1978 = vpop.f32.mrb[0].mxu0
        %v1979 = vpop.f32.mrb[0].mxu0
        %v1980 = vadd.f32 %v1819, %v1979
        %v1981 = vpop.f32.mrb[0].mxu0
        %1982 = vmatprep.mubr.bf16.mxu0 %v819
        %1983 = vmatmul.mubr.bf16.gmra.mrb[0].mxu0 %v818
        %v1984 = vpop.f32.mrb[0].mxu0
        %v1985 = vadd.f32 %v1824, %v1984
        %v1986 = vpop.f32.mrb[0].mxu0
        %v1987 = vpop.f32.mrb[0].mxu0
        %v1988 = vadd.f32 %v1827, %v1987
        %v1989 = vpop.f32.mrb[0].mxu0
        %1990 = vmatprep.mubr.bf16.mxu0 %v822
        %1991 = vmatmul.mubr.bf16.gmra.mrb[0].mxu0 %v821
        %v1992 = vpop.f32.mrb[0].mxu0
        %v1993 = vadd.f32 %v1832, %v1992
        %v1994 = vpop.f32.mrb[0].mxu0
        %v1995 = vpop.f32.mrb[0].mxu0
        %v1996 = vadd.f32 %v1835, %v1995
        %v1997 = vpop.f32.mrb[0].mxu0
        %1998 = vmatprep.mubr.bf16.mxu0 %v825
        %1999 = vmatmul.mubr.bf16.gmra.mrb[0].mxu0 %v824
        %v2000 = vpop.f32.mrb[0].mxu0
        %v2001 = vadd.f32 %v1840, %v2000
        %v2002 = vpop.f32.mrb[0].mxu0
        %v2003 = vpop.f32.mrb[0].mxu0
        %v2004 = vadd.f32 %v1843, %v2003
        %v2005 = vpop.f32.mrb[0].mxu0
        %2006 = vmatprep.mubr.bf16.mxu0 %v828
        %2007 = vmatmul.mubr.bf16.gmra.mrb[0].mxu0 %v827
        %v2008 = vpop.f32.mrb[0].mxu0
        %v2009 = vadd.f32 %v1848, %v2008
        %v2010 = vpop.f32.mrb[0].mxu0
        %v2011 = vpop.f32.mrb[0].mxu0
        %v2012 = vadd.f32 %v1851, %v2011
        %v2013 = vpop.f32.mrb[0].mxu0
        %2014 = vmatprep.mubr.bf16.mxu0 %v831
        %2015 = vmatmul.mubr.bf16.gmra.mrb[0].mxu0 %v830
        %v2016 = vpop.f32.mrb[0].mxu0
        %v2017 = vadd.f32 %v1856, %v2016
        %v2018 = vpop.f32.mrb[0].mxu0
        %v2019 = vpop.f32.mrb[0].mxu0
        %v2020 = vadd.f32 %v1859, %v2019
        %v2021 = vpop.f32.mrb[0].mxu0
        %2022 = vmatprep.mubr.bf16.mxu0 %v834
        %2023 = vmatmul.mubr.bf16.gmra.mrb[0].mxu0 %v833
        %v2024 = vpop.f32.mrb[0].mxu0
        %v2025 = vadd.f32 %v1864, %v2024
        %v2026 = vpop.f32.mrb[0].mxu0
        %v2027 = vpop.f32.mrb[0].mxu0
        %v2028 = vadd.f32 %v1867, %v2027
        %v2029 = vpop.f32.mrb[0].mxu0
        %2030 = vmatprep.mubr.bf16.mxu0 %v837
        %2031 = vmatmul.mubr.bf16.gmra.mrb[0].mxu0 %v836
        %v2032 = vpop.f32.mrb[0].mxu0
        %v2033 = vadd.f32 %v1872, %v2032
        %v2034 = vpop.f32.mrb[0].mxu0
        %v2035 = vpop.f32.mrb[0].mxu0
        %v2036 = vadd.f32 %v1875, %v2035
        %v2037 = vpop.f32.mrb[0].mxu0
        %2038 = vmatprep.mubr.bf16.mxu0 %v840
        %2039 = vmatmul.mubr.bf16.gmra.mrb[0].mxu0 %v839
        %v2040 = vpop.f32.mrb[0].mxu0
        %v2041 = vadd.f32 %v1880, %v2040
        %v2042 = vpop.f32.mrb[0].mxu0
        %v2043 = vpop.f32.mrb[0].mxu0
        %v2044 = vadd.f32 %v1883, %v2043
        %v2045 = vpop.f32.mrb[0].mxu0
        %2046 = vmatprep.mubr.bf16.mxu0 %v843
        %2047 = vmatmul.mubr.bf16.gmra.mrb[0].mxu0 %v842
        %v2048 = vpop.f32.mrb[0].mxu0
        %v2049 = vadd.f32 %v1888, %v2048
        %v2050 = vpop.f32.mrb[0].mxu0
        %v2051 = vpop.f32.mrb[0].mxu0
        %v2052 = vadd.f32 %v1891, %v2051
        %v2053 = vpop.f32.mrb[0].mxu0
        %2054 = vmatprep.mubr.bf16.mxu0 %v846
        %2055 = vmatmul.mubr.bf16.gmra.mrb[0].mxu0 %v845
        %v2056 = vpop.f32.mrb[0].mxu0
        %v2057 = vadd.f32 %v1896, %v2056
        %v2058 = vpop.f32.mrb[0].mxu0
        %v2059 = vpop.f32.mrb[0].mxu0
        %v2060 = vadd.f32 %v1899, %v2059
        %v2061 = vpop.f32.mrb[0].mxu0
        %2062 = vmatprep.mubr.bf16.mxu0 %v849
        %2063 = vmatmul.mubr.bf16.gmra.mrb[0].mxu0 %v848
        %v2064 = vpop.f32.mrb[0].mxu0
        %v2065 = vadd.f32 %v1904, %v2064
        %v2066 = vpop.f32.mrb[0].mxu0
        %v2067 = vpop.f32.mrb[0].mxu0
        %v2068 = vadd.f32 %v1907, %v2067
        %v2069 = vpop.f32.mrb[0].mxu0
        %2070 = vdwg.mxu0
        %2071 = vmatprep.subr.bf16.mxu0 0
        %2072 = vmatpush1.bf16.msra.mxu0 %v1347
        %2073 = vmatprep.subr.bf16.mxu0 0
        %2074 = vmatpush1.bf16.msra.mxu0 %v1348
        %2075 = vmatprep.subr.bf16.mxu0 0
        %2076 = vmatpush1.bf16.msra.mxu0 %v1349
        %2077 = vmatprep.subr.bf16.mxu0 0
        %2078 = vmatpush1.bf16.msra.mxu0 %v1350
        %2079 = vmatprep.subr.bf16.mxu0 0
        %2080 = vmatpush1.bf16.msra.mxu0 %v1351
        %2081 = vmatprep.subr.bf16.mxu0 0
        %2082 = vmatpush1.bf16.msra.mxu0 %v1352
        %2083 = vmatprep.subr.bf16.mxu0 0
        %2084 = vmatpush1.bf16.msra.mxu0 %v1353
        %2085 = vmatprep.subr.bf16.mxu0 0
        %2086 = vmatpush1.bf16.msra.mxu0 %v1354
        %2087 = vmatprep.subr.bf16.mxu0 0
        %2088 = vmatpush1.bf16.msra.mxu0 0
        %2089 = vmatprep.subr.bf16.mxu0 0
        %2090 = vmatpush1.bf16.msra.mxu0 0
        %2091 = vmatprep.subr.bf16.mxu0 0
        %2092 = vmatpush1.bf16.msra.mxu0 0
        %2093 = vmatprep.subr.bf16.mxu0 0
        %2094 = vmatpush1.bf16.msra.mxu0 0
        %2095 = vmatprep.subr.bf16.mxu0 0
        %2096 = vmatpush1.bf16.msra.mxu0 0
        %2097 = vmatprep.subr.bf16.mxu0 0
        %2098 = vmatpush1.bf16.msra.mxu0 0
        %2099 = vmatprep.subr.bf16.mxu0 0
        %2100 = vmatpush1.bf16.msra.mxu0 0
        %2101 = vmatprep.subr.bf16.mxu0 0
        %2102 = vmatpush1.bf16.msra.mxu0 0
        %2103 = vmatprep.mubr.bf16.mxu0 0
        %2104 = vmatmul.mubr.bf16.gmra.mrb[0].mxu0 %v805
        %v2105 = vpop.f32.mrb[0].mxu0
        %v2106 = vadd.f32 %v1945, %v2105
        %v2107 = vpop.f32.mrb[0].mxu0
        %v2108 = vpop.f32.mrb[0].mxu0
        %v2109 = vadd.f32 %v1948, %v2108
        %v2110 = vpop.f32.mrb[0].mxu0
        %2111 = vmatprep.mubr.bf16.mxu0 0
        %2112 = vmatmul.mubr.bf16.gmra.mrb[0].mxu0 %v808
        %v2113 = vpop.f32.mrb[0].mxu0
        %v2114 = vadd.f32 %v1953, %v2113
        %v2115 = vpop.f32.mrb[0].mxu0
        %v2116 = vpop.f32.mrb[0].mxu0
        %v2117 = vadd.f32 %v1956, %v2116
        %v2118 = vpop.f32.mrb[0].mxu0
        %2119 = vmatprep.mubr.bf16.mxu0 0
        %2120 = vmatmul.mubr.bf16.gmra.mrb[0].mxu0 %v811
        %v2121 = vpop.f32.mrb[0].mxu0
        %v2122 = vadd.f32 %v1961, %v2121
        %v2123 = vpop.f32.mrb[0].mxu0
        %v2124 = vpop.f32.mrb[0].mxu0
        %v2125 = vadd.f32 %v1964, %v2124
        %v2126 = vpop.f32.mrb[0].mxu0
        %2127 = vmatprep.mubr.bf16.mxu0 0
        %2128 = vmatmul.mubr.bf16.gmra.mrb[0].mxu0 %v814
        %v2129 = vpop.f32.mrb[0].mxu0
        %v2130 = vadd.f32 %v1969, %v2129
        %v2131 = vpop.f32.mrb[0].mxu0
        %v2132 = vpop.f32.mrb[0].mxu0
        %v2133 = vadd.f32 %v1972, %v2132
        %v2134 = vpop.f32.mrb[0].mxu0
        %2135 = vmatprep.mubr.bf16.mxu0 0
        %2136 = vmatmul.mubr.bf16.gmra.mrb[0].mxu0 %v817
        %v2137 = vpop.f32.mrb[0].mxu0
        %v2138 = vadd.f32 %v1977, %v2137
        %v2139 = vpop.f32.mrb[0].mxu0
        %v2140 = vpop.f32.mrb[0].mxu0
        %v2141 = vadd.f32 %v1980, %v2140
        %v2142 = vpop.f32.mrb[0].mxu0
        %2143 = vmatprep.mubr.bf16.mxu0 0
        %2144 = vmatmul.mubr.bf16.gmra.mrb[0].mxu0 %v820
        %v2145 = vpop.f32.mrb[0].mxu0
        %v2146 = vadd.f32 %v1985, %v2145
        %v2147 = vpop.f32.mrb[0].mxu0
        %v2148 = vpop.f32.mrb[0].mxu0
        %v2149 = vadd.f32 %v1988, %v2148
        %v2150 = vpop.f32.mrb[0].mxu0
        %2151 = vmatprep.mubr.bf16.mxu0 0
        %2152 = vmatmul.mubr.bf16.gmra.mrb[0].mxu0 %v823
        %v2153 = vpop.f32.mrb[0].mxu0
        %v2154 = vadd.f32 %v1993, %v2153
        %v2155 = vpop.f32.mrb[0].mxu0
        %v2156 = vpop.f32.mrb[0].mxu0
        %v2157 = vadd.f32 %v1996, %v2156
        %v2158 = vpop.f32.mrb[0].mxu0
        %2159 = vmatprep.mubr.bf16.mxu0 0
        %2160 = vmatmul.mubr.bf16.gmra.mrb[0].mxu0 %v826
        %v2161 = vpop.f32.mrb[0].mxu0
        %v2162 = vadd.f32 %v2001, %v2161
        %v2163 = vpop.f32.mrb[0].mxu0
        %v2164 = vpop.f32.mrb[0].mxu0
        %v2165 = vadd.f32 %v2004, %v2164
        %v2166 = vpop.f32.mrb[0].mxu0
        %2167 = vmatprep.mubr.bf16.mxu0 0
        %2168 = vmatmul.mubr.bf16.gmra.mrb[0].mxu0 %v829
        %v2169 = vpop.f32.mrb[0].mxu0
        %v2170 = vadd.f32 %v2009, %v2169
        %v2171 = vpop.f32.mrb[0].mxu0
        %v2172 = vpop.f32.mrb[0].mxu0
        %v2173 = vadd.f32 %v2012, %v2172
        %v2174 = vpop.f32.mrb[0].mxu0
        %2175 = vmatprep.mubr.bf16.mxu0 0
        %2176 = vmatmul.mubr.bf16.gmra.mrb[0].mxu0 %v832
        %v2177 = vpop.f32.mrb[0].mxu0
        %v2178 = vadd.f32 %v2017, %v2177
        %v2179 = vpop.f32.mrb[0].mxu0
        %v2180 = vpop.f32.mrb[0].mxu0
        %v2181 = vadd.f32 %v2020, %v2180
        %v2182 = vpop.f32.mrb[0].mxu0
        %2183 = vmatprep.mubr.bf16.mxu0 0
        %2184 = vmatmul.mubr.bf16.gmra.mrb[0].mxu0 %v835
        %v2185 = vpop.f32.mrb[0].mxu0
        %v2186 = vadd.f32 %v2025, %v2185
        %v2187 = vpop.f32.mrb[0].mxu0
        %v2188 = vpop.f32.mrb[0].mxu0
        %v2189 = vadd.f32 %v2028, %v2188
        %v2190 = vpop.f32.mrb[0].mxu0
        %2191 = vmatprep.mubr.bf16.mxu0 0
        %2192 = vmatmul.mubr.bf16.gmra.mrb[0].mxu0 %v838
        %v2193 = vpop.f32.mrb[0].mxu0
        %v2194 = vadd.f32 %v2033, %v2193
        %v2195 = vpop.f32.mrb[0].mxu0
        %v2196 = vpop.f32.mrb[0].mxu0
        %v2197 = vadd.f32 %v2036, %v2196
        %v2198 = vpop.f32.mrb[0].mxu0
        %2199 = vmatprep.mubr.bf16.mxu0 0
        %2200 = vmatmul.mubr.bf16.gmra.mrb[0].mxu0 %v841
        %v2201 = vpop.f32.mrb[0].mxu0
        %v2202 = vadd.f32 %v2041, %v2201
        %v2203 = vpop.f32.mrb[0].mxu0
        %v2204 = vpop.f32.mrb[0].mxu0
        %v2205 = vadd.f32 %v2044, %v2204
        %v2206 = vpop.f32.mrb[0].mxu0
        %2207 = vmatprep.mubr.bf16.mxu0 0
        %2208 = vmatmul.mubr.bf16.gmra.mrb[0].mxu0 %v844
        %v2209 = vpop.f32.mrb[0].mxu0
        %v2210 = vadd.f32 %v2049, %v2209
        %v2211 = vpop.f32.mrb[0].mxu0
        %v2212 = vpop.f32.mrb[0].mxu0
        %v2213 = vadd.f32 %v2052, %v2212
        %v2214 = vpop.f32.mrb[0].mxu0
        %2215 = vmatprep.mubr.bf16.mxu0 0
        %2216 = vmatmul.mubr.bf16.gmra.mrb[0].mxu0 %v847
        %v2217 = vpop.f32.mrb[0].mxu0
        %v2218 = vadd.f32 %v2057, %v2217
        %v2219 = vpop.f32.mrb[0].mxu0
        %v2220 = vpop.f32.mrb[0].mxu0
        %v2221 = vadd.f32 %v2060, %v2220
        %v2222 = vpop.f32.mrb[0].mxu0
        %2223 = vmatprep.mubr.bf16.mxu0 0
        %2224 = vmatmul.mubr.bf16.gmra.mrb[0].mxu0 %v850
        %v2225 = vpop.f32.mrb[0].mxu0
        %v2226 = vadd.f32 %v2065, %v2225
        %v2227 = vpop.f32.mrb[0].mxu0
        %v2228 = vpop.f32.mrb[0].mxu0
        %v2229 = vadd.f32 %v2068, %v2228
        %v2230 = vpop.f32.mrb[0].mxu0
        %2231 = vdwg.mxu0
        %v2232 = vld [vmem:[%s2] sm:$0x1]
        %v2234 = vlaneseq
        %v2235 = vshrl.u32 %v2234, 7
        %v2236 = vsub.s32 0, %v2235
        %v2237 = vrot.slane %v2232, %v2236
        %v2239 = vmul.f32 %v2106, %v2237
        %v2240 = vmul.f32 %v2109, %v2237
        %v2241 = vmul.f32 %v2114, %v2237
        %v2242 = vmul.f32 %v2117, %v2237
        %v2243 = vmul.f32 %v2122, %v2237
        %v2244 = vmul.f32 %v2125, %v2237
        %v2245 = vmul.f32 %v2130, %v2237
        %v2246 = vmul.f32 %v2133, %v2237
        %v2247 = vmul.f32 %v2138, %v2237
        %v2248 = vmul.f32 %v2141, %v2237
        %v2249 = vmul.f32 %v2146, %v2237
        %v2250 = vmul.f32 %v2149, %v2237
        %v2251 = vmul.f32 %v2154, %v2237
        %v2252 = vmul.f32 %v2157, %v2237
        %v2253 = vmul.f32 %v2162, %v2237
        %v2254 = vmul.f32 %v2165, %v2237
        %v2255 = vmul.f32 %v2170, %v2237
        %v2256 = vmul.f32 %v2173, %v2237
        %v2257 = vmul.f32 %v2178, %v2237
        %v2258 = vmul.f32 %v2181, %v2237
        %v2259 = vmul.f32 %v2186, %v2237
        %v2260 = vmul.f32 %v2189, %v2237
        %v2261 = vmul.f32 %v2194, %v2237
        %v2262 = vmul.f32 %v2197, %v2237
        %v2263 = vmul.f32 %v2202, %v2237
        %v2264 = vmul.f32 %v2205, %v2237
        %v2265 = vmul.f32 %v2210, %v2237
        %v2266 = vmul.f32 %v2213, %v2237
        %v2267 = vmul.f32 %v2218, %v2237
        %v2268 = vmul.f32 %v2221, %v2237
        %v2269 = vmul.f32 %v2226, %v2237
        %v2270 = vmul.f32 %v2229, %v2237
        %v2271 = vld [vmem:[%s3] sm:$0x1]
        %v2273 = vlaneseq
        %v2274 = vshrl.u32 %v2273, 7
        %v2275 = vsub.s32 0, %v2274
        %v2276 = vrot.slane %v2271, %v2275
        %v2278 = vadd.f32 %v2239, %v2276
        %v2279 = vadd.f32 %v2240, %v2276
        %v2280 = vadd.f32 %v2241, %v2276
        %v2281 = vadd.f32 %v2242, %v2276
        %v2282 = vadd.f32 %v2243, %v2276
        %v2283 = vadd.f32 %v2244, %v2276
        %v2284 = vadd.f32 %v2245, %v2276
        %v2285 = vadd.f32 %v2246, %v2276
        %v2286 = vadd.f32 %v2247, %v2276
        %v2287 = vadd.f32 %v2248, %v2276
        %v2288 = vadd.f32 %v2249, %v2276
        %v2289 = vadd.f32 %v2250, %v2276
        %v2290 = vadd.f32 %v2251, %v2276
        %v2291 = vadd.f32 %v2252, %v2276
        %v2292 = vadd.f32 %v2253, %v2276
        %v2293 = vadd.f32 %v2254, %v2276
        %v2294 = vadd.f32 %v2255, %v2276
        %v2295 = vadd.f32 %v2256, %v2276
        %v2296 = vadd.f32 %v2257, %v2276
        %v2297 = vadd.f32 %v2258, %v2276
        %v2298 = vadd.f32 %v2259, %v2276
        %v2299 = vadd.f32 %v2260, %v2276
        %v2300 = vadd.f32 %v2261, %v2276
        %v2301 = vadd.f32 %v2262, %v2276
        %v2302 = vadd.f32 %v2263, %v2276
        %v2303 = vadd.f32 %v2264, %v2276
        %v2304 = vadd.f32 %v2265, %v2276
        %v2305 = vadd.f32 %v2266, %v2276
        %v2306 = vadd.f32 %v2267, %v2276
        %v2307 = vadd.f32 %v2268, %v2276
        %v2308 = vadd.f32 %v2269, %v2276
        %v2309 = vadd.f32 %v2270, %v2276
        %v2310 = vmax.f32 %v2278, 0.0
        %v2311 = vmax.f32 %v2279, 0.0
        %v2312 = vmax.f32 %v2280, 0.0
        %v2313 = vmax.f32 %v2281, 0.0
        %v2314 = vmax.f32 %v2282, 0.0
        %v2315 = vmax.f32 %v2283, 0.0
        %v2316 = vmax.f32 %v2284, 0.0
        %v2317 = vmax.f32 %v2285, 0.0
        %v2318 = vmax.f32 %v2286, 0.0
        %v2319 = vmax.f32 %v2287, 0.0
        %v2320 = vmax.f32 %v2288, 0.0
        %v2321 = vmax.f32 %v2289, 0.0
        %v2322 = vmax.f32 %v2290, 0.0
        %v2323 = vmax.f32 %v2291, 0.0
        %v2324 = vmax.f32 %v2292, 0.0
        %v2325 = vmax.f32 %v2293, 0.0
        %v2326 = vmax.f32 %v2294, 0.0
        %v2327 = vmax.f32 %v2295, 0.0
        %v2328 = vmax.f32 %v2296, 0.0
        %v2329 = vmax.f32 %v2297, 0.0
        %v2330 = vmax.f32 %v2298, 0.0
        %v2331 = vmax.f32 %v2299, 0.0
        %v2332 = vmax.f32 %v2300, 0.0
        %v2333 = vmax.f32 %v2301, 0.0
        %v2334 = vmax.f32 %v2302, 0.0
        %v2335 = vmax.f32 %v2303, 0.0
        %v2336 = vmax.f32 %v2304, 0.0
        %v2337 = vmax.f32 %v2305, 0.0
        %v2338 = vmax.f32 %v2306, 0.0
        %v2339 = vmax.f32 %v2307, 0.0
        %v2340 = vmax.f32 %v2308, 0.0
        %v2341 = vmax.f32 %v2309, 0.0
        %2342 = vst [vmem:[%s402 + $0x1] sm:$0xff] %v2310
        %2343 = vst [vmem:[%s402 + $0x9] sm:$0xff] %v2311
        %2344 = vst [vmem:[%s402 + $0x19] sm:$0xff] %v2312
        %2345 = vst [vmem:[%s402 + $0x21] sm:$0xff] %v2313
        %2346 = vst [vmem:[%s402 + $0x31] sm:$0xff] %v2314
        %2347 = vst [vmem:[%s402 + $0x39] sm:$0xff] %v2315
        %2348 = vst [vmem:[%s402 + $0x49] sm:$0xff] %v2316
        %2349 = vst [vmem:[%s402 + $0x51] sm:$0xff] %v2317
        %2350 = vst [vmem:[%s402 + $0x61] sm:$0xff] %v2318
        %2351 = vst [vmem:[%s402 + $0x69] sm:$0xff] %v2319
        %2352 = vst [vmem:[%s402 + $0x79] sm:$0xff] %v2320
        %2353 = vst [vmem:[%s402 + $0x81] sm:$0xff] %v2321
        %2354 = vst [vmem:[%s402 + $0x91] sm:$0xff] %v2322
        %2355 = vst [vmem:[%s402 + $0x99] sm:$0xff] %v2323
        %2356 = vst [vmem:[%s402 + $0xa9] sm:$0xff] %v2324
        %2357 = vst [vmem:[%s402 + $0xb1] sm:$0xff] %v2325
        %2358 = vst [vmem:[%s402 + $0xc1] sm:$0xff] %v2326
        %2359 = vst [vmem:[%s402 + $0xc9] sm:$0xff] %v2327
        %2360 = vst [vmem:[%s402 + $0xd9] sm:$0xff] %v2328
        %2361 = vst [vmem:[%s402 + $0xe1] sm:$0xff] %v2329
        %2362 = vst [vmem:[%s402 + $0xf1] sm:$0xff] %v2330
        %2363 = vst [vmem:[%s402 + $0xf9] sm:$0xff] %v2331
        %2364 = vst [vmem:[%s402 + $0x109] sm:$0xff] %v2332
        %2365 = vst [vmem:[%s402 + $0x111] sm:$0xff] %v2333
        %2366 = vst [vmem:[%s402 + $0x121] sm:$0xff] %v2334
        %2367 = vst [vmem:[%s402 + $0x129] sm:$0xff] %v2335
        %2368 = vst [vmem:[%s402 + $0x139] sm:$0xff] %v2336
        %2369 = vst [vmem:[%s402 + $0x141] sm:$0xff] %v2337
        %2370 = vst [vmem:[%s402 + $0x151] sm:$0xff] %v2338
        %2371 = vst [vmem:[%s402 + $0x159] sm:$0xff] %v2339
        %2372 = vst [vmem:[%s402 + $0x169] sm:$0xff] %v2340
        %2373 = vst [vmem:[%s402 + $0x171] sm:$0xff] %v2341
        %v2374 = vld [vmem:[#allocation2] sm:$0xff]
        %v2375 = vld [vmem:[#allocation2 + $0x8] sm:$0xff]
        %v2376 = vld [vmem:[#allocation2 + $0x10] sm:$0x3]
        %v2377 = vld [vmem:[#allocation2 + $0x18] sm:$0xff]
        %v2378 = vld [vmem:[#allocation2 + $0x20] sm:$0xff]
        %v2379 = vld [vmem:[#allocation2 + $0x28] sm:$0x3]
        %v2380 = vld [vmem:[#allocation2 + $0x30] sm:$0xff]
        %v2381 = vld [vmem:[#allocation2 + $0x38] sm:$0xff]
        %v2382 = vld [vmem:[#allocation2 + $0x40] sm:$0x3]
        %v2383 = vld [vmem:[#allocation2 + $0x48] sm:$0xff]
        %v2384 = vld [vmem:[#allocation2 + $0x50] sm:$0xff]
        %v2385 = vld [vmem:[#allocation2 + $0x58] sm:$0x3]
        %v2386 = vld [vmem:[#allocation2 + $0x60] sm:$0xff]
        %v2387 = vld [vmem:[#allocation2 + $0x68] sm:$0xff]
        %v2388 = vld [vmem:[#allocation2 + $0x70] sm:$0x3]
        %v2389 = vld [vmem:[#allocation2 + $0x78] sm:$0xff]
        %v2390 = vld [vmem:[#allocation2 + $0x80] sm:$0xff]
        %v2391 = vld [vmem:[#allocation2 + $0x88] sm:$0x3]
        %v2392 = vld [vmem:[#allocation2 + $0x90] sm:$0xff]
        %v2393 = vld [vmem:[#allocation2 + $0x98] sm:$0xff]
        %v2394 = vld [vmem:[#allocation2 + $0xa0] sm:$0x3]
        %v2395 = vld [vmem:[#allocation2 + $0xa8] sm:$0xff]
        %v2396 = vld [vmem:[#allocation2 + $0xb0] sm:$0xff]
        %v2397 = vld [vmem:[#allocation2 + $0xb8] sm:$0x3]
        %v2398 = vld [vmem:[#allocation2 + $0xc0] sm:$0xff]
        %v2399 = vld [vmem:[#allocation2 + $0xc8] sm:$0xff]
        %v2400 = vld [vmem:[#allocation2 + $0xd0] sm:$0x3]
        %v2401 = vld [vmem:[#allocation2 + $0xd8] sm:$0xff]
        %v2402 = vld [vmem:[#allocation2 + $0xe0] sm:$0xff]
        %v2403 = vld [vmem:[#allocation2 + $0xe8] sm:$0x3]
        %v2404 = vld [vmem:[#allocation2 + $0xf0] sm:$0xff]
        %v2405 = vld [vmem:[#allocation2 + $0xf8] sm:$0xff]
        %v2406 = vld [vmem:[#allocation2 + $0x100] sm:$0x3]
        %v2407 = vld [vmem:[#allocation2 + $0x108] sm:$0xff]
        %v2408 = vld [vmem:[#allocation2 + $0x110] sm:$0xff]
        %v2409 = vld [vmem:[#allocation2 + $0x118] sm:$0x3]
        %v2410 = vld [vmem:[#allocation2 + $0x120] sm:$0xff]
        %v2411 = vld [vmem:[#allocation2 + $0x128] sm:$0xff]
        %v2412 = vld [vmem:[#allocation2 + $0x130] sm:$0x3]
        %v2413 = vld [vmem:[#allocation2 + $0x138] sm:$0xff]
        %v2414 = vld [vmem:[#allocation2 + $0x140] sm:$0xff]
        %v2415 = vld [vmem:[#allocation2 + $0x148] sm:$0x3]
        %v2416 = vld [vmem:[#allocation2 + $0x150] sm:$0xff]
        %v2417 = vld [vmem:[#allocation2 + $0x158] sm:$0xff]
        %v2418 = vld [vmem:[#allocation2 + $0x160] sm:$0x3]
        %v2419 = vld [vmem:[#allocation2 + $0x168] sm:$0xff]
        %v2420 = vld [vmem:[#allocation2 + $0x170] sm:$0xff]
        %v2421 = vld [vmem:[#allocation2 + $0x178] sm:$0x3]
        %v2422 = vld [vmem:[#allocation2 + $0x180] sm:$0xff]
        %v2423 = vld [vmem:[#allocation2 + $0x188] sm:$0xff]
        %v2424 = vld [vmem:[#allocation2 + $0x190] sm:$0x3]
        %v2425 = vld [vmem:[#allocation2 + $0x198] sm:$0xff]
        %v2426 = vld [vmem:[#allocation2 + $0x1a0] sm:$0xff]
        %v2427 = vld [vmem:[#allocation2 + $0x1a8] sm:$0x3]
        %v2476 = vrot.slane %v2374, 1
        %v2477 = vrot.slane %v2375, 1
        %v2478 = vsel %vm537, %v2476, %v2477
        %v2479 = vrot.slane %v2376, 1
        %v2480 = vsel %vm537, %v2477, %v2479
        %v2481 = vrot.slane %v2377, 1
        %v2482 = vrot.slane %v2378, 1
        %v2483 = vsel %vm537, %v2481, %v2482
        %v2484 = vrot.slane %v2379, 1
        %v2485 = vsel %vm537, %v2482, %v2484
        %v2486 = vrot.slane %v2380, 1
        %v2487 = vrot.slane %v2381, 1
        %v2488 = vsel %vm537, %v2486, %v2487
        %v2489 = vrot.slane %v2382, 1
        %v2490 = vsel %vm537, %v2487, %v2489
        %v2491 = vrot.slane %v2383, 1
        %v2492 = vrot.slane %v2384, 1
        %v2493 = vsel %vm537, %v2491, %v2492
        %v2494 = vrot.slane %v2385, 1
        %v2495 = vsel %vm537, %v2492, %v2494
        %v2496 = vrot.slane %v2386, 1
        %v2497 = vrot.slane %v2387, 1
        %v2498 = vsel %vm537, %v2496, %v2497
        %v2499 = vrot.slane %v2388, 1
        %v2500 = vsel %vm537, %v2497, %v2499
        %v2501 = vrot.slane %v2389, 1
        %v2502 = vrot.slane %v2390, 1
        %v2503 = vsel %vm537, %v2501, %v2502
        %v2504 = vrot.slane %v2391, 1
        %v2505 = vsel %vm537, %v2502, %v2504
        %v2506 = vrot.slane %v2392, 1
        %v2507 = vrot.slane %v2393, 1
        %v2508 = vsel %vm537, %v2506, %v2507
        %v2509 = vrot.slane %v2394, 1
        %v2510 = vsel %vm537, %v2507, %v2509
        %v2511 = vrot.slane %v2395, 1
        %v2512 = vrot.slane %v2396, 1
        %v2513 = vsel %vm537, %v2511, %v2512
        %v2514 = vrot.slane %v2397, 1
        %v2515 = vsel %vm537, %v2512, %v2514
        %v2516 = vrot.slane %v2398, 1
        %v2517 = vrot.slane %v2399, 1
        %v2518 = vsel %vm537, %v2516, %v2517
        %v2519 = vrot.slane %v2400, 1
        %v2520 = vsel %vm537, %v2517, %v2519
        %v2521 = vrot.slane %v2401, 1
        %v2522 = vrot.slane %v2402, 1
        %v2523 = vsel %vm537, %v2521, %v2522
        %v2524 = vrot.slane %v2403, 1
        %v2525 = vsel %vm537, %v2522, %v2524
        %v2526 = vrot.slane %v2404, 1
        %v2527 = vrot.slane %v2405, 1
        %v2528 = vsel %vm537, %v2526, %v2527
        %v2529 = vrot.slane %v2406, 1
        %v2530 = vsel %vm537, %v2527, %v2529
        %v2531 = vrot.slane %v2407, 1
        %v2532 = vrot.slane %v2408, 1
        %v2533 = vsel %vm537, %v2531, %v2532
        %v2534 = vrot.slane %v2409, 1
        %v2535 = vsel %vm537, %v2532, %v2534
        %v2536 = vrot.slane %v2410, 1
        %v2537 = vrot.slane %v2411, 1
        %v2538 = vsel %vm537, %v2536, %v2537
        %v2539 = vrot.slane %v2412, 1
        %v2540 = vsel %vm537, %v2537, %v2539
        %v2541 = vrot.slane %v2413, 1
        %v2542 = vrot.slane %v2414, 1
        %v2543 = vsel %vm537, %v2541, %v2542
        %v2544 = vrot.slane %v2415, 1
        %v2545 = vsel %vm537, %v2542, %v2544
        %v2546 = vrot.slane %v2416, 1
        %v2547 = vrot.slane %v2417, 1
        %v2548 = vsel %vm537, %v2546, %v2547
        %v2549 = vrot.slane %v2418, 1
        %v2550 = vsel %vm537, %v2547, %v2549
        %v2551 = vrot.slane %v2419, 1
        %v2552 = vrot.slane %v2420, 1
        %v2553 = vsel %vm537, %v2551, %v2552
        %v2554 = vrot.slane %v2421, 1
        %v2555 = vsel %vm537, %v2552, %v2554
        %v2588 = vrot.slane %v2374, 2
        %v2589 = vrot.slane %v2375, 2
        %v2590 = vsel %vm650, %v2588, %v2589
        %v2591 = vrot.slane %v2376, 2
        %v2592 = vsel %vm650, %v2589, %v2591
        %v2593 = vrot.slane %v2377, 2
        %v2594 = vrot.slane %v2378, 2
        %v2595 = vsel %vm650, %v2593, %v2594
        %v2596 = vrot.slane %v2379, 2
        %v2597 = vsel %vm650, %v2594, %v2596
        %v2598 = vrot.slane %v2380, 2
        %v2599 = vrot.slane %v2381, 2
        %v2600 = vsel %vm650, %v2598, %v2599
        %v2601 = vrot.slane %v2382, 2
        %v2602 = vsel %vm650, %v2599, %v2601
        %v2603 = vrot.slane %v2383, 2
        %v2604 = vrot.slane %v2384, 2
        %v2605 = vsel %vm650, %v2603, %v2604
        %v2606 = vrot.slane %v2385, 2
        %v2607 = vsel %vm650, %v2604, %v2606
        %v2608 = vrot.slane %v2386, 2
        %v2609 = vrot.slane %v2387, 2
        %v2610 = vsel %vm650, %v2608, %v2609
        %v2611 = vrot.slane %v2388, 2
        %v2612 = vsel %vm650, %v2609, %v2611
        %v2613 = vrot.slane %v2389, 2
        %v2614 = vrot.slane %v2390, 2
        %v2615 = vsel %vm650, %v2613, %v2614
        %v2616 = vrot.slane %v2391, 2
        %v2617 = vsel %vm650, %v2614, %v2616
        %v2618 = vrot.slane %v2392, 2
        %v2619 = vrot.slane %v2393, 2
        %v2620 = vsel %vm650, %v2618, %v2619
        %v2621 = vrot.slane %v2394, 2
        %v2622 = vsel %vm650, %v2619, %v2621
        %v2623 = vrot.slane %v2395, 2
        %v2624 = vrot.slane %v2396, 2
        %v2625 = vsel %vm650, %v2623, %v2624
        %v2626 = vrot.slane %v2397, 2
        %v2627 = vsel %vm650, %v2624, %v2626
        %v2628 = vrot.slane %v2398, 2
        %v2629 = vrot.slane %v2399, 2
        %v2630 = vsel %vm650, %v2628, %v2629
        %v2631 = vrot.slane %v2400, 2
        %v2632 = vsel %vm650, %v2629, %v2631
        %v2633 = vrot.slane %v2401, 2
        %v2634 = vrot.slane %v2402, 2
        %v2635 = vsel %vm650, %v2633, %v2634
        %v2636 = vrot.slane %v2403, 2
        %v2637 = vsel %vm650, %v2634, %v2636
        %v2638 = vrot.slane %v2404, 2
        %v2639 = vrot.slane %v2405, 2
        %v2640 = vsel %vm650, %v2638, %v2639
        %v2641 = vrot.slane %v2406, 2
        %v2642 = vsel %vm650, %v2639, %v2641
        %v2643 = vrot.slane %v2407, 2
        %v2644 = vrot.slane %v2408, 2
        %v2645 = vsel %vm650, %v2643, %v2644
        %v2646 = vrot.slane %v2409, 2
        %v2647 = vsel %vm650, %v2644, %v2646
        %v2648 = vrot.slane %v2410, 2
        %v2649 = vrot.slane %v2411, 2
        %v2650 = vsel %vm650, %v2648, %v2649
        %v2651 = vrot.slane %v2412, 2
        %v2652 = vsel %vm650, %v2649, %v2651
        %v2653 = vrot.slane %v2413, 2
        %v2654 = vrot.slane %v2414, 2
        %v2655 = vsel %vm650, %v2653, %v2654
        %v2656 = vrot.slane %v2415, 2
        %v2657 = vsel %vm650, %v2654, %v2656
        %v2658 = vrot.slane %v2416, 2
        %v2659 = vrot.slane %v2417, 2
        %v2660 = vsel %vm650, %v2658, %v2659
        %v2661 = vrot.slane %v2418, 2
        %v2662 = vsel %vm650, %v2659, %v2661
        %v2663 = vrot.slane %v2419, 2
        %v2664 = vrot.slane %v2420, 2
        %v2665 = vsel %vm650, %v2663, %v2664
        %v2666 = vrot.slane %v2421, 2
        %v2667 = vsel %vm650, %v2664, %v2666
        %v2703 = vrot.slane %v2422, 1
        %v2704 = vrot.slane %v2423, 1
        %v2705 = vsel %vm537, %v2703, %v2704
        %v2706 = vrot.slane %v2424, 1
        %v2707 = vsel %vm537, %v2704, %v2706
        %v2710 = vrot.slane %v2422, 2
        %v2711 = vrot.slane %v2423, 2
        %v2712 = vsel %vm650, %v2710, %v2711
        %v2713 = vrot.slane %v2424, 2
        %v2714 = vsel %vm650, %v2711, %v2713
        %v2720 = vrot.slane %v2425, 1
        %v2721 = vrot.slane %v2426, 1
        %v2722 = vsel %vm537, %v2720, %v2721
        %v2723 = vrot.slane %v2427, 1
        %v2724 = vsel %vm537, %v2721, %v2723
        %v2727 = vrot.slane %v2425, 2
        %v2728 = vrot.slane %v2426, 2
        %v2729 = vsel %vm650, %v2727, %v2728
        %v2730 = vrot.slane %v2427, 2
        %v2731 = vsel %vm650, %v2728, %v2730
        %v2734 = vpack.c.bf16 %v2375, %v2374
        %v2735 = vpack.c.bf16 %v2480, %v2478
        %v2736 = vpack.c.bf16 %v2592, %v2590
        %v2737 = vpack.c.bf16 %v2378, %v2377
        %v2738 = vpack.c.bf16 %v2485, %v2483
        %v2739 = vpack.c.bf16 %v2597, %v2595
        %v2740 = vpack.c.bf16 %v2381, %v2380
        %v2741 = vpack.c.bf16 %v2490, %v2488
        %v2742 = vpack.c.bf16 %v2602, %v2600
        %v2743 = vpack.c.bf16 %v2384, %v2383
        %v2744 = vpack.c.bf16 %v2495, %v2493
        %v2745 = vpack.c.bf16 %v2607, %v2605
        %v2746 = vpack.c.bf16 %v2387, %v2386
        %v2747 = vpack.c.bf16 %v2500, %v2498
        %v2748 = vpack.c.bf16 %v2612, %v2610
        %v2749 = vpack.c.bf16 %v2390, %v2389
        %v2750 = vpack.c.bf16 %v2505, %v2503
        %v2751 = vpack.c.bf16 %v2617, %v2615
        %v2752 = vpack.c.bf16 %v2393, %v2392
        %v2753 = vpack.c.bf16 %v2510, %v2508
        %v2754 = vpack.c.bf16 %v2622, %v2620
        %v2755 = vpack.c.bf16 %v2396, %v2395
        %v2756 = vpack.c.bf16 %v2515, %v2513
        %v2757 = vpack.c.bf16 %v2627, %v2625
        %v2758 = vpack.c.bf16 %v2399, %v2398
        %v2759 = vpack.c.bf16 %v2520, %v2518
        %v2760 = vpack.c.bf16 %v2632, %v2630
        %v2761 = vpack.c.bf16 %v2402, %v2401
        %v2762 = vpack.c.bf16 %v2525, %v2523
        %v2763 = vpack.c.bf16 %v2637, %v2635
        %v2764 = vpack.c.bf16 %v2405, %v2404
        %v2765 = vpack.c.bf16 %v2530, %v2528
        %v2766 = vpack.c.bf16 %v2642, %v2640
        %v2767 = vpack.c.bf16 %v2408, %v2407
        %v2768 = vpack.c.bf16 %v2535, %v2533
        %v2769 = vpack.c.bf16 %v2647, %v2645
        %v2770 = vpack.c.bf16 %v2411, %v2410
        %v2771 = vpack.c.bf16 %v2540, %v2538
        %v2772 = vpack.c.bf16 %v2652, %v2650
        %v2773 = vpack.c.bf16 %v2414, %v2413
        %v2774 = vpack.c.bf16 %v2545, %v2543
        %v2775 = vpack.c.bf16 %v2657, %v2655
        %v2776 = vpack.c.bf16 %v2417, %v2416
        %v2777 = vpack.c.bf16 %v2550, %v2548
        %v2778 = vpack.c.bf16 %v2662, %v2660
        %v2779 = vpack.c.bf16 %v2420, %v2419
        %v2780 = vpack.c.bf16 %v2555, %v2553
        %v2781 = vpack.c.bf16 %v2667, %v2665
        %v2782 = vpack.c.bf16 %v2423, %v2422
        %v2783 = vpack.c.bf16 %v2707, %v2705
        %v2784 = vpack.c.bf16 %v2714, %v2712
        %v2785 = vpack.c.bf16 %v2426, %v2425
        %v2786 = vpack.c.bf16 %v2724, %v2722
        %v2787 = vpack.c.bf16 %v2731, %v2729
        %v2788 = vld [vmem:[#allocation8] sm:$0xf]
        %v2789 = vld [vmem:[#allocation8 + $0x4] sm:$0xf]
        %v2790 = vld [vmem:[#allocation8 + $0x8] sm:$0xf]
        %v2791 = vld [vmem:[#allocation8 + $0xc] sm:$0xf]
        %v2792 = vld [vmem:[#allocation8 + $0x10] sm:$0xf]
        %v2793 = vld [vmem:[#allocation8 + $0x14] sm:$0xf]
        %v2794 = vld [vmem:[#allocation8 + $0x18] sm:$0xf]
        %v2795 = vld [vmem:[#allocation8 + $0x1c] sm:$0xf]
        %v2796 = vld [vmem:[#allocation8 + $0x20] sm:$0xf]
        %v2797 = vld [vmem:[#allocation8 + $0x24] sm:$0xf]
        %v2798 = vld [vmem:[#allocation8 + $0x28] sm:$0xf]
        %v2799 = vld [vmem:[#allocation8 + $0x2c] sm:$0xf]
        %v2800 = vld [vmem:[#allocation8 + $0x30] sm:$0xf]
        %v2801 = vld [vmem:[#allocation8 + $0x34] sm:$0xf]
        %v2802 = vld [vmem:[#allocation8 + $0x38] sm:$0xf]
        %v2803 = vld [vmem:[#allocation8 + $0x3c] sm:$0xf]
        %v2804 = vld [vmem:[#allocation8 + $0x40] sm:$0xf]
        %v2805 = vld [vmem:[#allocation8 + $0x44] sm:$0xf]
        %v2806 = vld [vmem:[#allocation8 + $0x48] sm:$0xf]
        %v2807 = vld [vmem:[#allocation8 + $0x4c] sm:$0xf]
        %v2808 = vld [vmem:[#allocation8 + $0x50] sm:$0xf]
        %v2809 = vld [vmem:[#allocation8 + $0x54] sm:$0xf]
        %v2810 = vld [vmem:[#allocation8 + $0x58] sm:$0xf]
        %v2811 = vld [vmem:[#allocation8 + $0x5c] sm:$0xf]
        %v2812 = vld [vmem:[#allocation8 + $0x60] sm:$0xf]
        %v2813 = vld [vmem:[#allocation8 + $0x64] sm:$0xf]
        %v2814 = vld [vmem:[#allocation8 + $0x68] sm:$0xf]
        %v2815 = vld [vmem:[#allocation8 + $0x6c] sm:$0xf]
        %v2816 = vld [vmem:[#allocation8 + $0x70] sm:$0xf]
        %v2817 = vld [vmem:[#allocation8 + $0x74] sm:$0xf]
        %v2818 = vld [vmem:[#allocation8 + $0x78] sm:$0xf]
        %v2819 = vld [vmem:[#allocation8 + $0x7c] sm:$0xf]
        %v2820 = vld [vmem:[#allocation8 + $0x80] sm:$0xf]
        %v2821 = vld [vmem:[#allocation8 + $0x84] sm:$0xf]
        %v2822 = vld [vmem:[#allocation8 + $0x88] sm:$0xf]
        %v2823 = vld [vmem:[#allocation8 + $0x8c] sm:$0xf]
        %v2824 = vld [vmem:[#allocation8 + $0x90] sm:$0xf]
        %v2825 = vld [vmem:[#allocation8 + $0x94] sm:$0xf]
        %v2826 = vld [vmem:[#allocation8 + $0x98] sm:$0xf]
        %v2827 = vld [vmem:[#allocation8 + $0x9c] sm:$0xf]
        %v2828 = vld [vmem:[#allocation8 + $0xa0] sm:$0xf]
        %v2829 = vld [vmem:[#allocation8 + $0xa4] sm:$0xf]
        %v2830 = vld [vmem:[#allocation8 + $0xa8] sm:$0xf]
        %v2831 = vld [vmem:[#allocation8 + $0xac] sm:$0xf]
        %v2832 = vld [vmem:[#allocation8 + $0xb0] sm:$0xf]
        %v2833 = vld [vmem:[#allocation8 + $0xb4] sm:$0xf]
        %v2834 = vld [vmem:[#allocation8 + $0xb8] sm:$0xf]
        %v2835 = vld [vmem:[#allocation8 + $0xbc] sm:$0xf]
        %v2836 = vld [vmem:[#allocation8 + $0xc0] sm:$0xf]
        %v2837 = vld [vmem:[#allocation8 + $0xc4] sm:$0xf]
        %v2838 = vld [vmem:[#allocation8 + $0xc8] sm:$0xf]
        %v2839 = vld [vmem:[#allocation8 + $0xcc] sm:$0xf]
        %v2840 = vld [vmem:[#allocation8 + $0xd0] sm:$0xf]
        %v2841 = vld [vmem:[#allocation8 + $0xd4] sm:$0xf]
        %v2842 = vld [vmem:[#allocation8 + $0xd8] sm:$0xf]
        %v2843 = vld [vmem:[#allocation8 + $0xdc] sm:$0xf]
        %v2844 = vld [vmem:[#allocation8 + $0xe0] sm:$0xf]
        %v2845 = vld [vmem:[#allocation8 + $0xe4] sm:$0xf]
        %v2846 = vld [vmem:[#allocation8 + $0xe8] sm:$0xf]
        %v2847 = vld [vmem:[#allocation8 + $0xec] sm:$0xf]
        %v2848 = vld [vmem:[#allocation8 + $0xf0] sm:$0xf]
        %v2849 = vld [vmem:[#allocation8 + $0xf4] sm:$0xf]
        %v2850 = vld [vmem:[#allocation8 + $0xf8] sm:$0xf]
        %v2851 = vld [vmem:[#allocation8 + $0xfc] sm:$0xf]
        %v2852 = vld [vmem:[#allocation8 + $0x100] sm:$0xf]
        %v2853 = vld [vmem:[#allocation8 + $0x104] sm:$0xf]
        %v2854 = vld [vmem:[#allocation8 + $0x108] sm:$0xf]
        %v2855 = vld [vmem:[#allocation8 + $0x10c] sm:$0xf]
        %v2856 = vld [vmem:[#allocation8 + $0x110] sm:$0xf]
        %v2857 = vld [vmem:[#allocation8 + $0x114] sm:$0xf]
        %v2858 = vld [vmem:[#allocation8 + $0x118] sm:$0xf]
        %v2859 = vld [vmem:[#allocation8 + $0x11c] sm:$0xf]
        %v2860 = vld [vmem:[#allocation8 + $0x120] sm:$0xf]
        %v2861 = vld [vmem:[#allocation8 + $0x124] sm:$0xf]
        %v2862 = vld [vmem:[#allocation8 + $0x128] sm:$0xf]
        %v2863 = vld [vmem:[#allocation8 + $0x12c] sm:$0xf]
        %v2864 = vld [vmem:[#allocation8 + $0x130] sm:$0xf]
        %v2865 = vld [vmem:[#allocation8 + $0x134] sm:$0xf]
        %v2866 = vld [vmem:[#allocation8 + $0x138] sm:$0xf]
        %v2867 = vld [vmem:[#allocation8 + $0x13c] sm:$0xf]
        %v2868 = vld [vmem:[#allocation8 + $0x140] sm:$0xf]
        %v2869 = vld [vmem:[#allocation8 + $0x144] sm:$0xf]
        %v2870 = vld [vmem:[#allocation8 + $0x148] sm:$0xf]
        %v2871 = vld [vmem:[#allocation8 + $0x14c] sm:$0xf]
        %v2872 = vld [vmem:[#allocation8 + $0x150] sm:$0xf]
        %v2873 = vld [vmem:[#allocation8 + $0x154] sm:$0xf]
        %v2874 = vld [vmem:[#allocation8 + $0x158] sm:$0xf]
        %v2875 = vld [vmem:[#allocation8 + $0x15c] sm:$0xf]
        %v2876 = vld [vmem:[#allocation8 + $0x160] sm:$0xf]
        %v2877 = vld [vmem:[#allocation8 + $0x164] sm:$0xf]
        %v2878 = vld [vmem:[#allocation8 + $0x168] sm:$0xf]
        %v2879 = vld [vmem:[#allocation8 + $0x16c] sm:$0xf]
        %v2880 = vld [vmem:[#allocation8 + $0x170] sm:$0xf]
        %v2881 = vld [vmem:[#allocation8 + $0x174] sm:$0xf]
        %v2882 = vld [vmem:[#allocation8 + $0x178] sm:$0xf]
        %v2883 = vld [vmem:[#allocation8 + $0x17c] sm:$0xf]
        %v2884 = vld [vmem:[#allocation8 + $0x180] sm:$0xf]
        %v2885 = vld [vmem:[#allocation8 + $0x184] sm:$0xf]
        %v2886 = vld [vmem:[#allocation8 + $0x188] sm:$0xf]
        %v2887 = vld [vmem:[#allocation8 + $0x18c] sm:$0xf]
        %v2888 = vld [vmem:[#allocation8 + $0x190] sm:$0xf]
        %v2889 = vld [vmem:[#allocation8 + $0x194] sm:$0xf]
        %v2890 = vld [vmem:[#allocation8 + $0x198] sm:$0xf]
        %v2891 = vld [vmem:[#allocation8 + $0x19c] sm:$0xf]
        %v2892 = vld [vmem:[#allocation8 + $0x1a0] sm:$0xf]
        %v2893 = vld [vmem:[#allocation8 + $0x1a4] sm:$0xf]
        %v2894 = vld [vmem:[#allocation8 + $0x1a8] sm:$0xf]
        %v2895 = vld [vmem:[#allocation8 + $0x1ac] sm:$0xf]
        %v2896 = vld [vmem:[#allocation8 + $0x1b0] sm:$0xf]
        %v2897 = vld [vmem:[#allocation8 + $0x1b4] sm:$0xf]
        %v2898 = vld [vmem:[#allocation8 + $0x1b8] sm:$0xf]
        %v2899 = vld [vmem:[#allocation8 + $0x1bc] sm:$0xf]
        %v2900 = vld [vmem:[#allocation8 + $0x1c0] sm:$0xf]
        %v2901 = vld [vmem:[#allocation8 + $0x1c4] sm:$0xf]
        %v2902 = vld [vmem:[#allocation8 + $0x1c8] sm:$0xf]
        %v2903 = vld [vmem:[#allocation8 + $0x1cc] sm:$0xf]
        %v2904 = vld [vmem:[#allocation8 + $0x1d0] sm:$0xf]
        %v2905 = vld [vmem:[#allocation8 + $0x1d4] sm:$0xf]
        %v2906 = vld [vmem:[#allocation8 + $0x1d8] sm:$0xf]
        %v2907 = vld [vmem:[#allocation8 + $0x1dc] sm:$0xf]
        %v2908 = vld [vmem:[#allocation8 + $0x1e0] sm:$0xf]
        %v2909 = vld [vmem:[#allocation8 + $0x1e4] sm:$0xf]
        %v2910 = vld [vmem:[#allocation8 + $0x1e8] sm:$0xf]
        %v2911 = vld [vmem:[#allocation8 + $0x1ec] sm:$0xf]
        %v2912 = vld [vmem:[#allocation8 + $0x1f0] sm:$0xf]
        %v2913 = vld [vmem:[#allocation8 + $0x1f4] sm:$0xf]
        %v2914 = vld [vmem:[#allocation8 + $0x1f8] sm:$0xf]
        %v2915 = vld [vmem:[#allocation8 + $0x1fc] sm:$0xf]
        %v2916 = vld [vmem:[#allocation8 + $0x200] sm:$0xf]
        %v2917 = vld [vmem:[#allocation8 + $0x204] sm:$0xf]
        %v2918 = vld [vmem:[#allocation8 + $0x208] sm:$0xf]
        %v2919 = vld [vmem:[#allocation8 + $0x20c] sm:$0xf]
        %v2920 = vld [vmem:[#allocation8 + $0x210] sm:$0xf]
        %v2921 = vld [vmem:[#allocation8 + $0x214] sm:$0xf]
        %v2922 = vld [vmem:[#allocation8 + $0x218] sm:$0xf]
        %v2923 = vld [vmem:[#allocation8 + $0x21c] sm:$0xf]
        %v2924 = vld [vmem:[#allocation8 + $0x220] sm:$0xf]
        %v2925 = vld [vmem:[#allocation8 + $0x224] sm:$0xf]
        %v2926 = vld [vmem:[#allocation8 + $0x228] sm:$0xf]
        %v2927 = vld [vmem:[#allocation8 + $0x22c] sm:$0xf]
        %v2928 = vld [vmem:[#allocation8 + $0x230] sm:$0xf]
        %v2929 = vld [vmem:[#allocation8 + $0x234] sm:$0xf]
        %v2930 = vld [vmem:[#allocation8 + $0x238] sm:$0xf]
        %v2931 = vld [vmem:[#allocation8 + $0x23c] sm:$0xf]
        %v3076 = vunpack.c.l.b16 %v2788
        %v3077 = vunpack.c.l.b16 %v2789
        %v3078 = vunpack.c.l.b16 %v2790
        %v3079 = vunpack.c.l.b16 %v2791
        %v3080 = vunpack.c.l.b16 %v2792
        %v3081 = vunpack.c.l.b16 %v2793
        %v3082 = vunpack.c.l.b16 %v2794
        %v3083 = vunpack.c.l.b16 %v2795
        %v3084 = vunpack.c.l.b16 %v2796
        %v3085 = vunpack.c.l.b16 %v2797
        %v3086 = vunpack.c.l.b16 %v2798
        %v3087 = vunpack.c.l.b16 %v2799
        %v3088 = vunpack.c.l.b16 %v2800
        %v3089 = vunpack.c.l.b16 %v2801
        %v3090 = vunpack.c.l.b16 %v2802
        %v3091 = vunpack.c.l.b16 %v2803
        %v3092 = vunpack.c.l.b16 %v2804
        %v3093 = vunpack.c.l.b16 %v2805
        %v3094 = vunpack.c.l.b16 %v2806
        %v3095 = vunpack.c.l.b16 %v2807
        %v3096 = vunpack.c.l.b16 %v2808
        %v3097 = vunpack.c.l.b16 %v2809
        %v3098 = vunpack.c.l.b16 %v2810
        %v3099 = vunpack.c.l.b16 %v2811
        %v3100 = vunpack.c.l.b16 %v2812
        %v3101 = vunpack.c.l.b16 %v2813
        %v3102 = vunpack.c.l.b16 %v2814
        %v3103 = vunpack.c.l.b16 %v2815
        %v3104 = vunpack.c.l.b16 %v2816
        %v3105 = vunpack.c.l.b16 %v2817
        %v3106 = vunpack.c.l.b16 %v2818
        %v3107 = vunpack.c.l.b16 %v2819
        %v3108 = vunpack.c.l.b16 %v2820
        %v3109 = vunpack.c.l.b16 %v2821
        %v3110 = vunpack.c.l.b16 %v2822
        %v3111 = vunpack.c.l.b16 %v2823
        %v3112 = vunpack.c.l.b16 %v2824
        %v3113 = vunpack.c.l.b16 %v2825
        %v3114 = vunpack.c.l.b16 %v2826
        %v3115 = vunpack.c.l.b16 %v2827
        %v3116 = vunpack.c.l.b16 %v2828
        %v3117 = vunpack.c.l.b16 %v2829
        %v3118 = vunpack.c.l.b16 %v2830
        %v3119 = vunpack.c.l.b16 %v2831
        %v3120 = vunpack.c.l.b16 %v2832
        %v3121 = vunpack.c.l.b16 %v2833
        %v3122 = vunpack.c.l.b16 %v2834
        %v3123 = vunpack.c.l.b16 %v2835
        %v3124 = vunpack.c.l.b16 %v2836
        %v3125 = vunpack.c.l.b16 %v2837
        %v3126 = vunpack.c.l.b16 %v2838
        %v3127 = vunpack.c.l.b16 %v2839
        %v3128 = vunpack.c.l.b16 %v2840
        %v3129 = vunpack.c.l.b16 %v2841
        %v3130 = vunpack.c.l.b16 %v2842
        %v3131 = vunpack.c.l.b16 %v2843
        %v3132 = vunpack.c.l.b16 %v2844
        %v3133 = vunpack.c.l.b16 %v2845
        %v3134 = vunpack.c.l.b16 %v2846
        %v3135 = vunpack.c.l.b16 %v2847
        %v3136 = vunpack.c.l.b16 %v2848
        %v3137 = vunpack.c.l.b16 %v2849
        %v3138 = vunpack.c.l.b16 %v2850
        %v3139 = vunpack.c.l.b16 %v2851
        %v3140 = vunpack.c.l.b16 %v2852
        %v3141 = vunpack.c.l.b16 %v2853
        %v3142 = vunpack.c.l.b16 %v2854
        %v3143 = vunpack.c.l.b16 %v2855
        %v3144 = vunpack.c.l.b16 %v2856
        %v3145 = vunpack.c.l.b16 %v2857
        %v3146 = vunpack.c.l.b16 %v2858
        %v3147 = vunpack.c.l.b16 %v2859
        %v3148 = vunpack.c.l.b16 %v2860
        %v3149 = vunpack.c.l.b16 %v2861
        %v3150 = vunpack.c.l.b16 %v2862
        %v3151 = vunpack.c.l.b16 %v2863
        %v3152 = vunpack.c.l.b16 %v2864
        %v3153 = vunpack.c.l.b16 %v2865
        %v3154 = vunpack.c.l.b16 %v2866
        %v3155 = vunpack.c.l.b16 %v2867
        %v3156 = vunpack.c.l.b16 %v2868
        %v3157 = vunpack.c.l.b16 %v2869
        %v3158 = vunpack.c.l.b16 %v2870
        %v3159 = vunpack.c.l.b16 %v2871
        %v3160 = vunpack.c.l.b16 %v2872
        %v3161 = vunpack.c.l.b16 %v2873
        %v3162 = vunpack.c.l.b16 %v2874
        %v3163 = vunpack.c.l.b16 %v2875
        %v3164 = vunpack.c.l.b16 %v2876
        %v3165 = vunpack.c.l.b16 %v2877
        %v3166 = vunpack.c.l.b16 %v2878
        %v3167 = vunpack.c.l.b16 %v2879
        %v3168 = vunpack.c.l.b16 %v2880
        %v3169 = vunpack.c.l.b16 %v2881
        %v3170 = vunpack.c.l.b16 %v2882
        %v3171 = vunpack.c.l.b16 %v2883
        %v3172 = vunpack.c.l.b16 %v2884
        %v3173 = vunpack.c.l.b16 %v2885
        %v3174 = vunpack.c.l.b16 %v2886
        %v3175 = vunpack.c.l.b16 %v2887
        %v3176 = vunpack.c.l.b16 %v2888
        %v3177 = vunpack.c.l.b16 %v2889
        %v3178 = vunpack.c.l.b16 %v2890
        %v3179 = vunpack.c.l.b16 %v2891
        %v3180 = vunpack.c.l.b16 %v2892
        %v3181 = vunpack.c.l.b16 %v2893
        %v3182 = vunpack.c.l.b16 %v2894
        %v3183 = vunpack.c.l.b16 %v2895
        %v3184 = vunpack.c.l.b16 %v2896
        %v3185 = vunpack.c.l.b16 %v2897
        %v3186 = vunpack.c.l.b16 %v2898
        %v3187 = vunpack.c.l.b16 %v2899
        %v3188 = vunpack.c.l.b16 %v2900
        %v3189 = vunpack.c.l.b16 %v2901
        %v3190 = vunpack.c.l.b16 %v2902
        %v3191 = vunpack.c.l.b16 %v2903
        %v3192 = vunpack.c.l.b16 %v2904
        %v3193 = vunpack.c.l.b16 %v2905
        %v3194 = vunpack.c.l.b16 %v2906
        %v3195 = vunpack.c.l.b16 %v2907
        %v3196 = vunpack.c.l.b16 %v2908
        %v3197 = vunpack.c.l.b16 %v2909
        %v3198 = vunpack.c.l.b16 %v2910
        %v3199 = vunpack.c.l.b16 %v2911
        %v3200 = vunpack.c.l.b16 %v2912
        %v3201 = vunpack.c.l.b16 %v2913
        %v3202 = vunpack.c.l.b16 %v2914
        %v3203 = vunpack.c.l.b16 %v2915
        %v3204 = vunpack.c.l.b16 %v2916
        %v3205 = vunpack.c.l.b16 %v2917
        %v3206 = vunpack.c.l.b16 %v2918
        %v3207 = vunpack.c.l.b16 %v2919
        %v3208 = vunpack.c.l.b16 %v2920
        %v3209 = vunpack.c.l.b16 %v2921
        %v3210 = vunpack.c.l.b16 %v2922
        %v3211 = vunpack.c.l.b16 %v2923
        %v3212 = vunpack.c.l.b16 %v2924
        %v3213 = vunpack.c.l.b16 %v2925
        %v3214 = vunpack.c.l.b16 %v2926
        %v3215 = vunpack.c.l.b16 %v2927
        %v3216 = vunpack.c.l.b16 %v2928
        %v3217 = vunpack.c.l.b16 %v2929
        %v3218 = vunpack.c.l.b16 %v2930
        %v3219 = vunpack.c.l.b16 %v2931
        %v3220 = vpack.c.b16 %v3077, %v3076
        %v3221 = vpack.c.b16 %v3079, %v3078
        %v3222 = vpack.c.b16 %v3081, %v3080
        %v3223 = vpack.c.b16 %v3083, %v3082
        %v3224 = vpack.c.b16 %v3085, %v3084
        %v3225 = vpack.c.b16 %v3087, %v3086
        %v3226 = vpack.c.b16 %v3089, %v3088
        %v3227 = vpack.c.b16 %v3091, %v3090
        %v3228 = vpack.c.b16 %v3093, %v3092
        %v3229 = vpack.c.b16 %v3095, %v3094
        %v3230 = vpack.c.b16 %v3097, %v3096
        %v3231 = vpack.c.b16 %v3099, %v3098
        %v3232 = vpack.c.b16 %v3101, %v3100
        %v3233 = vpack.c.b16 %v3103, %v3102
        %v3234 = vpack.c.b16 %v3105, %v3104
        %v3235 = vpack.c.b16 %v3107, %v3106
        %v3236 = vpack.c.b16 %v3109, %v3108
        %v3237 = vpack.c.b16 %v3111, %v3110
        %v3238 = vpack.c.b16 %v3113, %v3112
        %v3239 = vpack.c.b16 %v3115, %v3114
        %v3240 = vpack.c.b16 %v3117, %v3116
        %v3241 = vpack.c.b16 %v3119, %v3118
        %v3242 = vpack.c.b16 %v3121, %v3120
        %v3243 = vpack.c.b16 %v3123, %v3122
        %v3244 = vpack.c.b16 %v3125, %v3124
        %v3245 = vpack.c.b16 %v3127, %v3126
        %v3246 = vpack.c.b16 %v3129, %v3128
        %v3247 = vpack.c.b16 %v3131, %v3130
        %v3248 = vpack.c.b16 %v3133, %v3132
        %v3249 = vpack.c.b16 %v3135, %v3134
        %v3250 = vpack.c.b16 %v3137, %v3136
        %v3251 = vpack.c.b16 %v3139, %v3138
        %v3252 = vpack.c.b16 %v3141, %v3140
        %v3253 = vpack.c.b16 %v3143, %v3142
        %v3254 = vpack.c.b16 %v3145, %v3144
        %v3255 = vpack.c.b16 %v3147, %v3146
        %v3256 = vpack.c.b16 %v3149, %v3148
        %v3257 = vpack.c.b16 %v3151, %v3150
        %v3258 = vpack.c.b16 %v3153, %v3152
        %v3259 = vpack.c.b16 %v3155, %v3154
        %v3260 = vpack.c.b16 %v3157, %v3156
        %v3261 = vpack.c.b16 %v3159, %v3158
        %v3262 = vpack.c.b16 %v3161, %v3160
        %v3263 = vpack.c.b16 %v3163, %v3162
        %v3264 = vpack.c.b16 %v3165, %v3164
        %v3265 = vpack.c.b16 %v3167, %v3166
        %v3266 = vpack.c.b16 %v3169, %v3168
        %v3267 = vpack.c.b16 %v3171, %v3170
        %v3268 = vpack.c.b16 %v3173, %v3172
        %v3269 = vpack.c.b16 %v3175, %v3174
        %v3270 = vpack.c.b16 %v3177, %v3176
        %v3271 = vpack.c.b16 %v3179, %v3178
        %v3272 = vpack.c.b16 %v3181, %v3180
        %v3273 = vpack.c.b16 %v3183, %v3182
        %v3274 = vpack.c.b16 %v3185, %v3184
        %v3275 = vpack.c.b16 %v3187, %v3186
        %v3276 = vpack.c.b16 %v3189, %v3188
        %v3277 = vpack.c.b16 %v3191, %v3190
        %v3278 = vpack.c.b16 %v3193, %v3192
        %v3279 = vpack.c.b16 %v3195, %v3194
        %v3280 = vpack.c.b16 %v3197, %v3196
        %v3281 = vpack.c.b16 %v3199, %v3198
        %v3282 = vpack.c.b16 %v3201, %v3200
        %v3283 = vpack.c.b16 %v3203, %v3202
        %v3284 = vpack.c.b16 %v3205, %v3204
        %v3285 = vpack.c.b16 %v3207, %v3206
        %v3286 = vpack.c.b16 %v3209, %v3208
        %v3287 = vpack.c.b16 %v3211, %v3210
        %v3288 = vpack.c.b16 %v3213, %v3212
        %v3289 = vpack.c.b16 %v3215, %v3214
        %v3290 = vpack.c.b16 %v3217, %v3216
        %v3291 = vpack.c.b16 %v3219, %v3218
        %3364 = vmatprep.subr.bf16.mxu0 0
        %3365 = vmatpush1.bf16.msra.mxu0 %v3220
        %3366 = vmatprep.subr.bf16.mxu0 0
        %3367 = vmatpush1.bf16.msra.mxu0 %v3221
        %3368 = vmatprep.subr.bf16.mxu0 0
        %3369 = vmatpush1.bf16.msra.mxu0 %v3222
        %3370 = vmatprep.subr.bf16.mxu0 0
        %3371 = vmatpush1.bf16.msra.mxu0 %v3223
        %3372 = vmatprep.subr.bf16.mxu0 0
        %3373 = vmatpush1.bf16.msra.mxu0 %v3224
        %3374 = vmatprep.subr.bf16.mxu0 0
        %3375 = vmatpush1.bf16.msra.mxu0 %v3225
        %3376 = vmatprep.subr.bf16.mxu0 0
        %3377 = vmatpush1.bf16.msra.mxu0 %v3226
        %3378 = vmatprep.subr.bf16.mxu0 0
        %3379 = vmatpush1.bf16.msra.mxu0 %v3227
        %3380 = vmatprep.subr.bf16.mxu0 0
        %3381 = vmatpush1.bf16.msra.mxu0 %v3228
        %3382 = vmatprep.subr.bf16.mxu0 0
        %3383 = vmatpush1.bf16.msra.mxu0 %v3229
        %3384 = vmatprep.subr.bf16.mxu0 0
        %3385 = vmatpush1.bf16.msra.mxu0 %v3230
        %3386 = vmatprep.subr.bf16.mxu0 0
        %3387 = vmatpush1.bf16.msra.mxu0 %v3231
        %3388 = vmatprep.subr.bf16.mxu0 0
        %3389 = vmatpush1.bf16.msra.mxu0 %v3232
        %3390 = vmatprep.subr.bf16.mxu0 0
        %3391 = vmatpush1.bf16.msra.mxu0 %v3233
        %3392 = vmatprep.subr.bf16.mxu0 0
        %3393 = vmatpush1.bf16.msra.mxu0 %v3234
        %3394 = vmatprep.subr.bf16.mxu0 0
        %3395 = vmatpush1.bf16.msra.mxu0 %v3235
        %3396 = vmatprep.mubr.bf16.mxu0 %v2735
        %3397 = vmatmul.mubr.bf16.gmra.mrb[0].mxu0 %v2734
        %v3398 = vpop.f32.mrb[0].mxu0
        %v3399 = vadd.f32 0.0, %v3398
        %v3400 = vpop.f32.mrb[0].mxu0
        %v3401 = vpop.f32.mrb[0].mxu0
        %v3402 = vadd.f32 0.0, %v3401
        %v3403 = vpop.f32.mrb[0].mxu0
        %3404 = vmatprep.mubr.bf16.mxu0 %v2738
        %3405 = vmatmul.mubr.bf16.gmra.mrb[0].mxu0 %v2737
        %v3406 = vpop.f32.mrb[0].mxu0
        %v3407 = vadd.f32 0.0, %v3406
        %v3408 = vpop.f32.mrb[0].mxu0
        %v3409 = vpop.f32.mrb[0].mxu0
        %v3410 = vadd.f32 0.0, %v3409
        %v3411 = vpop.f32.mrb[0].mxu0
        %3412 = vmatprep.mubr.bf16.mxu0 %v2741
        %3413 = vmatmul.mubr.bf16.gmra.mrb[0].mxu0 %v2740
        %v3414 = vpop.f32.mrb[0].mxu0
        %v3415 = vadd.f32 0.0, %v3414
        %v3416 = vpop.f32.mrb[0].mxu0
        %v3417 = vpop.f32.mrb[0].mxu0
        %v3418 = vadd.f32 0.0, %v3417
        %v3419 = vpop.f32.mrb[0].mxu0
        %3420 = vmatprep.mubr.bf16.mxu0 %v2744
        %3421 = vmatmul.mubr.bf16.gmra.mrb[0].mxu0 %v2743
        %v3422 = vpop.f32.mrb[0].mxu0
        %v3423 = vadd.f32 0.0, %v3422
        %v3424 = vpop.f32.mrb[0].mxu0
        %v3425 = vpop.f32.mrb[0].mxu0
        %v3426 = vadd.f32 0.0, %v3425
        %v3427 = vpop.f32.mrb[0].mxu0
        %3428 = vmatprep.mubr.bf16.mxu0 %v2747
        %3429 = vmatmul.mubr.bf16.gmra.mrb[0].mxu0 %v2746
        %v3430 = vpop.f32.mrb[0].mxu0
        %v3431 = vadd.f32 0.0, %v3430
        %v3432 = vpop.f32.mrb[0].mxu0
        %v3433 = vpop.f32.mrb[0].mxu0
        %v3434 = vadd.f32 0.0, %v3433
        %v3435 = vpop.f32.mrb[0].mxu0
        %3436 = vmatprep.mubr.bf16.mxu0 %v2750
        %3437 = vmatmul.mubr.bf16.gmra.mrb[0].mxu0 %v2749
        %v3438 = vpop.f32.mrb[0].mxu0
        %v3439 = vadd.f32 0.0, %v3438
        %v3440 = vpop.f32.mrb[0].mxu0
        %v3441 = vpop.f32.mrb[0].mxu0
        %v3442 = vadd.f32 0.0, %v3441
        %v3443 = vpop.f32.mrb[0].mxu0
        %3444 = vmatprep.mubr.bf16.mxu0 %v2753
        %3445 = vmatmul.mubr.bf16.gmra.mrb[0].mxu0 %v2752
        %v3446 = vpop.f32.mrb[0].mxu0
        %v3447 = vadd.f32 0.0, %v3446
        %v3448 = vpop.f32.mrb[0].mxu0
        %v3449 = vpop.f32.mrb[0].mxu0
        %v3450 = vadd.f32 0.0, %v3449
        %v3451 = vpop.f32.mrb[0].mxu0
        %3452 = vmatprep.mubr.bf16.mxu0 %v2756
        %3453 = vmatmul.mubr.bf16.gmra.mrb[0].mxu0 %v2755
        %v3454 = vpop.f32.mrb[0].mxu0
        %v3455 = vadd.f32 0.0, %v3454
        %v3456 = vpop.f32.mrb[0].mxu0
        %v3457 = vpop.f32.mrb[0].mxu0
        %v3458 = vadd.f32 0.0, %v3457
        %v3459 = vpop.f32.mrb[0].mxu0
        %3460 = vmatprep.mubr.bf16.mxu0 %v2759
        %3461 = vmatmul.mubr.bf16.gmra.mrb[0].mxu0 %v2758
        %v3462 = vpop.f32.mrb[0].mxu0
        %v3463 = vadd.f32 0.0, %v3462
        %v3464 = vpop.f32.mrb[0].mxu0
        %v3465 = vpop.f32.mrb[0].mxu0
        %v3466 = vadd.f32 0.0, %v3465
        %v3467 = vpop.f32.mrb[0].mxu0
        %3468 = vmatprep.mubr.bf16.mxu0 %v2762
        %3469 = vmatmul.mubr.bf16.gmra.mrb[0].mxu0 %v2761
        %v3470 = vpop.f32.mrb[0].mxu0
        %v3471 = vadd.f32 0.0, %v3470
        %v3472 = vpop.f32.mrb[0].mxu0
        %v3473 = vpop.f32.mrb[0].mxu0
        %v3474 = vadd.f32 0.0, %v3473
        %v3475 = vpop.f32.mrb[0].mxu0
        %3476 = vmatprep.mubr.bf16.mxu0 %v2765
        %3477 = vmatmul.mubr.bf16.gmra.mrb[0].mxu0 %v2764
        %v3478 = vpop.f32.mrb[0].mxu0
        %v3479 = vadd.f32 0.0, %v3478
        %v3480 = vpop.f32.mrb[0].mxu0
        %v3481 = vpop.f32.mrb[0].mxu0
        %v3482 = vadd.f32 0.0, %v3481
        %v3483 = vpop.f32.mrb[0].mxu0
        %3484 = vmatprep.mubr.bf16.mxu0 %v2768
        %3485 = vmatmul.mubr.bf16.gmra.mrb[0].mxu0 %v2767
        %v3486 = vpop.f32.mrb[0].mxu0
        %v3487 = vadd.f32 0.0, %v3486
        %v3488 = vpop.f32.mrb[0].mxu0
        %v3489 = vpop.f32.mrb[0].mxu0
        %v3490 = vadd.f32 0.0, %v3489
        %v3491 = vpop.f32.mrb[0].mxu0
        %3492 = vmatprep.mubr.bf16.mxu0 %v2771
        %3493 = vmatmul.mubr.bf16.gmra.mrb[0].mxu0 %v2770
        %v3494 = vpop.f32.mrb[0].mxu0
        %v3495 = vadd.f32 0.0, %v3494
        %v3496 = vpop.f32.mrb[0].mxu0
        %v3497 = vpop.f32.mrb[0].mxu0
        %v3498 = vadd.f32 0.0, %v3497
        %v3499 = vpop.f32.mrb[0].mxu0
        %3500 = vmatprep.mubr.bf16.mxu0 %v2774
        %3501 = vmatmul.mubr.bf16.gmra.mrb[0].mxu0 %v2773
        %v3502 = vpop.f32.mrb[0].mxu0
        %v3503 = vadd.f32 0.0, %v3502
        %v3504 = vpop.f32.mrb[0].mxu0
        %v3505 = vpop.f32.mrb[0].mxu0
        %v3506 = vadd.f32 0.0, %v3505
        %v3507 = vpop.f32.mrb[0].mxu0
        %3508 = vmatprep.mubr.bf16.mxu0 %v2777
        %3509 = vmatmul.mubr.bf16.gmra.mrb[0].mxu0 %v2776
        %v3510 = vpop.f32.mrb[0].mxu0
        %v3511 = vadd.f32 0.0, %v3510
        %v3512 = vpop.f32.mrb[0].mxu0
        %v3513 = vpop.f32.mrb[0].mxu0
        %v3514 = vadd.f32 0.0, %v3513
        %v3515 = vpop.f32.mrb[0].mxu0
        %3516 = vmatprep.mubr.bf16.mxu0 %v2780
        %3517 = vmatmul.mubr.bf16.gmra.mrb[0].mxu0 %v2779
        %v3518 = vpop.f32.mrb[0].mxu0
        %v3519 = vadd.f32 0.0, %v3518
        %v3520 = vpop.f32.mrb[0].mxu0
        %v3521 = vpop.f32.mrb[0].mxu0
        %v3522 = vadd.f32 0.0, %v3521
        %v3523 = vpop.f32.mrb[0].mxu0
        %3524 = vdwg.mxu0
        %3525 = vmatprep.subr.bf16.mxu0 0
        %3526 = vmatpush1.bf16.msra.mxu0 %v3236
        %3527 = vmatprep.subr.bf16.mxu0 0
        %3528 = vmatpush1.bf16.msra.mxu0 %v3237
        %3529 = vmatprep.subr.bf16.mxu0 0
        %3530 = vmatpush1.bf16.msra.mxu0 %v3238
        %3531 = vmatprep.subr.bf16.mxu0 0
        %3532 = vmatpush1.bf16.msra.mxu0 %v3239
        %3533 = vmatprep.subr.bf16.mxu0 0
        %3534 = vmatpush1.bf16.msra.mxu0 %v3240
        %3535 = vmatprep.subr.bf16.mxu0 0
        %3536 = vmatpush1.bf16.msra.mxu0 %v3241
        %3537 = vmatprep.subr.bf16.mxu0 0
        %3538 = vmatpush1.bf16.msra.mxu0 %v3242
        %3539 = vmatprep.subr.bf16.mxu0 0
        %3540 = vmatpush1.bf16.msra.mxu0 %v3243
        %3541 = vmatprep.subr.bf16.mxu0 0
        %3542 = vmatpush1.bf16.msra.mxu0 %v3244
        %3543 = vmatprep.subr.bf16.mxu0 0
        %3544 = vmatpush1.bf16.msra.mxu0 %v3245
        %3545 = vmatprep.subr.bf16.mxu0 0
        %3546 = vmatpush1.bf16.msra.mxu0 %v3246
        %3547 = vmatprep.subr.bf16.mxu0 0
        %3548 = vmatpush1.bf16.msra.mxu0 %v3247
        %3549 = vmatprep.subr.bf16.mxu0 0
        %3550 = vmatpush1.bf16.msra.mxu0 %v3248
        %3551 = vmatprep.subr.bf16.mxu0 0
        %3552 = vmatpush1.bf16.msra.mxu0 %v3249
        %3553 = vmatprep.subr.bf16.mxu0 0
        %3554 = vmatpush1.bf16.msra.mxu0 %v3250
        %3555 = vmatprep.subr.bf16.mxu0 0
        %3556 = vmatpush1.bf16.msra.mxu0 %v3251
        %3557 = vmatprep.mubr.bf16.mxu0 %v2737
        %3558 = vmatmul.mubr.bf16.gmra.mrb[0].mxu0 %v2736
        %v3559 = vpop.f32.mrb[0].mxu0
        %v3560 = vadd.f32 %v3399, %v3559
        %v3561 = vpop.f32.mrb[0].mxu0
        %v3562 = vpop.f32.mrb[0].mxu0
        %v3563 = vadd.f32 %v3402, %v3562
        %v3564 = vpop.f32.mrb[0].mxu0
        %3565 = vmatprep.mubr.bf16.mxu0 %v2740
        %3566 = vmatmul.mubr.bf16.gmra.mrb[0].mxu0 %v2739
        %v3567 = vpop.f32.mrb[0].mxu0
        %v3568 = vadd.f32 %v3407, %v3567
        %v3569 = vpop.f32.mrb[0].mxu0
        %v3570 = vpop.f32.mrb[0].mxu0
        %v3571 = vadd.f32 %v3410, %v3570
        %v3572 = vpop.f32.mrb[0].mxu0
        %3573 = vmatprep.mubr.bf16.mxu0 %v2743
        %3574 = vmatmul.mubr.bf16.gmra.mrb[0].mxu0 %v2742
        %v3575 = vpop.f32.mrb[0].mxu0
        %v3576 = vadd.f32 %v3415, %v3575
        %v3577 = vpop.f32.mrb[0].mxu0
        %v3578 = vpop.f32.mrb[0].mxu0
        %v3579 = vadd.f32 %v3418, %v3578
        %v3580 = vpop.f32.mrb[0].mxu0
        %3581 = vmatprep.mubr.bf16.mxu0 %v2746
        %3582 = vmatmul.mubr.bf16.gmra.mrb[0].mxu0 %v2745
        %v3583 = vpop.f32.mrb[0].mxu0
        %v3584 = vadd.f32 %v3423, %v3583
        %v3585 = vpop.f32.mrb[0].mxu0
        %v3586 = vpop.f32.mrb[0].mxu0
        %v3587 = vadd.f32 %v3426, %v3586
        %v3588 = vpop.f32.mrb[0].mxu0
        %3589 = vmatprep.mubr.bf16.mxu0 %v2749
        %3590 = vmatmul.mubr.bf16.gmra.mrb[0].mxu0 %v2748
        %v3591 = vpop.f32.mrb[0].mxu0
        %v3592 = vadd.f32 %v3431, %v3591
        %v3593 = vpop.f32.mrb[0].mxu0
        %v3594 = vpop.f32.mrb[0].mxu0
        %v3595 = vadd.f32 %v3434, %v3594
        %v3596 = vpop.f32.mrb[0].mxu0
        %3597 = vmatprep.mubr.bf16.mxu0 %v2752
        %3598 = vmatmul.mubr.bf16.gmra.mrb[0].mxu0 %v2751
        %v3599 = vpop.f32.mrb[0].mxu0
        %v3600 = vadd.f32 %v3439, %v3599
        %v3601 = vpop.f32.mrb[0].mxu0
        %v3602 = vpop.f32.mrb[0].mxu0
        %v3603 = vadd.f32 %v3442, %v3602
        %v3604 = vpop.f32.mrb[0].mxu0
        %3605 = vmatprep.mubr.bf16.mxu0 %v2755
        %3606 = vmatmul.mubr.bf16.gmra.mrb[0].mxu0 %v2754
        %v3607 = vpop.f32.mrb[0].mxu0
        %v3608 = vadd.f32 %v3447, %v3607
        %v3609 = vpop.f32.mrb[0].mxu0
        %v3610 = vpop.f32.mrb[0].mxu0
        %v3611 = vadd.f32 %v3450, %v3610
        %v3612 = vpop.f32.mrb[0].mxu0
        %3613 = vmatprep.mubr.bf16.mxu0 %v2758
        %3614 = vmatmul.mubr.bf16.gmra.mrb[0].mxu0 %v2757
        %v3615 = vpop.f32.mrb[0].mxu0
        %v3616 = vadd.f32 %v3455, %v3615
        %v3617 = vpop.f32.mrb[0].mxu0
        %v3618 = vpop.f32.mrb[0].mxu0
        %v3619 = vadd.f32 %v3458, %v3618
        %v3620 = vpop.f32.mrb[0].mxu0
        %3621 = vmatprep.mubr.bf16.mxu0 %v2761
        %3622 = vmatmul.mubr.bf16.gmra.mrb[0].mxu0 %v2760
        %v3623 = vpop.f32.mrb[0].mxu0
        %v3624 = vadd.f32 %v3463, %v3623
        %v3625 = vpop.f32.mrb[0].mxu0
        %v3626 = vpop.f32.mrb[0].mxu0
        %v3627 = vadd.f32 %v3466, %v3626
        %v3628 = vpop.f32.mrb[0].mxu0
        %3629 = vmatprep.mubr.bf16.mxu0 %v2764
        %3630 = vmatmul.mubr.bf16.gmra.mrb[0].mxu0 %v2763
        %v3631 = vpop.f32.mrb[0].mxu0
        %v3632 = vadd.f32 %v3471, %v3631
        %v3633 = vpop.f32.mrb[0].mxu0
        %v3634 = vpop.f32.mrb[0].mxu0
        %v3635 = vadd.f32 %v3474, %v3634
        %v3636 = vpop.f32.mrb[0].mxu0
        %3637 = vmatprep.mubr.bf16.mxu0 %v2767
        %3638 = vmatmul.mubr.bf16.gmra.mrb[0].mxu0 %v2766
        %v3639 = vpop.f32.mrb[0].mxu0
        %v3640 = vadd.f32 %v3479, %v3639
        %v3641 = vpop.f32.mrb[0].mxu0
        %v3642 = vpop.f32.mrb[0].mxu0
        %v3643 = vadd.f32 %v3482, %v3642
        %v3644 = vpop.f32.mrb[0].mxu0
        %3645 = vmatprep.mubr.bf16.mxu0 %v2770
        %3646 = vmatmul.mubr.bf16.gmra.mrb[0].mxu0 %v2769
        %v3647 = vpop.f32.mrb[0].mxu0
        %v3648 = vadd.f32 %v3487, %v3647
        %v3649 = vpop.f32.mrb[0].mxu0
        %v3650 = vpop.f32.mrb[0].mxu0
        %v3651 = vadd.f32 %v3490, %v3650
        %v3652 = vpop.f32.mrb[0].mxu0
        %3653 = vmatprep.mubr.bf16.mxu0 %v2773
        %3654 = vmatmul.mubr.bf16.gmra.mrb[0].mxu0 %v2772
        %v3655 = vpop.f32.mrb[0].mxu0
        %v3656 = vadd.f32 %v3495, %v3655
        %v3657 = vpop.f32.mrb[0].mxu0
        %v3658 = vpop.f32.mrb[0].mxu0
        %v3659 = vadd.f32 %v3498, %v3658
        %v3660 = vpop.f32.mrb[0].mxu0
        %3661 = vmatprep.mubr.bf16.mxu0 %v2776
        %3662 = vmatmul.mubr.bf16.gmra.mrb[0].mxu0 %v2775
        %v3663 = vpop.f32.mrb[0].mxu0
        %v3664 = vadd.f32 %v3503, %v3663
        %v3665 = vpop.f32.mrb[0].mxu0
        %v3666 = vpop.f32.mrb[0].mxu0
        %v3667 = vadd.f32 %v3506, %v3666
        %v3668 = vpop.f32.mrb[0].mxu0
        %3669 = vmatprep.mubr.bf16.mxu0 %v2779
        %3670 = vmatmul.mubr.bf16.gmra.mrb[0].mxu0 %v2778
        %v3671 = vpop.f32.mrb[0].mxu0
        %v3672 = vadd.f32 %v3511, %v3671
        %v3673 = vpop.f32.mrb[0].mxu0
        %v3674 = vpop.f32.mrb[0].mxu0
        %v3675 = vadd.f32 %v3514, %v3674
        %v3676 = vpop.f32.mrb[0].mxu0
        %3677 = vmatprep.mubr.bf16.mxu0 %v2782
        %3678 = vmatmul.mubr.bf16.gmra.mrb[0].mxu0 %v2781
        %v3679 = vpop.f32.mrb[0].mxu0
        %v3680 = vadd.f32 %v3519, %v3679
        %v3681 = vpop.f32.mrb[0].mxu0
        %v3682 = vpop.f32.mrb[0].mxu0
        %v3683 = vadd.f32 %v3522, %v3682
        %v3684 = vpop.f32.mrb[0].mxu0
        %3685 = vdwg.mxu0
        %3686 = vmatprep.subr.bf16.mxu0 0
        %3687 = vmatpush1.bf16.msra.mxu0 %v3252
        %3688 = vmatprep.subr.bf16.mxu0 0
        %3689 = vmatpush1.bf16.msra.mxu0 %v3253
        %3690 = vmatprep.subr.bf16.mxu0 0
        %3691 = vmatpush1.bf16.msra.mxu0 %v3254
        %3692 = vmatprep.subr.bf16.mxu0 0
        %3693 = vmatpush1.bf16.msra.mxu0 %v3255
        %3694 = vmatprep.subr.bf16.mxu0 0
        %3695 = vmatpush1.bf16.msra.mxu0 %v3256
        %3696 = vmatprep.subr.bf16.mxu0 0
        %3697 = vmatpush1.bf16.msra.mxu0 %v3257
        %3698 = vmatprep.subr.bf16.mxu0 0
        %3699 = vmatpush1.bf16.msra.mxu0 %v3258
        %3700 = vmatprep.subr.bf16.mxu0 0
        %3701 = vmatpush1.bf16.msra.mxu0 %v3259
        %3702 = vmatprep.subr.bf16.mxu0 0
        %3703 = vmatpush1.bf16.msra.mxu0 %v3260
        %3704 = vmatprep.subr.bf16.mxu0 0
        %3705 = vmatpush1.bf16.msra.mxu0 %v3261
        %3706 = vmatprep.subr.bf16.mxu0 0
        %3707 = vmatpush1.bf16.msra.mxu0 %v3262
        %3708 = vmatprep.subr.bf16.mxu0 0
        %3709 = vmatpush1.bf16.msra.mxu0 %v3263
        %3710 = vmatprep.subr.bf16.mxu0 0
        %3711 = vmatpush1.bf16.msra.mxu0 %v3264
        %3712 = vmatprep.subr.bf16.mxu0 0
        %3713 = vmatpush1.bf16.msra.mxu0 %v3265
        %3714 = vmatprep.subr.bf16.mxu0 0
        %3715 = vmatpush1.bf16.msra.mxu0 %v3266
        %3716 = vmatprep.subr.bf16.mxu0 0
        %3717 = vmatpush1.bf16.msra.mxu0 %v3267
        %3718 = vmatprep.mubr.bf16.mxu0 %v2739
        %3719 = vmatmul.mubr.bf16.gmra.mrb[0].mxu0 %v2738
        %v3720 = vpop.f32.mrb[0].mxu0
        %v3721 = vadd.f32 %v3560, %v3720
        %v3722 = vpop.f32.mrb[0].mxu0
        %v3723 = vpop.f32.mrb[0].mxu0
        %v3724 = vadd.f32 %v3563, %v3723
        %v3725 = vpop.f32.mrb[0].mxu0
        %3726 = vmatprep.mubr.bf16.mxu0 %v2742
        %3727 = vmatmul.mubr.bf16.gmra.mrb[0].mxu0 %v2741
        %v3728 = vpop.f32.mrb[0].mxu0
        %v3729 = vadd.f32 %v3568, %v3728
        %v3730 = vpop.f32.mrb[0].mxu0
        %v3731 = vpop.f32.mrb[0].mxu0
        %v3732 = vadd.f32 %v3571, %v3731
        %v3733 = vpop.f32.mrb[0].mxu0
        %3734 = vmatprep.mubr.bf16.mxu0 %v2745
        %3735 = vmatmul.mubr.bf16.gmra.mrb[0].mxu0 %v2744
        %v3736 = vpop.f32.mrb[0].mxu0
        %v3737 = vadd.f32 %v3576, %v3736
        %v3738 = vpop.f32.mrb[0].mxu0
        %v3739 = vpop.f32.mrb[0].mxu0
        %v3740 = vadd.f32 %v3579, %v3739
        %v3741 = vpop.f32.mrb[0].mxu0
        %3742 = vmatprep.mubr.bf16.mxu0 %v2748
        %3743 = vmatmul.mubr.bf16.gmra.mrb[0].mxu0 %v2747
        %v3744 = vpop.f32.mrb[0].mxu0
        %v3745 = vadd.f32 %v3584, %v3744
        %v3746 = vpop.f32.mrb[0].mxu0
        %v3747 = vpop.f32.mrb[0].mxu0
        %v3748 = vadd.f32 %v3587, %v3747
        %v3749 = vpop.f32.mrb[0].mxu0
        %3750 = vmatprep.mubr.bf16.mxu0 %v2751
        %3751 = vmatmul.mubr.bf16.gmra.mrb[0].mxu0 %v2750
        %v3752 = vpop.f32.mrb[0].mxu0
        %v3753 = vadd.f32 %v3592, %v3752
        %v3754 = vpop.f32.mrb[0].mxu0
        %v3755 = vpop.f32.mrb[0].mxu0
        %v3756 = vadd.f32 %v3595, %v3755
        %v3757 = vpop.f32.mrb[0].mxu0
        %3758 = vmatprep.mubr.bf16.mxu0 %v2754
        %3759 = vmatmul.mubr.bf16.gmra.mrb[0].mxu0 %v2753
        %v3760 = vpop.f32.mrb[0].mxu0
        %v3761 = vadd.f32 %v3600, %v3760
        %v3762 = vpop.f32.mrb[0].mxu0
        %v3763 = vpop.f32.mrb[0].mxu0
        %v3764 = vadd.f32 %v3603, %v3763
        %v3765 = vpop.f32.mrb[0].mxu0
        %3766 = vmatprep.mubr.bf16.mxu0 %v2757
        %3767 = vmatmul.mubr.bf16.gmra.mrb[0].mxu0 %v2756
        %v3768 = vpop.f32.mrb[0].mxu0
        %v3769 = vadd.f32 %v3608, %v3768
        %v3770 = vpop.f32.mrb[0].mxu0
        %v3771 = vpop.f32.mrb[0].mxu0
        %v3772 = vadd.f32 %v3611, %v3771
        %v3773 = vpop.f32.mrb[0].mxu0
        %3774 = vmatprep.mubr.bf16.mxu0 %v2760
        %3775 = vmatmul.mubr.bf16.gmra.mrb[0].mxu0 %v2759
        %v3776 = vpop.f32.mrb[0].mxu0
        %v3777 = vadd.f32 %v3616, %v3776
        %v3778 = vpop.f32.mrb[0].mxu0
        %v3779 = vpop.f32.mrb[0].mxu0
        %v3780 = vadd.f32 %v3619, %v3779
        %v3781 = vpop.f32.mrb[0].mxu0
        %3782 = vmatprep.mubr.bf16.mxu0 %v2763
        %3783 = vmatmul.mubr.bf16.gmra.mrb[0].mxu0 %v2762
        %v3784 = vpop.f32.mrb[0].mxu0
        %v3785 = vadd.f32 %v3624, %v3784
        %v3786 = vpop.f32.mrb[0].mxu0
        %v3787 = vpop.f32.mrb[0].mxu0
        %v3788 = vadd.f32 %v3627, %v3787
        %v3789 = vpop.f32.mrb[0].mxu0
        %3790 = vmatprep.mubr.bf16.mxu0 %v2766
        %3791 = vmatmul.mubr.bf16.gmra.mrb[0].mxu0 %v2765
        %v3792 = vpop.f32.mrb[0].mxu0
        %v3793 = vadd.f32 %v3632, %v3792
        %v3794 = vpop.f32.mrb[0].mxu0
        %v3795 = vpop.f32.mrb[0].mxu0
        %v3796 = vadd.f32 %v3635, %v3795
        %v3797 = vpop.f32.mrb[0].mxu0
        %3798 = vmatprep.mubr.bf16.mxu0 %v2769
        %3799 = vmatmul.mubr.bf16.gmra.mrb[0].mxu0 %v2768
        %v3800 = vpop.f32.mrb[0].mxu0
        %v3801 = vadd.f32 %v3640, %v3800
        %v3802 = vpop.f32.mrb[0].mxu0
        %v3803 = vpop.f32.mrb[0].mxu0
        %v3804 = vadd.f32 %v3643, %v3803
        %v3805 = vpop.f32.mrb[0].mxu0
        %3806 = vmatprep.mubr.bf16.mxu0 %v2772
        %3807 = vmatmul.mubr.bf16.gmra.mrb[0].mxu0 %v2771
        %v3808 = vpop.f32.mrb[0].mxu0
        %v3809 = vadd.f32 %v3648, %v3808
        %v3810 = vpop.f32.mrb[0].mxu0
        %v3811 = vpop.f32.mrb[0].mxu0
        %v3812 = vadd.f32 %v3651, %v3811
        %v3813 = vpop.f32.mrb[0].mxu0
        %3814 = vmatprep.mubr.bf16.mxu0 %v2775
        %3815 = vmatmul.mubr.bf16.gmra.mrb[0].mxu0 %v2774
        %v3816 = vpop.f32.mrb[0].mxu0
        %v3817 = vadd.f32 %v3656, %v3816
        %v3818 = vpop.f32.mrb[0].mxu0
        %v3819 = vpop.f32.mrb[0].mxu0
        %v3820 = vadd.f32 %v3659, %v3819
        %v3821 = vpop.f32.mrb[0].mxu0
        %3822 = vmatprep.mubr.bf16.mxu0 %v2778
        %3823 = vmatmul.mubr.bf16.gmra.mrb[0].mxu0 %v2777
        %v3824 = vpop.f32.mrb[0].mxu0
        %v3825 = vadd.f32 %v3664, %v3824
        %v3826 = vpop.f32.mrb[0].mxu0
        %v3827 = vpop.f32.mrb[0].mxu0
        %v3828 = vadd.f32 %v3667, %v3827
        %v3829 = vpop.f32.mrb[0].mxu0
        %3830 = vmatprep.mubr.bf16.mxu0 %v2781
        %3831 = vmatmul.mubr.bf16.gmra.mrb[0].mxu0 %v2780
        %v3832 = vpop.f32.mrb[0].mxu0
        %v3833 = vadd.f32 %v3672, %v3832
        %v3834 = vpop.f32.mrb[0].mxu0
        %v3835 = vpop.f32.mrb[0].mxu0
        %v3836 = vadd.f32 %v3675, %v3835
        %v3837 = vpop.f32.mrb[0].mxu0
        %3838 = vmatprep.mubr.bf16.mxu0 %v2784
        %3839 = vmatmul.mubr.bf16.gmra.mrb[0].mxu0 %v2783
        %v3840 = vpop.f32.mrb[0].mxu0
        %v3841 = vadd.f32 %v3680, %v3840
        %v3842 = vpop.f32.mrb[0].mxu0
        %v3843 = vpop.f32.mrb[0].mxu0
        %v3844 = vadd.f32 %v3683, %v3843
        %v3845 = vpop.f32.mrb[0].mxu0
        %3846 = vdwg.mxu0
        %3847 = vmatprep.subr.bf16.mxu0 0
        %3848 = vmatpush1.bf16.msra.mxu0 %v3268
        %3849 = vmatprep.subr.bf16.mxu0 0
        %3850 = vmatpush1.bf16.msra.mxu0 %v3269
        %3851 = vmatprep.subr.bf16.mxu0 0
        %3852 = vmatpush1.bf16.msra.mxu0 %v3270
        %3853 = vmatprep.subr.bf16.mxu0 0
        %3854 = vmatpush1.bf16.msra.mxu0 %v3271
        %3855 = vmatprep.subr.bf16.mxu0 0
        %3856 = vmatpush1.bf16.msra.mxu0 %v3272
        %3857 = vmatprep.subr.bf16.mxu0 0
        %3858 = vmatpush1.bf16.msra.mxu0 %v3273
        %3859 = vmatprep.subr.bf16.mxu0 0
        %3860 = vmatpush1.bf16.msra.mxu0 %v3274
        %3861 = vmatprep.subr.bf16.mxu0 0
        %3862 = vmatpush1.bf16.msra.mxu0 %v3275
        %3863 = vmatprep.subr.bf16.mxu0 0
        %3864 = vmatpush1.bf16.msra.mxu0 %v3276
        %3865 = vmatprep.subr.bf16.mxu0 0
        %3866 = vmatpush1.bf16.msra.mxu0 %v3277
        %3867 = vmatprep.subr.bf16.mxu0 0
        %3868 = vmatpush1.bf16.msra.mxu0 %v3278
        %3869 = vmatprep.subr.bf16.mxu0 0
        %3870 = vmatpush1.bf16.msra.mxu0 %v3279
        %3871 = vmatprep.subr.bf16.mxu0 0
        %3872 = vmatpush1.bf16.msra.mxu0 %v3280
        %3873 = vmatprep.subr.bf16.mxu0 0
        %3874 = vmatpush1.bf16.msra.mxu0 %v3281
        %3875 = vmatprep.subr.bf16.mxu0 0
        %3876 = vmatpush1.bf16.msra.mxu0 %v3282
        %3877 = vmatprep.subr.bf16.mxu0 0
        %3878 = vmatpush1.bf16.msra.mxu0 %v3283
        %3879 = vmatprep.mubr.bf16.mxu0 %v2741
        %3880 = vmatmul.mubr.bf16.gmra.mrb[0].mxu0 %v2740
        %v3881 = vpop.f32.mrb[0].mxu0
        %v3882 = vadd.f32 %v3721, %v3881
        %v3883 = vpop.f32.mrb[0].mxu0
        %v3884 = vpop.f32.mrb[0].mxu0
        %v3885 = vadd.f32 %v3724, %v3884
        %v3886 = vpop.f32.mrb[0].mxu0
        %3887 = vmatprep.mubr.bf16.mxu0 %v2744
        %3888 = vmatmul.mubr.bf16.gmra.mrb[0].mxu0 %v2743
        %v3889 = vpop.f32.mrb[0].mxu0
        %v3890 = vadd.f32 %v3729, %v3889
        %v3891 = vpop.f32.mrb[0].mxu0
        %v3892 = vpop.f32.mrb[0].mxu0
        %v3893 = vadd.f32 %v3732, %v3892
        %v3894 = vpop.f32.mrb[0].mxu0
        %3895 = vmatprep.mubr.bf16.mxu0 %v2747
        %3896 = vmatmul.mubr.bf16.gmra.mrb[0].mxu0 %v2746
        %v3897 = vpop.f32.mrb[0].mxu0
        %v3898 = vadd.f32 %v3737, %v3897
        %v3899 = vpop.f32.mrb[0].mxu0
        %v3900 = vpop.f32.mrb[0].mxu0
        %v3901 = vadd.f32 %v3740, %v3900
        %v3902 = vpop.f32.mrb[0].mxu0
        %3903 = vmatprep.mubr.bf16.mxu0 %v2750
        %3904 = vmatmul.mubr.bf16.gmra.mrb[0].mxu0 %v2749
        %v3905 = vpop.f32.mrb[0].mxu0
        %v3906 = vadd.f32 %v3745, %v3905
        %v3907 = vpop.f32.mrb[0].mxu0
        %v3908 = vpop.f32.mrb[0].mxu0
        %v3909 = vadd.f32 %v3748, %v3908
        %v3910 = vpop.f32.mrb[0].mxu0
        %3911 = vmatprep.mubr.bf16.mxu0 %v2753
        %3912 = vmatmul.mubr.bf16.gmra.mrb[0].mxu0 %v2752
        %v3913 = vpop.f32.mrb[0].mxu0
        %v3914 = vadd.f32 %v3753, %v3913
        %v3915 = vpop.f32.mrb[0].mxu0
        %v3916 = vpop.f32.mrb[0].mxu0
        %v3917 = vadd.f32 %v3756, %v3916
        %v3918 = vpop.f32.mrb[0].mxu0
        %3919 = vmatprep.mubr.bf16.mxu0 %v2756
        %3920 = vmatmul.mubr.bf16.gmra.mrb[0].mxu0 %v2755
        %v3921 = vpop.f32.mrb[0].mxu0
        %v3922 = vadd.f32 %v3761, %v3921
        %v3923 = vpop.f32.mrb[0].mxu0
        %v3924 = vpop.f32.mrb[0].mxu0
        %v3925 = vadd.f32 %v3764, %v3924
        %v3926 = vpop.f32.mrb[0].mxu0
        %3927 = vmatprep.mubr.bf16.mxu0 %v2759
        %3928 = vmatmul.mubr.bf16.gmra.mrb[0].mxu0 %v2758
        %v3929 = vpop.f32.mrb[0].mxu0
        %v3930 = vadd.f32 %v3769, %v3929
        %v3931 = vpop.f32.mrb[0].mxu0
        %v3932 = vpop.f32.mrb[0].mxu0
        %v3933 = vadd.f32 %v3772, %v3932
        %v3934 = vpop.f32.mrb[0].mxu0
        %3935 = vmatprep.mubr.bf16.mxu0 %v2762
        %3936 = vmatmul.mubr.bf16.gmra.mrb[0].mxu0 %v2761
        %v3937 = vpop.f32.mrb[0].mxu0
        %v3938 = vadd.f32 %v3777, %v3937
        %v3939 = vpop.f32.mrb[0].mxu0
        %v3940 = vpop.f32.mrb[0].mxu0
        %v3941 = vadd.f32 %v3780, %v3940
        %v3942 = vpop.f32.mrb[0].mxu0
        %3943 = vmatprep.mubr.bf16.mxu0 %v2765
        %3944 = vmatmul.mubr.bf16.gmra.mrb[0].mxu0 %v2764
        %v3945 = vpop.f32.mrb[0].mxu0
        %v3946 = vadd.f32 %v3785, %v3945
        %v3947 = vpop.f32.mrb[0].mxu0
        %v3948 = vpop.f32.mrb[0].mxu0
        %v3949 = vadd.f32 %v3788, %v3948
        %v3950 = vpop.f32.mrb[0].mxu0
        %3951 = vmatprep.mubr.bf16.mxu0 %v2768
        %3952 = vmatmul.mubr.bf16.gmra.mrb[0].mxu0 %v2767
        %v3953 = vpop.f32.mrb[0].mxu0
        %v3954 = vadd.f32 %v3793, %v3953
        %v3955 = vpop.f32.mrb[0].mxu0
        %v3956 = vpop.f32.mrb[0].mxu0
        %v3957 = vadd.f32 %v3796, %v3956
        %v3958 = vpop.f32.mrb[0].mxu0
        %3959 = vmatprep.mubr.bf16.mxu0 %v2771
        %3960 = vmatmul.mubr.bf16.gmra.mrb[0].mxu0 %v2770
        %v3961 = vpop.f32.mrb[0].mxu0
        %v3962 = vadd.f32 %v3801, %v3961
        %v3963 = vpop.f32.mrb[0].mxu0
        %v3964 = vpop.f32.mrb[0].mxu0
        %v3965 = vadd.f32 %v3804, %v3964
        %v3966 = vpop.f32.mrb[0].mxu0
        %3967 = vmatprep.mubr.bf16.mxu0 %v2774
        %3968 = vmatmul.mubr.bf16.gmra.mrb[0].mxu0 %v2773
        %v3969 = vpop.f32.mrb[0].mxu0
        %v3970 = vadd.f32 %v3809, %v3969
        %v3971 = vpop.f32.mrb[0].mxu0
        %v3972 = vpop.f32.mrb[0].mxu0
        %v3973 = vadd.f32 %v3812, %v3972
        %v3974 = vpop.f32.mrb[0].mxu0
        %3975 = vmatprep.mubr.bf16.mxu0 %v2777
        %3976 = vmatmul.mubr.bf16.gmra.mrb[0].mxu0 %v2776
        %v3977 = vpop.f32.mrb[0].mxu0
        %v3978 = vadd.f32 %v3817, %v3977
        %v3979 = vpop.f32.mrb[0].mxu0
        %v3980 = vpop.f32.mrb[0].mxu0
        %v3981 = vadd.f32 %v3820, %v3980
        %v3982 = vpop.f32.mrb[0].mxu0
        %3983 = vmatprep.mubr.bf16.mxu0 %v2780
        %3984 = vmatmul.mubr.bf16.gmra.mrb[0].mxu0 %v2779
        %v3985 = vpop.f32.mrb[0].mxu0
        %v3986 = vadd.f32 %v3825, %v3985
        %v3987 = vpop.f32.mrb[0].mxu0
        %v3988 = vpop.f32.mrb[0].mxu0
        %v3989 = vadd.f32 %v3828, %v3988
        %v3990 = vpop.f32.mrb[0].mxu0
        %3991 = vmatprep.mubr.bf16.mxu0 %v2783
        %3992 = vmatmul.mubr.bf16.gmra.mrb[0].mxu0 %v2782
        %v3993 = vpop.f32.mrb[0].mxu0
        %v3994 = vadd.f32 %v3833, %v3993
        %v3995 = vpop.f32.mrb[0].mxu0
        %v3996 = vpop.f32.mrb[0].mxu0
        %v3997 = vadd.f32 %v3836, %v3996
        %v3998 = vpop.f32.mrb[0].mxu0
        %3999 = vmatprep.mubr.bf16.mxu0 %v2786
        %4000 = vmatmul.mubr.bf16.gmra.mrb[0].mxu0 %v2785
        %v4001 = vpop.f32.mrb[0].mxu0
        %v4002 = vadd.f32 %v3841, %v4001
        %v4003 = vpop.f32.mrb[0].mxu0
        %v4004 = vpop.f32.mrb[0].mxu0
        %v4005 = vadd.f32 %v3844, %v4004
        %v4006 = vpop.f32.mrb[0].mxu0
        %4007 = vdwg.mxu0
        %4008 = vmatprep.subr.bf16.mxu0 0
        %4009 = vmatpush1.bf16.msra.mxu0 %v3284
        %4010 = vmatprep.subr.bf16.mxu0 0
        %4011 = vmatpush1.bf16.msra.mxu0 %v3285
        %4012 = vmatprep.subr.bf16.mxu0 0
        %4013 = vmatpush1.bf16.msra.mxu0 %v3286
        %4014 = vmatprep.subr.bf16.mxu0 0
        %4015 = vmatpush1.bf16.msra.mxu0 %v3287
        %4016 = vmatprep.subr.bf16.mxu0 0
        %4017 = vmatpush1.bf16.msra.mxu0 %v3288
        %4018 = vmatprep.subr.bf16.mxu0 0
        %4019 = vmatpush1.bf16.msra.mxu0 %v3289
        %4020 = vmatprep.subr.bf16.mxu0 0
        %4021 = vmatpush1.bf16.msra.mxu0 %v3290
        %4022 = vmatprep.subr.bf16.mxu0 0
        %4023 = vmatpush1.bf16.msra.mxu0 %v3291
        %4024 = vmatprep.subr.bf16.mxu0 0
        %4025 = vmatpush1.bf16.msra.mxu0 0
        %4026 = vmatprep.subr.bf16.mxu0 0
        %4027 = vmatpush1.bf16.msra.mxu0 0
        %4028 = vmatprep.subr.bf16.mxu0 0
        %4029 = vmatpush1.bf16.msra.mxu0 0
        %4030 = vmatprep.subr.bf16.mxu0 0
        %4031 = vmatpush1.bf16.msra.mxu0 0
        %4032 = vmatprep.subr.bf16.mxu0 0
        %4033 = vmatpush1.bf16.msra.mxu0 0
        %4034 = vmatprep.subr.bf16.mxu0 0
        %4035 = vmatpush1.bf16.msra.mxu0 0
        %4036 = vmatprep.subr.bf16.mxu0 0
        %4037 = vmatpush1.bf16.msra.mxu0 0
        %4038 = vmatprep.subr.bf16.mxu0 0
        %4039 = vmatpush1.bf16.msra.mxu0 0
        %4040 = vmatprep.mubr.bf16.mxu0 0
        %4041 = vmatmul.mubr.bf16.gmra.mrb[0].mxu0 %v2742
        %v4042 = vpop.f32.mrb[0].mxu0
        %v4043 = vadd.f32 %v3882, %v4042
        %v4044 = vpop.f32.mrb[0].mxu0
        %v4045 = vpop.f32.mrb[0].mxu0
        %v4046 = vadd.f32 %v3885, %v4045
        %v4047 = vpop.f32.mrb[0].mxu0
        %4048 = vmatprep.mubr.bf16.mxu0 0
        %4049 = vmatmul.mubr.bf16.gmra.mrb[0].mxu0 %v2745
        %v4050 = vpop.f32.mrb[0].mxu0
        %v4051 = vadd.f32 %v3890, %v4050
        %v4052 = vpop.f32.mrb[0].mxu0
        %v4053 = vpop.f32.mrb[0].mxu0
        %v4054 = vadd.f32 %v3893, %v4053
        %v4055 = vpop.f32.mrb[0].mxu0
        %4056 = vmatprep.mubr.bf16.mxu0 0
        %4057 = vmatmul.mubr.bf16.gmra.mrb[0].mxu0 %v2748
        %v4058 = vpop.f32.mrb[0].mxu0
        %v4059 = vadd.f32 %v3898, %v4058
        %v4060 = vpop.f32.mrb[0].mxu0
        %v4061 = vpop.f32.mrb[0].mxu0
        %v4062 = vadd.f32 %v3901, %v4061
        %v4063 = vpop.f32.mrb[0].mxu0
        %4064 = vmatprep.mubr.bf16.mxu0 0
        %4065 = vmatmul.mubr.bf16.gmra.mrb[0].mxu0 %v2751
        %v4066 = vpop.f32.mrb[0].mxu0
        %v4067 = vadd.f32 %v3906, %v4066
        %v4068 = vpop.f32.mrb[0].mxu0
        %v4069 = vpop.f32.mrb[0].mxu0
        %v4070 = vadd.f32 %v3909, %v4069
        %v4071 = vpop.f32.mrb[0].mxu0
        %4072 = vmatprep.mubr.bf16.mxu0 0
        %4073 = vmatmul.mubr.bf16.gmra.mrb[0].mxu0 %v2754
        %v4074 = vpop.f32.mrb[0].mxu0
        %v4075 = vadd.f32 %v3914, %v4074
        %v4076 = vpop.f32.mrb[0].mxu0
        %v4077 = vpop.f32.mrb[0].mxu0
        %v4078 = vadd.f32 %v3917, %v4077
        %v4079 = vpop.f32.mrb[0].mxu0
        %4080 = vmatprep.mubr.bf16.mxu0 0
        %4081 = vmatmul.mubr.bf16.gmra.mrb[0].mxu0 %v2757
        %v4082 = vpop.f32.mrb[0].mxu0
        %v4083 = vadd.f32 %v3922, %v4082
        %v4084 = vpop.f32.mrb[0].mxu0
        %v4085 = vpop.f32.mrb[0].mxu0
        %v4086 = vadd.f32 %v3925, %v4085
        %v4087 = vpop.f32.mrb[0].mxu0
        %4088 = vmatprep.mubr.bf16.mxu0 0
        %4089 = vmatmul.mubr.bf16.gmra.mrb[0].mxu0 %v2760
        %v4090 = vpop.f32.mrb[0].mxu0
        %v4091 = vadd.f32 %v3930, %v4090
        %v4092 = vpop.f32.mrb[0].mxu0
        %v4093 = vpop.f32.mrb[0].mxu0
        %v4094 = vadd.f32 %v3933, %v4093
        %v4095 = vpop.f32.mrb[0].mxu0
        %4096 = vmatprep.mubr.bf16.mxu0 0
        %4097 = vmatmul.mubr.bf16.gmra.mrb[0].mxu0 %v2763
        %v4098 = vpop.f32.mrb[0].mxu0
        %v4099 = vadd.f32 %v3938, %v4098
        %v4100 = vpop.f32.mrb[0].mxu0
        %v4101 = vpop.f32.mrb[0].mxu0
        %v4102 = vadd.f32 %v3941, %v4101
        %v4103 = vpop.f32.mrb[0].mxu0
        %4104 = vmatprep.mubr.bf16.mxu0 0
        %4105 = vmatmul.mubr.bf16.gmra.mrb[0].mxu0 %v2766
        %v4106 = vpop.f32.mrb[0].mxu0
        %v4107 = vadd.f32 %v3946, %v4106
        %v4108 = vpop.f32.mrb[0].mxu0
        %v4109 = vpop.f32.mrb[0].mxu0
        %v4110 = vadd.f32 %v3949, %v4109
        %v4111 = vpop.f32.mrb[0].mxu0
        %4112 = vmatprep.mubr.bf16.mxu0 0
        %4113 = vmatmul.mubr.bf16.gmra.mrb[0].mxu0 %v2769
        %v4114 = vpop.f32.mrb[0].mxu0
        %v4115 = vadd.f32 %v3954, %v4114
        %v4116 = vpop.f32.mrb[0].mxu0
        %v4117 = vpop.f32.mrb[0].mxu0
        %v4118 = vadd.f32 %v3957, %v4117
        %v4119 = vpop.f32.mrb[0].mxu0
        %4120 = vmatprep.mubr.bf16.mxu0 0
        %4121 = vmatmul.mubr.bf16.gmra.mrb[0].mxu0 %v2772
        %v4122 = vpop.f32.mrb[0].mxu0
        %v4123 = vadd.f32 %v3962, %v4122
        %v4124 = vpop.f32.mrb[0].mxu0
        %v4125 = vpop.f32.mrb[0].mxu0
        %v4126 = vadd.f32 %v3965, %v4125
        %v4127 = vpop.f32.mrb[0].mxu0
        %4128 = vmatprep.mubr.bf16.mxu0 0
        %4129 = vmatmul.mubr.bf16.gmra.mrb[0].mxu0 %v2775
        %v4130 = vpop.f32.mrb[0].mxu0
        %v4131 = vadd.f32 %v3970, %v4130
        %v4132 = vpop.f32.mrb[0].mxu0
        %v4133 = vpop.f32.mrb[0].mxu0
        %v4134 = vadd.f32 %v3973, %v4133
        %v4135 = vpop.f32.mrb[0].mxu0
        %4136 = vmatprep.mubr.bf16.mxu0 0
        %4137 = vmatmul.mubr.bf16.gmra.mrb[0].mxu0 %v2778
        %v4138 = vpop.f32.mrb[0].mxu0
        %v4139 = vadd.f32 %v3978, %v4138
        %v4140 = vpop.f32.mrb[0].mxu0
        %v4141 = vpop.f32.mrb[0].mxu0
        %v4142 = vadd.f32 %v3981, %v4141
        %v4143 = vpop.f32.mrb[0].mxu0
        %4144 = vmatprep.mubr.bf16.mxu0 0
        %4145 = vmatmul.mubr.bf16.gmra.mrb[0].mxu0 %v2781
        %v4146 = vpop.f32.mrb[0].mxu0
        %v4147 = vadd.f32 %v3986, %v4146
        %v4148 = vpop.f32.mrb[0].mxu0
        %v4149 = vpop.f32.mrb[0].mxu0
        %v4150 = vadd.f32 %v3989, %v4149
        %v4151 = vpop.f32.mrb[0].mxu0
        %4152 = vmatprep.mubr.bf16.mxu0 0
        %4153 = vmatmul.mubr.bf16.gmra.mrb[0].mxu0 %v2784
        %v4154 = vpop.f32.mrb[0].mxu0
        %v4155 = vadd.f32 %v3994, %v4154
        %v4156 = vpop.f32.mrb[0].mxu0
        %v4157 = vpop.f32.mrb[0].mxu0
        %v4158 = vadd.f32 %v3997, %v4157
        %v4159 = vpop.f32.mrb[0].mxu0
        %4160 = vmatprep.mubr.bf16.mxu0 0
        %4161 = vmatmul.mubr.bf16.gmra.mrb[0].mxu0 %v2787
        %v4162 = vpop.f32.mrb[0].mxu0
        %v4163 = vadd.f32 %v4002, %v4162
        %v4164 = vpop.f32.mrb[0].mxu0
        %v4165 = vpop.f32.mrb[0].mxu0
        %v4166 = vadd.f32 %v4005, %v4165
        %v4167 = vpop.f32.mrb[0].mxu0
        %4168 = vdwg.mxu0
        %v4169 = vld [vmem:[%s5] sm:$0x1]
        %v4171 = vlaneseq
        %v4172 = vshrl.u32 %v4171, 7
        %v4173 = vsub.s32 0, %v4172
        %v4174 = vrot.slane %v4169, %v4173
        %v4176 = vmul.f32 %v4043, %v4174
        %v4177 = vmul.f32 %v4046, %v4174
        %v4178 = vmul.f32 %v4051, %v4174
        %v4179 = vmul.f32 %v4054, %v4174
        %v4180 = vmul.f32 %v4059, %v4174
        %v4181 = vmul.f32 %v4062, %v4174
        %v4182 = vmul.f32 %v4067, %v4174
        %v4183 = vmul.f32 %v4070, %v4174
        %v4184 = vmul.f32 %v4075, %v4174
        %v4185 = vmul.f32 %v4078, %v4174
        %v4186 = vmul.f32 %v4083, %v4174
        %v4187 = vmul.f32 %v4086, %v4174
        %v4188 = vmul.f32 %v4091, %v4174
        %v4189 = vmul.f32 %v4094, %v4174
        %v4190 = vmul.f32 %v4099, %v4174
        %v4191 = vmul.f32 %v4102, %v4174
        %v4192 = vmul.f32 %v4107, %v4174
        %v4193 = vmul.f32 %v4110, %v4174
        %v4194 = vmul.f32 %v4115, %v4174
        %v4195 = vmul.f32 %v4118, %v4174
        %v4196 = vmul.f32 %v4123, %v4174
        %v4197 = vmul.f32 %v4126, %v4174
        %v4198 = vmul.f32 %v4131, %v4174
        %v4199 = vmul.f32 %v4134, %v4174
        %v4200 = vmul.f32 %v4139, %v4174
        %v4201 = vmul.f32 %v4142, %v4174
        %v4202 = vmul.f32 %v4147, %v4174
        %v4203 = vmul.f32 %v4150, %v4174
        %v4204 = vmul.f32 %v4155, %v4174
        %v4205 = vmul.f32 %v4158, %v4174
        %v4206 = vmul.f32 %v4163, %v4174
        %v4207 = vmul.f32 %v4166, %v4174
        %v4208 = vld [vmem:[%s6] sm:$0x1]
        %v4210 = vlaneseq
        %v4211 = vshrl.u32 %v4210, 7
        %v4212 = vsub.s32 0, %v4211
        %v4213 = vrot.slane %v4208, %v4212
        %v4215 = vadd.f32 %v4176, %v4213
        %v4216 = vadd.f32 %v4177, %v4213
        %v4217 = vadd.f32 %v4178, %v4213
        %v4218 = vadd.f32 %v4179, %v4213
        %v4219 = vadd.f32 %v4180, %v4213
        %v4220 = vadd.f32 %v4181, %v4213
        %v4221 = vadd.f32 %v4182, %v4213
        %v4222 = vadd.f32 %v4183, %v4213
        %v4223 = vadd.f32 %v4184, %v4213
        %v4224 = vadd.f32 %v4185, %v4213
        %v4225 = vadd.f32 %v4186, %v4213
        %v4226 = vadd.f32 %v4187, %v4213
        %v4227 = vadd.f32 %v4188, %v4213
        %v4228 = vadd.f32 %v4189, %v4213
        %v4229 = vadd.f32 %v4190, %v4213
        %v4230 = vadd.f32 %v4191, %v4213
        %v4231 = vadd.f32 %v4192, %v4213
        %v4232 = vadd.f32 %v4193, %v4213
        %v4233 = vadd.f32 %v4194, %v4213
        %v4234 = vadd.f32 %v4195, %v4213
        %v4235 = vadd.f32 %v4196, %v4213
        %v4236 = vadd.f32 %v4197, %v4213
        %v4237 = vadd.f32 %v4198, %v4213
        %v4238 = vadd.f32 %v4199, %v4213
        %v4239 = vadd.f32 %v4200, %v4213
        %v4240 = vadd.f32 %v4201, %v4213
        %v4241 = vadd.f32 %v4202, %v4213
        %v4242 = vadd.f32 %v4203, %v4213
        %v4243 = vadd.f32 %v4204, %v4213
        %v4244 = vadd.f32 %v4205, %v4213
        %v4245 = vadd.f32 %v4206, %v4213
        %v4246 = vadd.f32 %v4207, %v4213
        %v4247 = vadd.f32 %v4215, %v370
        %v4248 = vadd.f32 %v4216, %v371
        %v4249 = vadd.f32 %v4217, %v372
        %v4250 = vadd.f32 %v4218, %v373
        %v4251 = vadd.f32 %v4219, %v374
        %v4252 = vadd.f32 %v4220, %v375
        %v4253 = vadd.f32 %v4221, %v376
        %v4254 = vadd.f32 %v4222, %v377
        %v4255 = vadd.f32 %v4223, %v378
        %v4256 = vadd.f32 %v4224, %v379
        %v4257 = vadd.f32 %v4225, %v380
        %v4258 = vadd.f32 %v4226, %v381
        %v4259 = vadd.f32 %v4227, %v382
        %v4260 = vadd.f32 %v4228, %v383
        %v4261 = vadd.f32 %v4229, %v384
        %v4262 = vadd.f32 %v4230, %v385
        %v4263 = vadd.f32 %v4231, %v386
        %v4264 = vadd.f32 %v4232, %v387
        %v4265 = vadd.f32 %v4233, %v388
        %v4266 = vadd.f32 %v4234, %v389
        %v4267 = vadd.f32 %v4235, %v390
        %v4268 = vadd.f32 %v4236, %v391
        %v4269 = vadd.f32 %v4237, %v392
        %v4270 = vadd.f32 %v4238, %v393
        %v4271 = vadd.f32 %v4239, %v394
        %v4272 = vadd.f32 %v4240, %v395
        %v4273 = vadd.f32 %v4241, %v396
        %v4274 = vadd.f32 %v4242, %v397
        %v4275 = vadd.f32 %v4243, %v398
        %v4276 = vadd.f32 %v4244, %v399
        %v4277 = vadd.f32 %v4245, %v400
        %v4278 = vadd.f32 %v4246, %v401
        %v4279 = vmax.f32 %v4247, 0.0
        %v4280 = vmax.f32 %v4248, 0.0
        %v4281 = vmax.f32 %v4249, 0.0
        %v4282 = vmax.f32 %v4250, 0.0
        %v4283 = vmax.f32 %v4251, 0.0
        %v4284 = vmax.f32 %v4252, 0.0
        %v4285 = vmax.f32 %v4253, 0.0
        %v4286 = vmax.f32 %v4254, 0.0
        %v4287 = vmax.f32 %v4255, 0.0
        %v4288 = vmax.f32 %v4256, 0.0
        %v4289 = vmax.f32 %v4257, 0.0
        %v4290 = vmax.f32 %v4258, 0.0
        %v4291 = vmax.f32 %v4259, 0.0
        %v4292 = vmax.f32 %v4260, 0.0
        %v4293 = vmax.f32 %v4261, 0.0
        %v4294 = vmax.f32 %v4262, 0.0
        %v4295 = vmax.f32 %v4263, 0.0
        %v4296 = vmax.f32 %v4264, 0.0
        %v4297 = vmax.f32 %v4265, 0.0
        %v4298 = vmax.f32 %v4266, 0.0
        %v4299 = vmax.f32 %v4267, 0.0
        %v4300 = vmax.f32 %v4268, 0.0
        %v4301 = vmax.f32 %v4269, 0.0
        %v4302 = vmax.f32 %v4270, 0.0
        %v4303 = vmax.f32 %v4271, 0.0
        %v4304 = vmax.f32 %v4272, 0.0
        %v4305 = vmax.f32 %v4273, 0.0
        %v4306 = vmax.f32 %v4274, 0.0
        %v4307 = vmax.f32 %v4275, 0.0
        %v4308 = vmax.f32 %v4276, 0.0
        %v4309 = vmax.f32 %v4277, 0.0
        %v4310 = vmax.f32 %v4278, 0.0
        %4311 = vst [vmem:[%s325] sm:$0xff] %v4279
        %4312 = vst [vmem:[%s325 + $0x8] sm:$0xff] %v4280
        %4313 = vst [vmem:[%s325 + $0x10] sm:$0xff] %v4281
        %4314 = vst [vmem:[%s325 + $0x18] sm:$0xff] %v4282
        %4315 = vst [vmem:[%s325 + $0x20] sm:$0xff] %v4283
        %4316 = vst [vmem:[%s325 + $0x28] sm:$0xff] %v4284
        %4317 = vst [vmem:[%s325 + $0x30] sm:$0xff] %v4285
        %4318 = vst [vmem:[%s325 + $0x38] sm:$0xff] %v4286
        %4319 = vst [vmem:[%s325 + $0x40] sm:$0xff] %v4287
        %4320 = vst [vmem:[%s325 + $0x48] sm:$0xff] %v4288
        %4321 = vst [vmem:[%s325 + $0x50] sm:$0xff] %v4289
        %4322 = vst [vmem:[%s325 + $0x58] sm:$0xff] %v4290
        %4323 = vst [vmem:[%s325 + $0x60] sm:$0xff] %v4291
        %4324 = vst [vmem:[%s325 + $0x68] sm:$0xff] %v4292
        %4325 = vst [vmem:[%s325 + $0x70] sm:$0xff] %v4293
        %4326 = vst [vmem:[%s325 + $0x78] sm:$0xff] %v4294
        %4327 = vst [vmem:[%s325 + $0x80] sm:$0xff] %v4295
        %4328 = vst [vmem:[%s325 + $0x88] sm:$0xff] %v4296
        %4329 = vst [vmem:[%s325 + $0x90] sm:$0xff] %v4297
        %4330 = vst [vmem:[%s325 + $0x98] sm:$0xff] %v4298
        %4331 = vst [vmem:[%s325 + $0xa0] sm:$0xff] %v4299
        %4332 = vst [vmem:[%s325 + $0xa8] sm:$0xff] %v4300
        %4333 = vst [vmem:[%s325 + $0xb0] sm:$0xff] %v4301
        %4334 = vst [vmem:[%s325 + $0xb8] sm:$0xff] %v4302
        %4335 = vst [vmem:[%s325 + $0xc0] sm:$0xff] %v4303
        %4336 = vst [vmem:[%s325 + $0xc8] sm:$0xff] %v4304
        %4337 = vst [vmem:[%s325 + $0xd0] sm:$0xff] %v4305
        %4338 = vst [vmem:[%s325 + $0xd8] sm:$0xff] %v4306
        %4339 = vst [vmem:[%s325 + $0xe0] sm:$0xff] %v4307
        %4340 = vst [vmem:[%s325 + $0xe8] sm:$0xff] %v4308
        %4341 = vst [vmem:[%s325 + $0xf0] sm:$0xff] %v4309
        %4342 = vst [vmem:[%s325 + $0xf8] sm:$0xff] %v4310
        %s4343 = sand.u32 %s185, 1
        %s4344 = scalar_lea.sflag [#allocation5], %s4343
        %s4345 = sand.u32 %s185, 1
        %s4346 = smul.addr %s4345, 256
        %s4347 = scalar_lea.vmem [#allocation9], %s4346
        // Predicated region
        $region61: #{tpu_custom_call.1} parent=47 // pred_check
          %p4348 = pneg %p195
        $region62: #{tpu_custom_call.1} parent=47 // pred_check_branch
          %4350 = sbr.rel (%p4348) target = $region64
        $region63: #{tpu_custom_call.1} parent=47 // pred_region
          %s4352 = ssub.s32 4096, 4096
          %4353 = vsyncadd %s4344, %s4352
          %s4354 = smul.addr %s25, 32
          %s4355 = smul.addr %s4354, 128
          %s4356 = scalar_lea.hbm %s7, %s4355
          %s4357 = sshll.u32 %s4347, 4
          %s4358 = int_to_ptr.vmem [resolvable:$true] %s4357
          %4363 = dma.vmem_to_hbm [thread:$0]  %s4358, 4096, %s4356, %s4344, 128, 128, 8
        $region64: #{tpu_custom_call.1} parent=47 // pred_fallthru
          _
      $region48: #{tpu_custom_call.1} parent=5 // pred_fallthru
        _
      %p4364 = scmp.le.s32.totalorder 2, %s20
      // Predicated region
      $region65: #{tpu_custom_call.1} parent=5 // pred_check
        %p4365 = pneg %p4364
      $region66: #{tpu_custom_call.1} parent=5 // pred_check_branch
        %4367 = sbr.rel (%p4365) target = $region68
      $region67: #{tpu_custom_call.1} parent=5 // pred_region
        %s4368 = ssub.s32 %s20, 2
        // Predicated region
        $region69: #{tpu_custom_call.1} parent=67 // pred_check
          %p4369 = pneg %p201
        $region70: #{tpu_custom_call.1} parent=67 // pred_check_branch
          %4371 = sbr.rel (%p4369) target = $region72
        $region71: #{tpu_custom_call.1} parent=67 // pred_region
          %s4372 = sand.u32 %s186, 1
          %s4373 = scalar_lea.sflag [#allocation5], %s4372
          %s4374 = sand.u32 %s186, 1
          %s4375 = smul.addr %s4374, 256
          %s4376 = scalar_lea.vmem [#allocation9], %s4375
          %4377 = dma.done %s4373, 4096
        $region72: #{tpu_custom_call.1} parent=67 // pred_fallthru
          _
      $region68: #{tpu_custom_call.1} parent=5 // pred_fallthru
        _
    $region6: #{tpu_custom_call.1} parent=1 // loop_footer
      %s24 = sadd.s32 1, %s20
    $region7: #{tpu_custom_call.1} parent=1 // loop_footer_branch
      %19 = sbr.rel target = $region3
    $region8: #{tpu_custom_call.1} parent=1 // loop_exit
      _
    %4378 = vsyncpa [#allocation4], 1
    %s4379 = scalar_lea.sflag [#allocation4], 1
    %4380 = vsyncpa %s4379, 1
    %4381 = vsyncpa [#allocation7], 1
    %4382 = vsyncpa [#allocation5], 1
    %s4383 = scalar_lea.sflag [#allocation5], 1
    %4384 = vsyncpa %s4383, 1

</llo_original>
